<compile_context>
chip_gen: v7x
topology: tpu7x:2x2x1
jax: 0.10.0
libtpu: 0.0.40
codegen_flags: <defaults>
</compile_context>

<pallas_src>
import functools

import jax
import jax.numpy as jnp
from jax import lax
from jax.experimental import pallas as pl
from jax.experimental.pallas import tpu as pltpu


def _round_up(x, m):
    return ((x + m - 1) // m) * m


def _conv_stats_kernel(p_ref, w_ref, o_ref, stats_ref, *, cout):
    # (tm, Kp) bf16 @ (Kp, Cp) bf16 on the MXU, f32 accumulation.
    acc = jnp.dot(p_ref[...], w_ref[...], preferred_element_type=jnp.float32)
    acc = acc[:, :cout]                     # drop lane-padded (all-zero) channels
    o_ref[...] = acc.astype(o_ref.dtype)    # bf16 activation intermediate, (tm, Cout)
    # Fused per-channel partial BN statistics while the f32 tile is still in VMEM.
    # Padded rows of the patch matrix are all-zero -> contribute 0 to both sums, so
    # the host-side finalize divides by M (real rows), not Mp.
    stats_ref[...] = jnp.concatenate(
        [jnp.sum(acc, axis=0, keepdims=True),
         jnp.sum(acc * acc, axis=0, keepdims=True)],
        axis=0)[None]                       # (1, 2, Cout)


def _affine_relu_kernel(y_ref, scale_ref, shift_ref, o_ref):
    # y_hat*gamma + beta rewritten as y*scale + shift (f32 math), then ReLU.
    y = y_ref[...].astype(jnp.float32)
    o_ref[...] = jnp.maximum(y * scale_ref[...] + shift_ref[...], 0.0)


@functools.partial(jax.jit, static_argnames=("stride", "padding", "tm"))
def conv_block_3d(x, weight, bias, gamma, beta, *, stride=1, padding=0, tm=2048):
    """relu(batchnorm3d(conv3d(x, weight, bias, stride, padding))) with batch stats."""
    del bias  # exactly cancelled by the train-mode BN mean subtraction.

    N, Cin, D, H, W = x.shape
    Cout, _, kd, kh, kw = weight.shape
    s, p = stride, padding
    Do = (D + 2 * p - kd) // s + 1
    Ho = (H + 2 * p - kh) // s + 1
    Wo = (W + 2 * p - kw) // s + 1

    # ---- glue: im2col patch extraction (XLA slicing/reshapes), done in bf16 so the
    # kd*kh*kw-blown-up intermediate costs half the HBM traffic of f32.
    # TODO(synk): for large volumes, replace the materialized im2col with a direct-conv
    # kernel (x kept in HBM via BlockSpec(memory_space=pl.ANY), windowed slabs DMA'd
    # into VMEM scratch), removing the k^3 read amplification entirely.
    xp = jnp.pad(x, ((0, 0), (0, 0), (p, p), (p, p), (p, p))).astype(jnp.bfloat16)
    cols = []
    for i in range(kd):
        for j in range(kh):
            for k in range(kw):
                cols.append(xp[:, :, i:i + Do * s:s, j:j + Ho * s:s, k:k + Wo * s:s])
    pat = jnp.stack(cols, axis=2)                      # (N, Cin, kd*kh*kw, Do, Ho, Wo)
    pat = jnp.transpose(pat, (0, 3, 4, 5, 1, 2))       # (N, Do, Ho, Wo, Cin, kd*kh*kw)

    M = N * Do * Ho * Wo
    K = Cin * kd * kh * kw
    pat = pat.reshape(M, K)
    w2 = weight.reshape(Cout, K).T                     # (K, Cout), matches patch order

    # K padded to a lane multiple for the MXU; Cout padded ONLY on the (tiny, resident)
    # weight -- the activation intermediate stays unpadded at Cout.
    Kp = _round_up(K, 128)
    Cp = _round_up(Cout, 128)
    tm = max(16, min(tm, _round_up(M, 16)))
    tm = _round_up(tm, 16)
    Mp = _round_up(M, tm)
    num_tiles = Mp // tm

    pat = jnp.pad(pat, ((0, Mp - M), (0, Kp - K)))                      # already bf16
    w2 = jnp.pad(w2, ((0, Kp - K), (0, Cp - Cout))).astype(jnp.bfloat16)

    # ---- Pallas pass 1: conv matmul + fused per-channel partial BN stats ----
    # TODO(synk): add a K grid axis ("arbitrary") with a VMEM f32 accumulator (and
    # pipeline_mode=pl.Buffered(1) on the resident weight) once Cin*kd*kh*kw grows
    # beyond ~1-2k -- the double-buffered (tm, Kp) tile would otherwise blow the
    # 64 MiB physical VMEM on v7x.
    conv_out, stats = pl.pallas_call(
        functools.partial(_conv_stats_kernel, cout=Cout),
        out_shape=(
            jax.ShapeDtypeStruct((Mp, Cout), jnp.bfloat16),
            jax.ShapeDtypeStruct((num_tiles, 2, Cout), jnp.float32),
        ),
        grid_spec=pltpu.PrefetchScalarGridSpec(
            num_scalar_prefetch=0,
            grid=(num_tiles,),
            in_specs=[
                pl.BlockSpec((tm, Kp), lambda i: (i, 0)),
                pl.BlockSpec((Kp, Cp), lambda i: (0, 0)),   # constant -> resident
            ],
            out_specs=[
                pl.BlockSpec((tm, Cout), lambda i: (i, 0)),
                pl.BlockSpec((1, 2, Cout), lambda i: (i, 0, 0)),
            ],
        ),
        compiler_params=pltpu.CompilerParams(
            dimension_semantics=("parallel",),
        ),
    )(pat, w2)

    # ---- tiny finalize (Cout-sized vectors): mean/var -> fused scale/shift ----
    inv_m = 1.0 / float(M)                        # divide by real rows, not padded Mp
    tot = jnp.sum(stats, axis=0)                  # (2, Cout)
    mean = tot[0] * inv_m
    ex2 = tot[1] * inv_m
    # TODO(synk): E[x^2]-E[x]^2 in f32 can cancel for very large M / |mean| >> std;
    # switch to per-tile centered sums (Welford-style combine) if tolerances tighten.
    var = jnp.maximum(ex2 - mean * mean, 0.0)     # biased variance (PyTorch train mode)
    scale = gamma.astype(jnp.float32) * lax.rsqrt(var + 1e-5)
    shift = beta.astype(jnp.float32) - mean * scale
    scale = scale.reshape(1, Cout)
    shift = shift.reshape(1, Cout)

    # ---- Pallas pass 2: tiled affine + ReLU ----
    bn_out = pl.pallas_call(
        _affine_relu_kernel,
        out_shape=jax.ShapeDtypeStruct((Mp, Cout), jnp.float32),
        grid_spec=pltpu.PrefetchScalarGridSpec(
            num_scalar_prefetch=0,
            grid=(num_tiles,),
            in_specs=[
                pl.BlockSpec((tm, Cout), lambda i: (i, 0)),
                pl.BlockSpec((1, Cout), lambda i: (0, 0)),
                pl.BlockSpec((1, Cout), lambda i: (0, 0)),
            ],
            out_specs=pl.BlockSpec((tm, Cout), lambda i: (i, 0)),
        ),
        compiler_params=pltpu.CompilerParams(
            dimension_semantics=("parallel",),
        ),
    )(conv_out, scale, shift)

    # When tm divides M (default demo case) the slice is a no-op and the reshape is
    # free; only the NCDHW transpose remains XLA-side.
    # TODO(synk): return channels-last NDHWC to callers that accept it and drop this
    # transpose entirely.
    out = bn_out[:M].reshape(N, Do, Ho, Wo, Cout)
    return jnp.transpose(out, (0, 4, 1, 2, 3))


def _reference(x, weight, bias, gamma, beta, stride, padding):
    s, p = stride, padding
    y = lax.conv_general_dilated(
        x, weight, window_strides=(s, s, s), padding=[(p, p)] * 3,
        dimension_numbers=("NCDHW", "OIDHW", "NCDHW"))
    y = y + bias.reshape(1, -1, 1, 1, 1)
    mean = jnp.mean(y, axis=(0, 2, 3, 4), keepdims=True)
    var = jnp.mean(jnp.square(y - mean), axis=(0, 2, 3, 4), keepdims=True)
    y = (y - mean) * lax.rsqrt(var + 1e-5)
    y = y * gamma.reshape(1, -1, 1, 1, 1) + beta.reshape(1, -1, 1, 1, 1)
    return jnp.maximum(y, 0.0)


if __name__ == "__main__":
    # Shapes consistent with ConvBlock3d(in_channels=4, out_channels=8, kernel_size=3,
    # stride=1, padding=1) applied to a (2, 4, 8, 8, 8) volume.
    N, Cin, Cout = 2, 4, 8
    D = H = W = 8
    k, stride, padding = 3, 1, 1

    key = jax.random.PRNGKey(0)
    kx, kw_, kb = jax.random.split(key, 3)
    x = jax.random.normal(kx, (N, Cin, D, H, W), dtype=jnp.float32)
    weight = jax.random.normal(kw_, (Cout, Cin, k, k, k), dtype=jnp.float32) * 0.1
    bias = jax.random.normal(kb, (Cout,), dtype=jnp.float32) * 0.1
    gamma = jnp.ones((Cout,), dtype=jnp.float32)   # BatchNorm3d default affine weight
    beta = jnp.zeros((Cout,), dtype=jnp.float32)   # BatchNorm3d default affine bias

    out = conv_block_3d(x, weight, bias, gamma, beta, stride=stride, padding=padding)
    out = jax.block_until_ready(out)

    ref = _reference(x, weight, bias, gamma, beta, stride, padding)
    max_err = float(jnp.max(jnp.abs(out - ref)))
    assert out.shape == (N, Cout, D, H, W), out.shape
    # bf16 im2col + bf16 MXU inputs + bf16 activation intermediate (f32 accumulation,
    # f32 BN math) -> looser tolerance than a pure-f32 pipeline.
    assert max_err < 5e-2, f"max abs error too large: {max_err}"
    print("KERNEL_OK")
</pallas_src>

<mosaic_0001>
module attributes {stable_mosaic.version = 11 : i64} {
  func.func @_conv_stats_kernel(%arg0: i32, %arg1: memref<1024x128xbf16, #tpu.memory_space<vmem>>, %arg2: memref<128x128xbf16, #tpu.memory_space<vmem>>, %arg3: memref<1024x8xbf16, #tpu.memory_space<vmem>>, %arg4: memref<1x2x8xf32, #tpu.memory_space<vmem>>) attributes {dimension_semantics = [#tpu.dimension_semantics<parallel>], iteration_bounds = array<i64: 1>, scalar_prefetch = 0 : i64, scratch_operands = 0 : i64, tpu.core_type = #tpu.core_type<tc>, window_params = [{transform_indices = @transform_0, window_bounds = array<i64: 1024, 128>}, {pipeline_mode = #tpu.pipeline_mode<synchronous>, transform_indices = @transform_1, window_bounds = array<i64: 128, 128>}, {transform_indices = @transform_2, window_bounds = array<i64: 1024, 8>}, {transform_indices = @transform_3, window_bounds = array<i64: 1, 2, 8>}]} {
    %c0 = arith.constant 0 : index
    %c0_0 = arith.constant 0 : index
    %0 = vector.load %arg1[%c0, %c0_0] : memref<1024x128xbf16, #tpu.memory_space<vmem>>, vector<1024x128xbf16>
    %c0_1 = arith.constant 0 : index
    %c0_2 = arith.constant 0 : index
    %1 = vector.load %arg2[%c0_1, %c0_2] : memref<128x128xbf16, #tpu.memory_space<vmem>>, vector<128x128xbf16>
    %cst = arith.constant dense<0.000000e+00> : vector<1024x128xf32>
    %2 = tpu.matmul %0, %1, %cst {dimension_numbers = #tpu.dot_dimension_numbers<[1], [0], [0], [1], [0, 0, 1, 1], [], []>} : vector<1024x128xbf16>, vector<128x128xbf16>, vector<1024x128xf32> -> vector<1024x128xf32>
    %3 = vector.extract_strided_slice %2 {offsets = [0, 0], sizes = [1024, 8], strides = [1, 1]} : vector<1024x128xf32> to vector<1024x8xf32>
    %4 = arith.truncf %3 : vector<1024x8xf32> to vector<1024x8xbf16>
    %c0_3 = arith.constant 0 : index
    %c0_4 = arith.constant 0 : index
    %5 = vector.load %arg3[%c0_3, %c0_4] : memref<1024x8xbf16, #tpu.memory_space<vmem>>, vector<1024x8xbf16>
    tpu.vector_store %arg3[%c0_3, %c0_4], %4 {strides = array<i32>} : memref<1024x8xbf16, #tpu.memory_space<vmem>>, vector<1024x8xbf16>,
    %cst_5 = arith.constant dense<0.000000e+00> : vector<8xf32>
    %6 = vector.multi_reduction <add>, %3, %cst_5 [0] : vector<1024x8xf32> to vector<8xf32>
    %7 = vector.shape_cast %6 : vector<8xf32> to vector<1x8xf32>
    %8 = arith.mulf %3, %3 : vector<1024x8xf32>
    %cst_6 = arith.constant dense<0.000000e+00> : vector<8xf32>
    %9 = vector.multi_reduction <add>, %8, %cst_6 [0] : vector<1024x8xf32> to vector<8xf32>
    %10 = vector.shape_cast %9 : vector<8xf32> to vector<1x8xf32>
    %11 = tpu.concatenate %7, %10 in 0 : vector<1x8xf32>, vector<1x8xf32> -> vector<2x8xf32>
    %12 = vector.shape_cast %11 : vector<2x8xf32> to vector<1x2x8xf32>
    %c0_7 = arith.constant 0 : index
    %c0_8 = arith.constant 0 : index
    %c0_9 = arith.constant 0 : index
    %13 = vector.load %arg4[%c0_7, %c0_8, %c0_9] : memref<1x2x8xf32, #tpu.memory_space<vmem>>, vector<1x2x8xf32>
    tpu.vector_store %arg4[%c0_7, %c0_8, %c0_9], %12 {strides = array<i32>} : memref<1x2x8xf32, #tpu.memory_space<vmem>>, vector<1x2x8xf32>,
    return
  }
  func.func @transform_0(%arg0: i32) -> (i32, i32) {
    %c0_i32 = arith.constant 0 : i32
    %c0_i32_0 = arith.constant 0 : i32
    return %arg0, %c0_i32 : i32, i32
  }
  func.func @transform_1(%arg0: i32) -> (i32, i32) {
    %c0_i32 = arith.constant 0 : i32
    %c0_i32_0 = arith.constant 0 : i32
    %c0_i32_1 = arith.constant 0 : i32
    return %c0_i32, %c0_i32_0 : i32, i32
  }
  func.func @transform_2(%arg0: i32) -> (i32, i32) {
    %c0_i32 = arith.constant 0 : i32
    %c0_i32_0 = arith.constant 0 : i32
    return %arg0, %c0_i32 : i32, i32
  }
  func.func @transform_3(%arg0: i32) -> (i32, i32, i32) {
    %c0_i32 = arith.constant 0 : i32
    %c0_i32_0 = arith.constant 0 : i32
    %c0_i32_1 = arith.constant 0 : i32
    return %arg0, %c0_i32, %c0_i32_0 : i32, i32, i32
  }
}

module attributes {stable_mosaic.version = 11 : i64} {
  func.func @_affine_relu_kernel(%arg0: i32, %arg1: memref<1024x8xbf16, #tpu.memory_space<vmem>>, %arg2: memref<1x8xf32, #tpu.memory_space<vmem>>, %arg3: memref<1x8xf32, #tpu.memory_space<vmem>>, %arg4: memref<1024x8xf32, #tpu.memory_space<vmem>>) attributes {dimension_semantics = [#tpu.dimension_semantics<parallel>], iteration_bounds = array<i64: 1>, scalar_prefetch = 0 : i64, scratch_operands = 0 : i64, tpu.core_type = #tpu.core_type<tc>, window_params = [{transform_indices = @transform_0, window_bounds = array<i64: 1024, 8>}, {pipeline_mode = #tpu.pipeline_mode<synchronous>, transform_indices = @transform_1, window_bounds = array<i64: 1, 8>}, {pipeline_mode = #tpu.pipeline_mode<synchronous>, transform_indices = @transform_2, window_bounds = array<i64: 1, 8>}, {transform_indices = @transform_3, window_bounds = array<i64: 1024, 8>}]} {
    %c0 = arith.constant 0 : index
    %c0_0 = arith.constant 0 : index
    %0 = vector.load %arg1[%c0, %c0_0] : memref<1024x8xbf16, #tpu.memory_space<vmem>>, vector<1024x8xbf16>
    %1 = arith.extf %0 : vector<1024x8xbf16> to vector<1024x8xf32>
    %c0_1 = arith.constant 0 : index
    %c0_2 = arith.constant 0 : index
    %2 = vector.load %arg2[%c0_1, %c0_2] : memref<1x8xf32, #tpu.memory_space<vmem>>, vector<1x8xf32>
    %3 = vector.broadcast %2 : vector<1x8xf32> to vector<1024x8xf32>
    %4 = arith.mulf %1, %3 : vector<1024x8xf32>
    %c0_3 = arith.constant 0 : index
    %c0_4 = arith.constant 0 : index
    %5 = vector.load %arg3[%c0_3, %c0_4] : memref<1x8xf32, #tpu.memory_space<vmem>>, vector<1x8xf32>
    %6 = vector.broadcast %5 : vector<1x8xf32> to vector<1024x8xf32>
    %7 = arith.addf %4, %6 : vector<1024x8xf32>
    %cst = arith.constant 0.000000e+00 : f32
    %8 = vector.broadcast %cst : f32 to vector<1024x8xf32>
    %9 = arith.maximumf %7, %8 : vector<1024x8xf32>
    %c0_5 = arith.constant 0 : index
    %c0_6 = arith.constant 0 : index
    %10 = vector.load %arg4[%c0_5, %c0_6] : memref<1024x8xf32, #tpu.memory_space<vmem>>, vector<1024x8xf32>
    tpu.vector_store %arg4[%c0_5, %c0_6], %9 {strides = array<i32>} : memref<1024x8xf32, #tpu.memory_space<vmem>>, vector<1024x8xf32>,
    return
  }
  func.func @transform_0(%arg0: i32) -> (i32, i32) {
    %c0_i32 = arith.constant 0 : i32
    %c0_i32_0 = arith.constant 0 : i32
    return %arg0, %c0_i32 : i32, i32
  }
  func.func @transform_1(%arg0: i32) -> (i32, i32) {
    %c0_i32 = arith.constant 0 : i32
    %c0_i32_0 = arith.constant 0 : i32
    %c0_i32_1 = arith.constant 0 : i32
    return %c0_i32, %c0_i32_0 : i32, i32
  }
  func.func @transform_2(%arg0: i32) -> (i32, i32) {
    %c0_i32 = arith.constant 0 : i32
    %c0_i32_0 = arith.constant 0 : i32
    %c0_i32_1 = arith.constant 0 : i32
    return %c0_i32, %c0_i32_0 : i32, i32
  }
  func.func @transform_3(%arg0: i32) -> (i32, i32) {
    %c0_i32 = arith.constant 0 : i32
    %c0_i32_0 = arith.constant 0 : i32
    return %arg0, %c0_i32 : i32, i32
  }
}

</mosaic_0001>

<llo_original>
// kernel: conv_block_3d.3
$region0: #{conv_block_3d.3}
  #allocation0 [shape = 'u32[]', space=smem, size = 0x4, offset = 0x4, fixed_abs, tag = 'smem constant byte address 0x4 - core index']
  #allocation1 [shape = 'u32[144,128]{1,0:T(1,128)}', space=vmem, size = 0x12000, scoped, tag = 'internal scratch']
  %s0 = inlined_call_operand.vmem [shape: bf16[1024,8], index: 0, kind: input, shape index: {}]
  %s1 = inlined_call_operand.vmem [shape: f32[1,8], index: 1, kind: input, shape index: {}]
  %s2 = inlined_call_operand.vmem [shape: f32[1,8], index: 2, kind: input, shape index: {}]
  %s3 = inlined_call_operand.vmem [shape: f32[1024,8], index: 3, kind: output, shape index: {}]
  %s4 = sld [smem:[#allocation0]]
  $region22: #{conv_block_3d.3} parent=0
    _
  %s6 = ssub.s32 1, %s4
  %s7 = scalar_select 0, %s6, %s4
  // Predicated region
  $region2: #{conv_block_3d.3} parent=0 // pred_check
    _
  $region3: #{conv_block_3d.3} parent=0 // pred_check_branch
    %9 = sbr.rel (0) target = $region5
  $region4: #{conv_block_3d.3} parent=0 // pred_region
    _
  $region5: #{conv_block_3d.3} parent=0 // pred_fallthru
    _
  // Predicated region
  $region6: #{conv_block_3d.3} parent=0 // pred_check
    _
  $region7: #{conv_block_3d.3} parent=0 // pred_check_branch
    %11 = sbr.rel (0) target = $region9
  $region8: #{conv_block_3d.3} parent=0 // pred_region
    _
  $region9: #{conv_block_3d.3} parent=0 // pred_fallthru
    _
  // Predicated region
  $region10: #{conv_block_3d.3} parent=0 // pred_check
    _
  $region11: #{conv_block_3d.3} parent=0 // pred_check_branch
    %13 = sbr.rel (0) target = $region13
  $region12: #{conv_block_3d.3} parent=0 // pred_region
    _
  $region13: #{conv_block_3d.3} parent=0 // pred_fallthru
    _
  %v14 = vld [vmem:[%s0] sm:$0xf]
  %v15 = vld [vmem:[%s0 + $0x4] sm:$0xf]
  %v16 = vld [vmem:[%s0 + $0x8] sm:$0xf]
  %v17 = vld [vmem:[%s0 + $0xc] sm:$0xf]
  %v18 = vld [vmem:[%s0 + $0x10] sm:$0xf]
  %v19 = vld [vmem:[%s0 + $0x14] sm:$0xf]
  %v20 = vld [vmem:[%s0 + $0x18] sm:$0xf]
  %v21 = vld [vmem:[%s0 + $0x1c] sm:$0xf]
  %v22 = vld [vmem:[%s0 + $0x20] sm:$0xf]
  %v23 = vld [vmem:[%s0 + $0x24] sm:$0xf]
  %v24 = vld [vmem:[%s0 + $0x28] sm:$0xf]
  %v25 = vld [vmem:[%s0 + $0x2c] sm:$0xf]
  %v26 = vld [vmem:[%s0 + $0x30] sm:$0xf]
  %v27 = vld [vmem:[%s0 + $0x34] sm:$0xf]
  %v28 = vld [vmem:[%s0 + $0x38] sm:$0xf]
  %v29 = vld [vmem:[%s0 + $0x3c] sm:$0xf]
  %v30 = vld [vmem:[%s0 + $0x40] sm:$0xf]
  %v31 = vld [vmem:[%s0 + $0x44] sm:$0xf]
  %v32 = vld [vmem:[%s0 + $0x48] sm:$0xf]
  %v33 = vld [vmem:[%s0 + $0x4c] sm:$0xf]
  %v34 = vld [vmem:[%s0 + $0x50] sm:$0xf]
  %v35 = vld [vmem:[%s0 + $0x54] sm:$0xf]
  %v36 = vld [vmem:[%s0 + $0x58] sm:$0xf]
  %v37 = vld [vmem:[%s0 + $0x5c] sm:$0xf]
  %v38 = vld [vmem:[%s0 + $0x60] sm:$0xf]
  %v39 = vld [vmem:[%s0 + $0x64] sm:$0xf]
  %v40 = vld [vmem:[%s0 + $0x68] sm:$0xf]
  %v41 = vld [vmem:[%s0 + $0x6c] sm:$0xf]
  %v42 = vld [vmem:[%s0 + $0x70] sm:$0xf]
  %v43 = vld [vmem:[%s0 + $0x74] sm:$0xf]
  %v44 = vld [vmem:[%s0 + $0x78] sm:$0xf]
  %v45 = vld [vmem:[%s0 + $0x7c] sm:$0xf]
  %v46 = vld [vmem:[%s0 + $0x80] sm:$0xf]
  %v47 = vld [vmem:[%s0 + $0x84] sm:$0xf]
  %v48 = vld [vmem:[%s0 + $0x88] sm:$0xf]
  %v49 = vld [vmem:[%s0 + $0x8c] sm:$0xf]
  %v50 = vld [vmem:[%s0 + $0x90] sm:$0xf]
  %v51 = vld [vmem:[%s0 + $0x94] sm:$0xf]
  %v52 = vld [vmem:[%s0 + $0x98] sm:$0xf]
  %v53 = vld [vmem:[%s0 + $0x9c] sm:$0xf]
  %v54 = vld [vmem:[%s0 + $0xa0] sm:$0xf]
  %v55 = vld [vmem:[%s0 + $0xa4] sm:$0xf]
  %v56 = vld [vmem:[%s0 + $0xa8] sm:$0xf]
  %v57 = vld [vmem:[%s0 + $0xac] sm:$0xf]
  %v58 = vld [vmem:[%s0 + $0xb0] sm:$0xf]
  %v59 = vld [vmem:[%s0 + $0xb4] sm:$0xf]
  %v60 = vld [vmem:[%s0 + $0xb8] sm:$0xf]
  %v61 = vld [vmem:[%s0 + $0xbc] sm:$0xf]
  %v62 = vld [vmem:[%s0 + $0xc0] sm:$0xf]
  %v63 = vld [vmem:[%s0 + $0xc4] sm:$0xf]
  %v64 = vld [vmem:[%s0 + $0xc8] sm:$0xf]
  %v65 = vld [vmem:[%s0 + $0xcc] sm:$0xf]
  %v66 = vld [vmem:[%s0 + $0xd0] sm:$0xf]
  %v67 = vld [vmem:[%s0 + $0xd4] sm:$0xf]
  %v68 = vld [vmem:[%s0 + $0xd8] sm:$0xf]
  %v69 = vld [vmem:[%s0 + $0xdc] sm:$0xf]
  %v70 = vld [vmem:[%s0 + $0xe0] sm:$0xf]
  %v71 = vld [vmem:[%s0 + $0xe4] sm:$0xf]
  %v72 = vld [vmem:[%s0 + $0xe8] sm:$0xf]
  %v73 = vld [vmem:[%s0 + $0xec] sm:$0xf]
  %v74 = vld [vmem:[%s0 + $0xf0] sm:$0xf]
  %v75 = vld [vmem:[%s0 + $0xf4] sm:$0xf]
  %v76 = vld [vmem:[%s0 + $0xf8] sm:$0xf]
  %v77 = vld [vmem:[%s0 + $0xfc] sm:$0xf]
  %v78 = vld [vmem:[%s0 + $0x100] sm:$0xf]
  %v79 = vld [vmem:[%s0 + $0x104] sm:$0xf]
  %v80 = vld [vmem:[%s0 + $0x108] sm:$0xf]
  %v81 = vld [vmem:[%s0 + $0x10c] sm:$0xf]
  %v82 = vld [vmem:[%s0 + $0x110] sm:$0xf]
  %v83 = vld [vmem:[%s0 + $0x114] sm:$0xf]
  %v84 = vld [vmem:[%s0 + $0x118] sm:$0xf]
  %v85 = vld [vmem:[%s0 + $0x11c] sm:$0xf]
  %v86 = vld [vmem:[%s0 + $0x120] sm:$0xf]
  %v87 = vld [vmem:[%s0 + $0x124] sm:$0xf]
  %v88 = vld [vmem:[%s0 + $0x128] sm:$0xf]
  %v89 = vld [vmem:[%s0 + $0x12c] sm:$0xf]
  %v90 = vld [vmem:[%s0 + $0x130] sm:$0xf]
  %v91 = vld [vmem:[%s0 + $0x134] sm:$0xf]
  %v92 = vld [vmem:[%s0 + $0x138] sm:$0xf]
  %v93 = vld [vmem:[%s0 + $0x13c] sm:$0xf]
  %v94 = vld [vmem:[%s0 + $0x140] sm:$0xf]
  %v95 = vld [vmem:[%s0 + $0x144] sm:$0xf]
  %v96 = vld [vmem:[%s0 + $0x148] sm:$0xf]
  %v97 = vld [vmem:[%s0 + $0x14c] sm:$0xf]
  %v98 = vld [vmem:[%s0 + $0x150] sm:$0xf]
  %v99 = vld [vmem:[%s0 + $0x154] sm:$0xf]
  %v100 = vld [vmem:[%s0 + $0x158] sm:$0xf]
  %v101 = vld [vmem:[%s0 + $0x15c] sm:$0xf]
  %v102 = vld [vmem:[%s0 + $0x160] sm:$0xf]
  %v103 = vld [vmem:[%s0 + $0x164] sm:$0xf]
  %v104 = vld [vmem:[%s0 + $0x168] sm:$0xf]
  %v105 = vld [vmem:[%s0 + $0x16c] sm:$0xf]
  %v106 = vld [vmem:[%s0 + $0x170] sm:$0xf]
  %v107 = vld [vmem:[%s0 + $0x174] sm:$0xf]
  %v108 = vld [vmem:[%s0 + $0x178] sm:$0xf]
  %v109 = vld [vmem:[%s0 + $0x17c] sm:$0xf]
  %v110 = vld [vmem:[%s0 + $0x180] sm:$0xf]
  %v111 = vld [vmem:[%s0 + $0x184] sm:$0xf]
  %v112 = vld [vmem:[%s0 + $0x188] sm:$0xf]
  %v113 = vld [vmem:[%s0 + $0x18c] sm:$0xf]
  %v114 = vld [vmem:[%s0 + $0x190] sm:$0xf]
  %v115 = vld [vmem:[%s0 + $0x194] sm:$0xf]
  %v116 = vld [vmem:[%s0 + $0x198] sm:$0xf]
  %v117 = vld [vmem:[%s0 + $0x19c] sm:$0xf]
  %v118 = vld [vmem:[%s0 + $0x1a0] sm:$0xf]
  %v119 = vld [vmem:[%s0 + $0x1a4] sm:$0xf]
  %v120 = vld [vmem:[%s0 + $0x1a8] sm:$0xf]
  %v121 = vld [vmem:[%s0 + $0x1ac] sm:$0xf]
  %v122 = vld [vmem:[%s0 + $0x1b0] sm:$0xf]
  %v123 = vld [vmem:[%s0 + $0x1b4] sm:$0xf]
  %v124 = vld [vmem:[%s0 + $0x1b8] sm:$0xf]
  %v125 = vld [vmem:[%s0 + $0x1bc] sm:$0xf]
  %v126 = vld [vmem:[%s0 + $0x1c0] sm:$0xf]
  %v127 = vld [vmem:[%s0 + $0x1c4] sm:$0xf]
  %v128 = vld [vmem:[%s0 + $0x1c8] sm:$0xf]
  %v129 = vld [vmem:[%s0 + $0x1cc] sm:$0xf]
  %v130 = vld [vmem:[%s0 + $0x1d0] sm:$0xf]
  %v131 = vld [vmem:[%s0 + $0x1d4] sm:$0xf]
  %v132 = vld [vmem:[%s0 + $0x1d8] sm:$0xf]
  %v133 = vld [vmem:[%s0 + $0x1dc] sm:$0xf]
  %v134 = vld [vmem:[%s0 + $0x1e0] sm:$0xf]
  %v135 = vld [vmem:[%s0 + $0x1e4] sm:$0xf]
  %v136 = vld [vmem:[%s0 + $0x1e8] sm:$0xf]
  %v137 = vld [vmem:[%s0 + $0x1ec] sm:$0xf]
  %v138 = vld [vmem:[%s0 + $0x1f0] sm:$0xf]
  %v139 = vld [vmem:[%s0 + $0x1f4] sm:$0xf]
  %v140 = vld [vmem:[%s0 + $0x1f8] sm:$0xf]
  %v141 = vld [vmem:[%s0 + $0x1fc] sm:$0xf]
  %v142 = vunpack.c.l.bf16 %v14
  %v143 = vunpack.c.l.bf16 %v15
  %v144 = vunpack.c.l.bf16 %v16
  %v145 = vunpack.c.l.bf16 %v17
  %v146 = vunpack.c.l.bf16 %v18
  %v147 = vunpack.c.l.bf16 %v19
  %v148 = vunpack.c.l.bf16 %v20
  %v149 = vunpack.c.l.bf16 %v21
  %v150 = vunpack.c.l.bf16 %v22
  %v151 = vunpack.c.l.bf16 %v23
  %v152 = vunpack.c.l.bf16 %v24
  %v153 = vunpack.c.l.bf16 %v25
  %v154 = vunpack.c.l.bf16 %v26
  %v155 = vunpack.c.l.bf16 %v27
  %v156 = vunpack.c.l.bf16 %v28
  %v157 = vunpack.c.l.bf16 %v29
  %v158 = vunpack.c.l.bf16 %v30
  %v159 = vunpack.c.l.bf16 %v31
  %v160 = vunpack.c.l.bf16 %v32
  %v161 = vunpack.c.l.bf16 %v33
  %v162 = vunpack.c.l.bf16 %v34
  %v163 = vunpack.c.l.bf16 %v35
  %v164 = vunpack.c.l.bf16 %v36
  %v165 = vunpack.c.l.bf16 %v37
  %v166 = vunpack.c.l.bf16 %v38
  %v167 = vunpack.c.l.bf16 %v39
  %v168 = vunpack.c.l.bf16 %v40
  %v169 = vunpack.c.l.bf16 %v41
  %v170 = vunpack.c.l.bf16 %v42
  %v171 = vunpack.c.l.bf16 %v43
  %v172 = vunpack.c.l.bf16 %v44
  %v173 = vunpack.c.l.bf16 %v45
  %v174 = vunpack.c.l.bf16 %v46
  %v175 = vunpack.c.l.bf16 %v47
  %v176 = vunpack.c.l.bf16 %v48
  %v177 = vunpack.c.l.bf16 %v49
  %v178 = vunpack.c.l.bf16 %v50
  %v179 = vunpack.c.l.bf16 %v51
  %v180 = vunpack.c.l.bf16 %v52
  %v181 = vunpack.c.l.bf16 %v53
  %v182 = vunpack.c.l.bf16 %v54
  %v183 = vunpack.c.l.bf16 %v55
  %v184 = vunpack.c.l.bf16 %v56
  %v185 = vunpack.c.l.bf16 %v57
  %v186 = vunpack.c.l.bf16 %v58
  %v187 = vunpack.c.l.bf16 %v59
  %v188 = vunpack.c.l.bf16 %v60
  %v189 = vunpack.c.l.bf16 %v61
  %v190 = vunpack.c.l.bf16 %v62
  %v191 = vunpack.c.l.bf16 %v63
  %v192 = vunpack.c.l.bf16 %v64
  %v193 = vunpack.c.l.bf16 %v65
  %v194 = vunpack.c.l.bf16 %v66
  %v195 = vunpack.c.l.bf16 %v67
  %v196 = vunpack.c.l.bf16 %v68
  %v197 = vunpack.c.l.bf16 %v69
  %v198 = vunpack.c.l.bf16 %v70
  %v199 = vunpack.c.l.bf16 %v71
  %v200 = vunpack.c.l.bf16 %v72
  %v201 = vunpack.c.l.bf16 %v73
  %v202 = vunpack.c.l.bf16 %v74
  %v203 = vunpack.c.l.bf16 %v75
  %v204 = vunpack.c.l.bf16 %v76
  %v205 = vunpack.c.l.bf16 %v77
  %v206 = vunpack.c.l.bf16 %v78
  %v207 = vunpack.c.l.bf16 %v79
  %v208 = vunpack.c.l.bf16 %v80
  %v209 = vunpack.c.l.bf16 %v81
  %v210 = vunpack.c.l.bf16 %v82
  %v211 = vunpack.c.l.bf16 %v83
  %v212 = vunpack.c.l.bf16 %v84
  %v213 = vunpack.c.l.bf16 %v85
  %v214 = vunpack.c.l.bf16 %v86
  %v215 = vunpack.c.l.bf16 %v87
  %v216 = vunpack.c.l.bf16 %v88
  %v217 = vunpack.c.l.bf16 %v89
  %v218 = vunpack.c.l.bf16 %v90
  %v219 = vunpack.c.l.bf16 %v91
  %v220 = vunpack.c.l.bf16 %v92
  %v221 = vunpack.c.l.bf16 %v93
  %v222 = vunpack.c.l.bf16 %v94
  %v223 = vunpack.c.l.bf16 %v95
  %v224 = vunpack.c.l.bf16 %v96
  %v225 = vunpack.c.l.bf16 %v97
  %v226 = vunpack.c.l.bf16 %v98
  %v227 = vunpack.c.l.bf16 %v99
  %v228 = vunpack.c.l.bf16 %v100
  %v229 = vunpack.c.l.bf16 %v101
  %v230 = vunpack.c.l.bf16 %v102
  %v231 = vunpack.c.l.bf16 %v103
  %v232 = vunpack.c.l.bf16 %v104
  %v233 = vunpack.c.l.bf16 %v105
  %v234 = vunpack.c.l.bf16 %v106
  %v235 = vunpack.c.l.bf16 %v107
  %v236 = vunpack.c.l.bf16 %v108
  %v237 = vunpack.c.l.bf16 %v109
  %v238 = vunpack.c.l.bf16 %v110
  %v239 = vunpack.c.l.bf16 %v111
  %v240 = vunpack.c.l.bf16 %v112
  %v241 = vunpack.c.l.bf16 %v113
  %v242 = vunpack.c.l.bf16 %v114
  %v243 = vunpack.c.l.bf16 %v115
  %v244 = vunpack.c.l.bf16 %v116
  %v245 = vunpack.c.l.bf16 %v117
  %v246 = vunpack.c.l.bf16 %v118
  %v247 = vunpack.c.l.bf16 %v119
  %v248 = vunpack.c.l.bf16 %v120
  %v249 = vunpack.c.l.bf16 %v121
  %v250 = vunpack.c.l.bf16 %v122
  %v251 = vunpack.c.l.bf16 %v123
  %v252 = vunpack.c.l.bf16 %v124
  %v253 = vunpack.c.l.bf16 %v125
  %v254 = vunpack.c.l.bf16 %v126
  %v255 = vunpack.c.l.bf16 %v127
  %v256 = vunpack.c.l.bf16 %v128
  %v257 = vunpack.c.l.bf16 %v129
  %v258 = vunpack.c.l.bf16 %v130
  %v259 = vunpack.c.l.bf16 %v131
  %v260 = vunpack.c.l.bf16 %v132
  %v261 = vunpack.c.l.bf16 %v133
  %v262 = vunpack.c.l.bf16 %v134
  %v263 = vunpack.c.l.bf16 %v135
  %v264 = vunpack.c.l.bf16 %v136
  %v265 = vunpack.c.l.bf16 %v137
  %v266 = vunpack.c.l.bf16 %v138
  %v267 = vunpack.c.l.bf16 %v139
  %v268 = vunpack.c.l.bf16 %v140
  %v269 = vunpack.c.l.bf16 %v141
  %v270 = vld [vmem:[%s1] sm:$0x1]
  %v272 = vlaneseq
  %v273 = vshrl.u32 %v272, 7
  %v274 = vsub.s32 0, %v273
  %v275 = vrot.slane %v270, %v274
  %v277 = vmul.f32 %v142, %v275
  %v278 = vmul.f32 %v143, %v275
  %v279 = vmul.f32 %v144, %v275
  %v280 = vmul.f32 %v145, %v275
  %v281 = vmul.f32 %v146, %v275
  %v282 = vmul.f32 %v147, %v275
  %v283 = vmul.f32 %v148, %v275
  %v284 = vmul.f32 %v149, %v275
  %v285 = vmul.f32 %v150, %v275
  %v286 = vmul.f32 %v151, %v275
  %v287 = vmul.f32 %v152, %v275
  %v288 = vmul.f32 %v153, %v275
  %v289 = vmul.f32 %v154, %v275
  %v290 = vmul.f32 %v155, %v275
  %v291 = vmul.f32 %v156, %v275
  %v292 = vmul.f32 %v157, %v275
  %v293 = vmul.f32 %v158, %v275
  %v294 = vmul.f32 %v159, %v275
  %v295 = vmul.f32 %v160, %v275
  %v296 = vmul.f32 %v161, %v275
  %v297 = vmul.f32 %v162, %v275
  %v298 = vmul.f32 %v163, %v275
  %v299 = vmul.f32 %v164, %v275
  %v300 = vmul.f32 %v165, %v275
  %v301 = vmul.f32 %v166, %v275
  %v302 = vmul.f32 %v167, %v275
  %v303 = vmul.f32 %v168, %v275
  %v304 = vmul.f32 %v169, %v275
  %v305 = vmul.f32 %v170, %v275
  %v306 = vmul.f32 %v171, %v275
  %v307 = vmul.f32 %v172, %v275
  %v308 = vmul.f32 %v173, %v275
  %v309 = vmul.f32 %v174, %v275
  %v310 = vmul.f32 %v175, %v275
  %v311 = vmul.f32 %v176, %v275
  %v312 = vmul.f32 %v177, %v275
  %v313 = vmul.f32 %v178, %v275
  %v314 = vmul.f32 %v179, %v275
  %v315 = vmul.f32 %v180, %v275
  %v316 = vmul.f32 %v181, %v275
  %v317 = vmul.f32 %v182, %v275
  %v318 = vmul.f32 %v183, %v275
  %v319 = vmul.f32 %v184, %v275
  %v320 = vmul.f32 %v185, %v275
  %v321 = vmul.f32 %v186, %v275
  %v322 = vmul.f32 %v187, %v275
  %v323 = vmul.f32 %v188, %v275
  %v324 = vmul.f32 %v189, %v275
  %v325 = vmul.f32 %v190, %v275
  %v326 = vmul.f32 %v191, %v275
  %v327 = vmul.f32 %v192, %v275
  %v328 = vmul.f32 %v193, %v275
  %v329 = vmul.f32 %v194, %v275
  %v330 = vmul.f32 %v195, %v275
  %v331 = vmul.f32 %v196, %v275
  %v332 = vmul.f32 %v197, %v275
  %v333 = vmul.f32 %v198, %v275
  %v334 = vmul.f32 %v199, %v275
  %v335 = vmul.f32 %v200, %v275
  %v336 = vmul.f32 %v201, %v275
  %v337 = vmul.f32 %v202, %v275
  %v338 = vmul.f32 %v203, %v275
  %v339 = vmul.f32 %v204, %v275
  %v340 = vmul.f32 %v205, %v275
  %v341 = vmul.f32 %v206, %v275
  %v342 = vmul.f32 %v207, %v275
  %v343 = vmul.f32 %v208, %v275
  %v344 = vmul.f32 %v209, %v275
  %v345 = vmul.f32 %v210, %v275
  %v346 = vmul.f32 %v211, %v275
  %v347 = vmul.f32 %v212, %v275
  %v348 = vmul.f32 %v213, %v275
  %v349 = vmul.f32 %v214, %v275
  %v350 = vmul.f32 %v215, %v275
  %v351 = vmul.f32 %v216, %v275
  %v352 = vmul.f32 %v217, %v275
  %v353 = vmul.f32 %v218, %v275
  %v354 = vmul.f32 %v219, %v275
  %v355 = vmul.f32 %v220, %v275
  %v356 = vmul.f32 %v221, %v275
  %v357 = vmul.f32 %v222, %v275
  %v358 = vmul.f32 %v223, %v275
  %v359 = vmul.f32 %v224, %v275
  %v360 = vmul.f32 %v225, %v275
  %v361 = vmul.f32 %v226, %v275
  %v362 = vmul.f32 %v227, %v275
  %v363 = vmul.f32 %v228, %v275
  %v364 = vmul.f32 %v229, %v275
  %v365 = vmul.f32 %v230, %v275
  %v366 = vmul.f32 %v231, %v275
  %v367 = vmul.f32 %v232, %v275
  %v368 = vmul.f32 %v233, %v275
  %v369 = vmul.f32 %v234, %v275
  %v370 = vmul.f32 %v235, %v275
  %v371 = vmul.f32 %v236, %v275
  %v372 = vmul.f32 %v237, %v275
  %v373 = vmul.f32 %v238, %v275
  %v374 = vmul.f32 %v239, %v275
  %v375 = vmul.f32 %v240, %v275
  %v376 = vmul.f32 %v241, %v275
  %v377 = vmul.f32 %v242, %v275
  %v378 = vmul.f32 %v243, %v275
  %v379 = vmul.f32 %v244, %v275
  %v380 = vmul.f32 %v245, %v275
  %v381 = vmul.f32 %v246, %v275
  %v382 = vmul.f32 %v247, %v275
  %v383 = vmul.f32 %v248, %v275
  %v384 = vmul.f32 %v249, %v275
  %v385 = vmul.f32 %v250, %v275
  %v386 = vmul.f32 %v251, %v275
  %v387 = vmul.f32 %v252, %v275
  %v388 = vmul.f32 %v253, %v275
  %v389 = vmul.f32 %v254, %v275
  %v390 = vmul.f32 %v255, %v275
  %v391 = vmul.f32 %v256, %v275
  %v392 = vmul.f32 %v257, %v275
  %v393 = vmul.f32 %v258, %v275
  %v394 = vmul.f32 %v259, %v275
  %v395 = vmul.f32 %v260, %v275
  %v396 = vmul.f32 %v261, %v275
  %v397 = vmul.f32 %v262, %v275
  %v398 = vmul.f32 %v263, %v275
  %v399 = vmul.f32 %v264, %v275
  %v400 = vmul.f32 %v265, %v275
  %v401 = vmul.f32 %v266, %v275
  %v402 = vmul.f32 %v267, %v275
  %v403 = vmul.f32 %v268, %v275
  %v404 = vmul.f32 %v269, %v275
  %v405 = vld [vmem:[%s2] sm:$0x1]
  %v407 = vlaneseq
  %v408 = vshrl.u32 %v407, 7
  %v409 = vsub.s32 0, %v408
  %v410 = vrot.slane %v405, %v409
  %v412 = vadd.f32 %v277, %v410
  %v413 = vadd.f32 %v278, %v410
  %v414 = vadd.f32 %v279, %v410
  %v415 = vadd.f32 %v280, %v410
  %v416 = vadd.f32 %v281, %v410
  %v417 = vadd.f32 %v282, %v410
  %v418 = vadd.f32 %v283, %v410
  %v419 = vadd.f32 %v284, %v410
  %v420 = vadd.f32 %v285, %v410
  %v421 = vadd.f32 %v286, %v410
  %v422 = vadd.f32 %v287, %v410
  %v423 = vadd.f32 %v288, %v410
  %v424 = vadd.f32 %v289, %v410
  %v425 = vadd.f32 %v290, %v410
  %v426 = vadd.f32 %v291, %v410
  %v427 = vadd.f32 %v292, %v410
  %v428 = vadd.f32 %v293, %v410
  %v429 = vadd.f32 %v294, %v410
  %v430 = vadd.f32 %v295, %v410
  %v431 = vadd.f32 %v296, %v410
  %v432 = vadd.f32 %v297, %v410
  %v433 = vadd.f32 %v298, %v410
  %v434 = vadd.f32 %v299, %v410
  %v435 = vadd.f32 %v300, %v410
  %v436 = vadd.f32 %v301, %v410
  %v437 = vadd.f32 %v302, %v410
  %v438 = vadd.f32 %v303, %v410
  %v439 = vadd.f32 %v304, %v410
  %v440 = vadd.f32 %v305, %v410
  %v441 = vadd.f32 %v306, %v410
  %v442 = vadd.f32 %v307, %v410
  %v443 = vadd.f32 %v308, %v410
  %v444 = vadd.f32 %v309, %v410
  %v445 = vadd.f32 %v310, %v410
  %v446 = vadd.f32 %v311, %v410
  %v447 = vadd.f32 %v312, %v410
  %v448 = vadd.f32 %v313, %v410
  %v449 = vadd.f32 %v314, %v410
  %v450 = vadd.f32 %v315, %v410
  %v451 = vadd.f32 %v316, %v410
  %v452 = vadd.f32 %v317, %v410
  %v453 = vadd.f32 %v318, %v410
  %v454 = vadd.f32 %v319, %v410
  %v455 = vadd.f32 %v320, %v410
  %v456 = vadd.f32 %v321, %v410
  %v457 = vadd.f32 %v322, %v410
  %v458 = vadd.f32 %v323, %v410
  %v459 = vadd.f32 %v324, %v410
  %v460 = vadd.f32 %v325, %v410
  %v461 = vadd.f32 %v326, %v410
  %v462 = vadd.f32 %v327, %v410
  %v463 = vadd.f32 %v328, %v410
  %v464 = vadd.f32 %v329, %v410
  %v465 = vadd.f32 %v330, %v410
  %v466 = vadd.f32 %v331, %v410
  %v467 = vadd.f32 %v332, %v410
  %v468 = vadd.f32 %v333, %v410
  %v469 = vadd.f32 %v334, %v410
  %v470 = vadd.f32 %v335, %v410
  %v471 = vadd.f32 %v336, %v410
  %v472 = vadd.f32 %v337, %v410
  %v473 = vadd.f32 %v338, %v410
  %v474 = vadd.f32 %v339, %v410
  %v475 = vadd.f32 %v340, %v410
  %v476 = vadd.f32 %v341, %v410
  %v477 = vadd.f32 %v342, %v410
  %v478 = vadd.f32 %v343, %v410
  %v479 = vadd.f32 %v344, %v410
  %v480 = vadd.f32 %v345, %v410
  %v481 = vadd.f32 %v346, %v410
  %v482 = vadd.f32 %v347, %v410
  %v483 = vadd.f32 %v348, %v410
  %v484 = vadd.f32 %v349, %v410
  %v485 = vadd.f32 %v350, %v410
  %v486 = vadd.f32 %v351, %v410
  %v487 = vadd.f32 %v352, %v410
  %v488 = vadd.f32 %v353, %v410
  %v489 = vadd.f32 %v354, %v410
  %v490 = vadd.f32 %v355, %v410
  %v491 = vadd.f32 %v356, %v410
  %v492 = vadd.f32 %v357, %v410
  %v493 = vadd.f32 %v358, %v410
  %v494 = vadd.f32 %v359, %v410
  %v495 = vadd.f32 %v360, %v410
  %v496 = vadd.f32 %v361, %v410
  %v497 = vadd.f32 %v362, %v410
  %v498 = vadd.f32 %v363, %v410
  %v499 = vadd.f32 %v364, %v410
  %v500 = vadd.f32 %v365, %v410
  %v501 = vadd.f32 %v366, %v410
  %v502 = vadd.f32 %v367, %v410
  %v503 = vadd.f32 %v368, %v410
  %v504 = vadd.f32 %v369, %v410
  %v505 = vadd.f32 %v370, %v410
  %v506 = vadd.f32 %v371, %v410
  %v507 = vadd.f32 %v372, %v410
  %v508 = vadd.f32 %v373, %v410
  %v509 = vadd.f32 %v374, %v410
  %v510 = vadd.f32 %v375, %v410
  %v511 = vadd.f32 %v376, %v410
  %v512 = vadd.f32 %v377, %v410
  %v513 = vadd.f32 %v378, %v410
  %v514 = vadd.f32 %v379, %v410
  %v515 = vadd.f32 %v380, %v410
  %v516 = vadd.f32 %v381, %v410
  %v517 = vadd.f32 %v382, %v410
  %v518 = vadd.f32 %v383, %v410
  %v519 = vadd.f32 %v384, %v410
  %v520 = vadd.f32 %v385, %v410
  %v521 = vadd.f32 %v386, %v410
  %v522 = vadd.f32 %v387, %v410
  %v523 = vadd.f32 %v388, %v410
  %v524 = vadd.f32 %v389, %v410
  %v525 = vadd.f32 %v390, %v410
  %v526 = vadd.f32 %v391, %v410
  %v527 = vadd.f32 %v392, %v410
  %v528 = vadd.f32 %v393, %v410
  %v529 = vadd.f32 %v394, %v410
  %v530 = vadd.f32 %v395, %v410
  %v531 = vadd.f32 %v396, %v410
  %v532 = vadd.f32 %v397, %v410
  %v533 = vadd.f32 %v398, %v410
  %v534 = vadd.f32 %v399, %v410
  %v535 = vadd.f32 %v400, %v410
  %v536 = vadd.f32 %v401, %v410
  %v537 = vadd.f32 %v402, %v410
  %v538 = vadd.f32 %v403, %v410
  %v539 = vadd.f32 %v404, %v410
  %v540 = vmax.f32 %v412, 0.0
  %v541 = vmax.f32 %v413, 0.0
  %v542 = vmax.f32 %v414, 0.0
  %v543 = vmax.f32 %v415, 0.0
  %v544 = vmax.f32 %v416, 0.0
  %v545 = vmax.f32 %v417, 0.0
  %v546 = vmax.f32 %v418, 0.0
  %v547 = vmax.f32 %v419, 0.0
  %v548 = vmax.f32 %v420, 0.0
  %v549 = vmax.f32 %v421, 0.0
  %v550 = vmax.f32 %v422, 0.0
  %v551 = vmax.f32 %v423, 0.0
  %v552 = vmax.f32 %v424, 0.0
  %v553 = vmax.f32 %v425, 0.0
  %v554 = vmax.f32 %v426, 0.0
  %v555 = vmax.f32 %v427, 0.0
  %v556 = vmax.f32 %v428, 0.0
  %v557 = vmax.f32 %v429, 0.0
  %v558 = vmax.f32 %v430, 0.0
  %v559 = vmax.f32 %v431, 0.0
  %v560 = vmax.f32 %v432, 0.0
  %v561 = vmax.f32 %v433, 0.0
  %v562 = vmax.f32 %v434, 0.0
  %v563 = vmax.f32 %v435, 0.0
  %v564 = vmax.f32 %v436, 0.0
  %v565 = vmax.f32 %v437, 0.0
  %v566 = vmax.f32 %v438, 0.0
  %v567 = vmax.f32 %v439, 0.0
  %v568 = vmax.f32 %v440, 0.0
  %v569 = vmax.f32 %v441, 0.0
  %v570 = vmax.f32 %v442, 0.0
  %v571 = vmax.f32 %v443, 0.0
  %v572 = vmax.f32 %v444, 0.0
  %v573 = vmax.f32 %v445, 0.0
  %v574 = vmax.f32 %v446, 0.0
  %v575 = vmax.f32 %v447, 0.0
  %v576 = vmax.f32 %v448, 0.0
  %v577 = vmax.f32 %v449, 0.0
  %v578 = vmax.f32 %v450, 0.0
  %v579 = vmax.f32 %v451, 0.0
  %v580 = vmax.f32 %v452, 0.0
  %v581 = vmax.f32 %v453, 0.0
  %v582 = vmax.f32 %v454, 0.0
  %v583 = vmax.f32 %v455, 0.0
  %v584 = vmax.f32 %v456, 0.0
  %v585 = vmax.f32 %v457, 0.0
  %v586 = vmax.f32 %v458, 0.0
  %v587 = vmax.f32 %v459, 0.0
  %v588 = vmax.f32 %v460, 0.0
  %v589 = vmax.f32 %v461, 0.0
  %v590 = vmax.f32 %v462, 0.0
  %v591 = vmax.f32 %v463, 0.0
  %v592 = vmax.f32 %v464, 0.0
  %v593 = vmax.f32 %v465, 0.0
  %v594 = vmax.f32 %v466, 0.0
  %v595 = vmax.f32 %v467, 0.0
  %v596 = vmax.f32 %v468, 0.0
  %v597 = vmax.f32 %v469, 0.0
  %v598 = vmax.f32 %v470, 0.0
  %v599 = vmax.f32 %v471, 0.0
  %v600 = vmax.f32 %v472, 0.0
  %v601 = vmax.f32 %v473, 0.0
  %v602 = vmax.f32 %v474, 0.0
  %v603 = vmax.f32 %v475, 0.0
  %v604 = vmax.f32 %v476, 0.0
  %v605 = vmax.f32 %v477, 0.0
  %v606 = vmax.f32 %v478, 0.0
  %v607 = vmax.f32 %v479, 0.0
  %v608 = vmax.f32 %v480, 0.0
  %v609 = vmax.f32 %v481, 0.0
  %v610 = vmax.f32 %v482, 0.0
  %v611 = vmax.f32 %v483, 0.0
  %v612 = vmax.f32 %v484, 0.0
  %v613 = vmax.f32 %v485, 0.0
  %v614 = vmax.f32 %v486, 0.0
  %v615 = vmax.f32 %v487, 0.0
  %v616 = vmax.f32 %v488, 0.0
  %v617 = vmax.f32 %v489, 0.0
  %v618 = vmax.f32 %v490, 0.0
  %v619 = vmax.f32 %v491, 0.0
  %v620 = vmax.f32 %v492, 0.0
  %v621 = vmax.f32 %v493, 0.0
  %v622 = vmax.f32 %v494, 0.0
  %v623 = vmax.f32 %v495, 0.0
  %v624 = vmax.f32 %v496, 0.0
  %v625 = vmax.f32 %v497, 0.0
  %v626 = vmax.f32 %v498, 0.0
  %v627 = vmax.f32 %v499, 0.0
  %v628 = vmax.f32 %v500, 0.0
  %v629 = vmax.f32 %v501, 0.0
  %v630 = vmax.f32 %v502, 0.0
  %v631 = vmax.f32 %v503, 0.0
  %v632 = vmax.f32 %v504, 0.0
  %v633 = vmax.f32 %v505, 0.0
  %v634 = vmax.f32 %v506, 0.0
  %v635 = vmax.f32 %v507, 0.0
  %v636 = vmax.f32 %v508, 0.0
  %v637 = vmax.f32 %v509, 0.0
  %v638 = vmax.f32 %v510, 0.0
  %v639 = vmax.f32 %v511, 0.0
  %v640 = vmax.f32 %v512, 0.0
  %v641 = vmax.f32 %v513, 0.0
  %v642 = vmax.f32 %v514, 0.0
  %v643 = vmax.f32 %v515, 0.0
  %v644 = vmax.f32 %v516, 0.0
  %v645 = vmax.f32 %v517, 0.0
  %v646 = vmax.f32 %v518, 0.0
  %v647 = vmax.f32 %v519, 0.0
  %v648 = vmax.f32 %v520, 0.0
  %v649 = vmax.f32 %v521, 0.0
  %v650 = vmax.f32 %v522, 0.0
  %v651 = vmax.f32 %v523, 0.0
  %v652 = vmax.f32 %v524, 0.0
  %v653 = vmax.f32 %v525, 0.0
  %v654 = vmax.f32 %v526, 0.0
  %v655 = vmax.f32 %v527, 0.0
  %v656 = vmax.f32 %v528, 0.0
  %v657 = vmax.f32 %v529, 0.0
  %v658 = vmax.f32 %v530, 0.0
  %v659 = vmax.f32 %v531, 0.0
  %v660 = vmax.f32 %v532, 0.0
  %v661 = vmax.f32 %v533, 0.0
  %v662 = vmax.f32 %v534, 0.0
  %v663 = vmax.f32 %v535, 0.0
  %v664 = vmax.f32 %v536, 0.0
  %v665 = vmax.f32 %v537, 0.0
  %v666 = vmax.f32 %v538, 0.0
  %v667 = vmax.f32 %v539, 0.0
  %vm668 = vcmask 64512
  %669 = vst.msk [vmem:[%s3] sm:$0xff] %vm668, %v540
  %670 = vst.msk [vmem:[%s3 + $0x8] sm:$0xff] %vm668, %v541
  %671 = vst.msk [vmem:[%s3 + $0x10] sm:$0xff] %vm668, %v542
  %672 = vst.msk [vmem:[%s3 + $0x18] sm:$0xff] %vm668, %v543
  %673 = vst.msk [vmem:[%s3 + $0x20] sm:$0xff] %vm668, %v544
  %674 = vst.msk [vmem:[%s3 + $0x28] sm:$0xff] %vm668, %v545
  %675 = vst.msk [vmem:[%s3 + $0x30] sm:$0xff] %vm668, %v546
  %676 = vst.msk [vmem:[%s3 + $0x38] sm:$0xff] %vm668, %v547
  %677 = vst.msk [vmem:[%s3 + $0x40] sm:$0xff] %vm668, %v548
  %678 = vst.msk [vmem:[%s3 + $0x48] sm:$0xff] %vm668, %v549
  %679 = vst.msk [vmem:[%s3 + $0x50] sm:$0xff] %vm668, %v550
  %680 = vst.msk [vmem:[%s3 + $0x58] sm:$0xff] %vm668, %v551
  %681 = vst.msk [vmem:[%s3 + $0x60] sm:$0xff] %vm668, %v552
  %682 = vst.msk [vmem:[%s3 + $0x68] sm:$0xff] %vm668, %v553
  %683 = vst.msk [vmem:[%s3 + $0x70] sm:$0xff] %vm668, %v554
  %684 = vst.msk [vmem:[%s3 + $0x78] sm:$0xff] %vm668, %v555
  %685 = vst.msk [vmem:[%s3 + $0x80] sm:$0xff] %vm668, %v556
  %686 = vst.msk [vmem:[%s3 + $0x88] sm:$0xff] %vm668, %v557
  %687 = vst.msk [vmem:[%s3 + $0x90] sm:$0xff] %vm668, %v558
  %688 = vst.msk [vmem:[%s3 + $0x98] sm:$0xff] %vm668, %v559
  %689 = vst.msk [vmem:[%s3 + $0xa0] sm:$0xff] %vm668, %v560
  %690 = vst.msk [vmem:[%s3 + $0xa8] sm:$0xff] %vm668, %v561
  %691 = vst.msk [vmem:[%s3 + $0xb0] sm:$0xff] %vm668, %v562
  %692 = vst.msk [vmem:[%s3 + $0xb8] sm:$0xff] %vm668, %v563
  %693 = vst.msk [vmem:[%s3 + $0xc0] sm:$0xff] %vm668, %v564
  %694 = vst.msk [vmem:[%s3 + $0xc8] sm:$0xff] %vm668, %v565
  %695 = vst.msk [vmem:[%s3 + $0xd0] sm:$0xff] %vm668, %v566
  %696 = vst.msk [vmem:[%s3 + $0xd8] sm:$0xff] %vm668, %v567
  %697 = vst.msk [vmem:[%s3 + $0xe0] sm:$0xff] %vm668, %v568
  %698 = vst.msk [vmem:[%s3 + $0xe8] sm:$0xff] %vm668, %v569
  %699 = vst.msk [vmem:[%s3 + $0xf0] sm:$0xff] %vm668, %v570
  %700 = vst.msk [vmem:[%s3 + $0xf8] sm:$0xff] %vm668, %v571
  %701 = vst.msk [vmem:[%s3 + $0x100] sm:$0xff] %vm668, %v572
  %702 = vst.msk [vmem:[%s3 + $0x108] sm:$0xff] %vm668, %v573
  %703 = vst.msk [vmem:[%s3 + $0x110] sm:$0xff] %vm668, %v574
  %704 = vst.msk [vmem:[%s3 + $0x118] sm:$0xff] %vm668, %v575
  %705 = vst.msk [vmem:[%s3 + $0x120] sm:$0xff] %vm668, %v576
  %706 = vst.msk [vmem:[%s3 + $0x128] sm:$0xff] %vm668, %v577
  %707 = vst.msk [vmem:[%s3 + $0x130] sm:$0xff] %vm668, %v578
  %708 = vst.msk [vmem:[%s3 + $0x138] sm:$0xff] %vm668, %v579
  %709 = vst.msk [vmem:[%s3 + $0x140] sm:$0xff] %vm668, %v580
  %710 = vst.msk [vmem:[%s3 + $0x148] sm:$0xff] %vm668, %v581
  %711 = vst.msk [vmem:[%s3 + $0x150] sm:$0xff] %vm668, %v582
  %712 = vst.msk [vmem:[%s3 + $0x158] sm:$0xff] %vm668, %v583
  %713 = vst.msk [vmem:[%s3 + $0x160] sm:$0xff] %vm668, %v584
  %714 = vst.msk [vmem:[%s3 + $0x168] sm:$0xff] %vm668, %v585
  %715 = vst.msk [vmem:[%s3 + $0x170] sm:$0xff] %vm668, %v586
  %716 = vst.msk [vmem:[%s3 + $0x178] sm:$0xff] %vm668, %v587
  %717 = vst.msk [vmem:[%s3 + $0x180] sm:$0xff] %vm668, %v588
  %718 = vst.msk [vmem:[%s3 + $0x188] sm:$0xff] %vm668, %v589
  %719 = vst.msk [vmem:[%s3 + $0x190] sm:$0xff] %vm668, %v590
  %720 = vst.msk [vmem:[%s3 + $0x198] sm:$0xff] %vm668, %v591
  %721 = vst.msk [vmem:[%s3 + $0x1a0] sm:$0xff] %vm668, %v592
  %722 = vst.msk [vmem:[%s3 + $0x1a8] sm:$0xff] %vm668, %v593
  %723 = vst.msk [vmem:[%s3 + $0x1b0] sm:$0xff] %vm668, %v594
  %724 = vst.msk [vmem:[%s3 + $0x1b8] sm:$0xff] %vm668, %v595
  %725 = vst.msk [vmem:[%s3 + $0x1c0] sm:$0xff] %vm668, %v596
  %726 = vst.msk [vmem:[%s3 + $0x1c8] sm:$0xff] %vm668, %v597
  %727 = vst.msk [vmem:[%s3 + $0x1d0] sm:$0xff] %vm668, %v598
  %728 = vst.msk [vmem:[%s3 + $0x1d8] sm:$0xff] %vm668, %v599
  %729 = vst.msk [vmem:[%s3 + $0x1e0] sm:$0xff] %vm668, %v600
  %730 = vst.msk [vmem:[%s3 + $0x1e8] sm:$0xff] %vm668, %v601
  %731 = vst.msk [vmem:[%s3 + $0x1f0] sm:$0xff] %vm668, %v602
  %732 = vst.msk [vmem:[%s3 + $0x1f8] sm:$0xff] %vm668, %v603
  %733 = vst.msk [vmem:[%s3 + $0x200] sm:$0xff] %vm668, %v604
  %734 = vst.msk [vmem:[%s3 + $0x208] sm:$0xff] %vm668, %v605
  %735 = vst.msk [vmem:[%s3 + $0x210] sm:$0xff] %vm668, %v606
  %736 = vst.msk [vmem:[%s3 + $0x218] sm:$0xff] %vm668, %v607
  %737 = vst.msk [vmem:[%s3 + $0x220] sm:$0xff] %vm668, %v608
  %738 = vst.msk [vmem:[%s3 + $0x228] sm:$0xff] %vm668, %v609
  %739 = vst.msk [vmem:[%s3 + $0x230] sm:$0xff] %vm668, %v610
  %740 = vst.msk [vmem:[%s3 + $0x238] sm:$0xff] %vm668, %v611
  %741 = vst.msk [vmem:[%s3 + $0x240] sm:$0xff] %vm668, %v612
  %742 = vst.msk [vmem:[%s3 + $0x248] sm:$0xff] %vm668, %v613
  %743 = vst.msk [vmem:[%s3 + $0x250] sm:$0xff] %vm668, %v614
  %744 = vst.msk [vmem:[%s3 + $0x258] sm:$0xff] %vm668, %v615
  %745 = vst.msk [vmem:[%s3 + $0x260] sm:$0xff] %vm668, %v616
  %746 = vst.msk [vmem:[%s3 + $0x268] sm:$0xff] %vm668, %v617
  %747 = vst.msk [vmem:[%s3 + $0x270] sm:$0xff] %vm668, %v618
  %748 = vst.msk [vmem:[%s3 + $0x278] sm:$0xff] %vm668, %v619
  %749 = vst.msk [vmem:[%s3 + $0x280] sm:$0xff] %vm668, %v620
  %750 = vst.msk [vmem:[%s3 + $0x288] sm:$0xff] %vm668, %v621
  %751 = vst.msk [vmem:[%s3 + $0x290] sm:$0xff] %vm668, %v622
  %752 = vst.msk [vmem:[%s3 + $0x298] sm:$0xff] %vm668, %v623
  %753 = vst.msk [vmem:[%s3 + $0x2a0] sm:$0xff] %vm668, %v624
  %754 = vst.msk [vmem:[%s3 + $0x2a8] sm:$0xff] %vm668, %v625
  %755 = vst.msk [vmem:[%s3 + $0x2b0] sm:$0xff] %vm668, %v626
  %756 = vst.msk [vmem:[%s3 + $0x2b8] sm:$0xff] %vm668, %v627
  %757 = vst.msk [vmem:[%s3 + $0x2c0] sm:$0xff] %vm668, %v628
  %758 = vst.msk [vmem:[%s3 + $0x2c8] sm:$0xff] %vm668, %v629
  %759 = vst.msk [vmem:[%s3 + $0x2d0] sm:$0xff] %vm668, %v630
  %760 = vst.msk [vmem:[%s3 + $0x2d8] sm:$0xff] %vm668, %v631
  %761 = vst.msk [vmem:[%s3 + $0x2e0] sm:$0xff] %vm668, %v632
  %762 = vst.msk [vmem:[%s3 + $0x2e8] sm:$0xff] %vm668, %v633
  %763 = vst.msk [vmem:[%s3 + $0x2f0] sm:$0xff] %vm668, %v634
  %764 = vst.msk [vmem:[%s3 + $0x2f8] sm:$0xff] %vm668, %v635
  %765 = vst.msk [vmem:[%s3 + $0x300] sm:$0xff] %vm668, %v636
  %766 = vst.msk [vmem:[%s3 + $0x308] sm:$0xff] %vm668, %v637
  %767 = vst.msk [vmem:[%s3 + $0x310] sm:$0xff] %vm668, %v638
  %768 = vst.msk [vmem:[%s3 + $0x318] sm:$0xff] %vm668, %v639
  %769 = vst.msk [vmem:[%s3 + $0x320] sm:$0xff] %vm668, %v640
  %770 = vst.msk [vmem:[%s3 + $0x328] sm:$0xff] %vm668, %v641
  %771 = vst.msk [vmem:[%s3 + $0x330] sm:$0xff] %vm668, %v642
  %772 = vst.msk [vmem:[%s3 + $0x338] sm:$0xff] %vm668, %v643
  %773 = vst.msk [vmem:[%s3 + $0x340] sm:$0xff] %vm668, %v644
  %774 = vst.msk [vmem:[%s3 + $0x348] sm:$0xff] %vm668, %v645
  %775 = vst.msk [vmem:[%s3 + $0x350] sm:$0xff] %vm668, %v646
  %776 = vst.msk [vmem:[%s3 + $0x358] sm:$0xff] %vm668, %v647
  %777 = vst.msk [vmem:[%s3 + $0x360] sm:$0xff] %vm668, %v648
  %778 = vst.msk [vmem:[%s3 + $0x368] sm:$0xff] %vm668, %v649
  %779 = vst.msk [vmem:[%s3 + $0x370] sm:$0xff] %vm668, %v650
  %780 = vst.msk [vmem:[%s3 + $0x378] sm:$0xff] %vm668, %v651
  %781 = vst.msk [vmem:[%s3 + $0x380] sm:$0xff] %vm668, %v652
  %782 = vst.msk [vmem:[%s3 + $0x388] sm:$0xff] %vm668, %v653
  %783 = vst.msk [vmem:[%s3 + $0x390] sm:$0xff] %vm668, %v654
  %784 = vst.msk [vmem:[%s3 + $0x398] sm:$0xff] %vm668, %v655
  %785 = vst.msk [vmem:[%s3 + $0x3a0] sm:$0xff] %vm668, %v656
  %786 = vst.msk [vmem:[%s3 + $0x3a8] sm:$0xff] %vm668, %v657
  %787 = vst.msk [vmem:[%s3 + $0x3b0] sm:$0xff] %vm668, %v658
  %788 = vst.msk [vmem:[%s3 + $0x3b8] sm:$0xff] %vm668, %v659
  %789 = vst.msk [vmem:[%s3 + $0x3c0] sm:$0xff] %vm668, %v660
  %790 = vst.msk [vmem:[%s3 + $0x3c8] sm:$0xff] %vm668, %v661
  %791 = vst.msk [vmem:[%s3 + $0x3d0] sm:$0xff] %vm668, %v662
  %792 = vst.msk [vmem:[%s3 + $0x3d8] sm:$0xff] %vm668, %v663
  %793 = vst.msk [vmem:[%s3 + $0x3e0] sm:$0xff] %vm668, %v664
  %794 = vst.msk [vmem:[%s3 + $0x3e8] sm:$0xff] %vm668, %v665
  %795 = vst.msk [vmem:[%s3 + $0x3f0] sm:$0xff] %vm668, %v666
  %796 = vst.msk [vmem:[%s3 + $0x3f8] sm:$0xff] %vm668, %v667
  // Predicated region
  $region14: #{conv_block_3d.3} parent=0 // pred_check
    _
  $region15: #{conv_block_3d.3} parent=0 // pred_check_branch
    %798 = sbr.rel (0) target = $region17
  $region16: #{conv_block_3d.3} parent=0 // pred_region
    _
  $region17: #{conv_block_3d.3} parent=0 // pred_fallthru
    _
  // Predicated region
  $region18: #{conv_block_3d.3} parent=0 // pred_check
    _
  $region19: #{conv_block_3d.3} parent=0 // pred_check_branch
    %800 = sbr.rel (0) target = $region21
  $region20: #{conv_block_3d.3} parent=0 // pred_region
    _
  $region21: #{conv_block_3d.3} parent=0 // pred_fallthru
    _

// kernel: conv_block_3d.2
$region0: #{conv_block_3d.2}
  #allocation0 [shape = 'u32[]', space=smem, size = 0x4, offset = 0x4, fixed_abs, tag = 'smem constant byte address 0x4 - core index']
  #allocation1 [shape = 'u32[144,128]{1,0:T(1,128)}', space=vmem, size = 0x12000, scoped, tag = 'internal scratch']
  %s0 = inlined_call_operand.vmem [shape: bf16[1024,128], index: 0, kind: input, shape index: {}]
  %s1 = inlined_call_operand.vmem [shape: bf16[128,128], index: 1, kind: input, shape index: {}]
  %s2 = inlined_call_operand.vmem [shape: bf16[1024,8], index: 2, kind: output, shape index: {0}]
  %s3 = inlined_call_operand.vmem [shape: f32[1,2,8], index: 3, kind: output, shape index: {1}]
  %4 = xla_tuple %s2, %s3
  %s5 = sld [smem:[#allocation0]]
  $region26: #{conv_block_3d.2} parent=0
    _
  %s7 = ssub.s32 1, %s5
  %s8 = scalar_select 0, %s7, %s5
  // Predicated region
  $region2: #{conv_block_3d.2} parent=0 // pred_check
    _
  $region3: #{conv_block_3d.2} parent=0 // pred_check_branch
    %10 = sbr.rel (0) target = $region5
  $region4: #{conv_block_3d.2} parent=0 // pred_region
    _
  $region5: #{conv_block_3d.2} parent=0 // pred_fallthru
    _
  // Predicated region
  $region6: #{conv_block_3d.2} parent=0 // pred_check
    _
  $region7: #{conv_block_3d.2} parent=0 // pred_check_branch
    %12 = sbr.rel (0) target = $region9
  $region8: #{conv_block_3d.2} parent=0 // pred_region
    _
  $region9: #{conv_block_3d.2} parent=0 // pred_fallthru
    _
  %v14 = vld [vmem:[%s0] sm:$0xf]
  %v15 = vld [vmem:[%s0 + $0x4] sm:$0xf]
  %v16 = vld [vmem:[%s0 + $0x8] sm:$0xf]
  %v17 = vld [vmem:[%s0 + $0xc] sm:$0xf]
  %v18 = vld [vmem:[%s0 + $0x10] sm:$0xf]
  %v19 = vld [vmem:[%s0 + $0x14] sm:$0xf]
  %v20 = vld [vmem:[%s0 + $0x18] sm:$0xf]
  %v21 = vld [vmem:[%s0 + $0x1c] sm:$0xf]
  %v22 = vld [vmem:[%s0 + $0x20] sm:$0xf]
  %v23 = vld [vmem:[%s0 + $0x24] sm:$0xf]
  %v24 = vld [vmem:[%s0 + $0x28] sm:$0xf]
  %v25 = vld [vmem:[%s0 + $0x2c] sm:$0xf]
  %v26 = vld [vmem:[%s0 + $0x30] sm:$0xf]
  %v27 = vld [vmem:[%s0 + $0x34] sm:$0xf]
  %v28 = vld [vmem:[%s0 + $0x38] sm:$0xf]
  %v29 = vld [vmem:[%s0 + $0x3c] sm:$0xf]
  %v30 = vld [vmem:[%s0 + $0x40] sm:$0xf]
  %v31 = vld [vmem:[%s0 + $0x44] sm:$0xf]
  %v32 = vld [vmem:[%s0 + $0x48] sm:$0xf]
  %v33 = vld [vmem:[%s0 + $0x4c] sm:$0xf]
  %v34 = vld [vmem:[%s0 + $0x50] sm:$0xf]
  %v35 = vld [vmem:[%s0 + $0x54] sm:$0xf]
  %v36 = vld [vmem:[%s0 + $0x58] sm:$0xf]
  %v37 = vld [vmem:[%s0 + $0x5c] sm:$0xf]
  %v38 = vld [vmem:[%s0 + $0x60] sm:$0xf]
  %v39 = vld [vmem:[%s0 + $0x64] sm:$0xf]
  %v40 = vld [vmem:[%s0 + $0x68] sm:$0xf]
  %v41 = vld [vmem:[%s0 + $0x6c] sm:$0xf]
  %v42 = vld [vmem:[%s0 + $0x70] sm:$0xf]
  %v43 = vld [vmem:[%s0 + $0x74] sm:$0xf]
  %v44 = vld [vmem:[%s0 + $0x78] sm:$0xf]
  %v45 = vld [vmem:[%s0 + $0x7c] sm:$0xf]
  %v46 = vld [vmem:[%s0 + $0x80] sm:$0xf]
  %v47 = vld [vmem:[%s0 + $0x84] sm:$0xf]
  %v48 = vld [vmem:[%s0 + $0x88] sm:$0xf]
  %v49 = vld [vmem:[%s0 + $0x8c] sm:$0xf]
  %v50 = vld [vmem:[%s0 + $0x90] sm:$0xf]
  %v51 = vld [vmem:[%s0 + $0x94] sm:$0xf]
  %v52 = vld [vmem:[%s0 + $0x98] sm:$0xf]
  %v53 = vld [vmem:[%s0 + $0x9c] sm:$0xf]
  %v54 = vld [vmem:[%s0 + $0xa0] sm:$0xf]
  %v55 = vld [vmem:[%s0 + $0xa4] sm:$0xf]
  %v56 = vld [vmem:[%s0 + $0xa8] sm:$0xf]
  %v57 = vld [vmem:[%s0 + $0xac] sm:$0xf]
  %v58 = vld [vmem:[%s0 + $0xb0] sm:$0xf]
  %v59 = vld [vmem:[%s0 + $0xb4] sm:$0xf]
  %v60 = vld [vmem:[%s0 + $0xb8] sm:$0xf]
  %v61 = vld [vmem:[%s0 + $0xbc] sm:$0xf]
  %v62 = vld [vmem:[%s0 + $0xc0] sm:$0xf]
  %v63 = vld [vmem:[%s0 + $0xc4] sm:$0xf]
  %v64 = vld [vmem:[%s0 + $0xc8] sm:$0xf]
  %v65 = vld [vmem:[%s0 + $0xcc] sm:$0xf]
  %v66 = vld [vmem:[%s0 + $0xd0] sm:$0xf]
  %v67 = vld [vmem:[%s0 + $0xd4] sm:$0xf]
  %v68 = vld [vmem:[%s0 + $0xd8] sm:$0xf]
  %v69 = vld [vmem:[%s0 + $0xdc] sm:$0xf]
  %v70 = vld [vmem:[%s0 + $0xe0] sm:$0xf]
  %v71 = vld [vmem:[%s0 + $0xe4] sm:$0xf]
  %v72 = vld [vmem:[%s0 + $0xe8] sm:$0xf]
  %v73 = vld [vmem:[%s0 + $0xec] sm:$0xf]
  %v74 = vld [vmem:[%s0 + $0xf0] sm:$0xf]
  %v75 = vld [vmem:[%s0 + $0xf4] sm:$0xf]
  %v76 = vld [vmem:[%s0 + $0xf8] sm:$0xf]
  %v77 = vld [vmem:[%s0 + $0xfc] sm:$0xf]
  %v78 = vld [vmem:[%s0 + $0x100] sm:$0xf]
  %v79 = vld [vmem:[%s0 + $0x104] sm:$0xf]
  %v80 = vld [vmem:[%s0 + $0x108] sm:$0xf]
  %v81 = vld [vmem:[%s0 + $0x10c] sm:$0xf]
  %v82 = vld [vmem:[%s0 + $0x110] sm:$0xf]
  %v83 = vld [vmem:[%s0 + $0x114] sm:$0xf]
  %v84 = vld [vmem:[%s0 + $0x118] sm:$0xf]
  %v85 = vld [vmem:[%s0 + $0x11c] sm:$0xf]
  %v86 = vld [vmem:[%s0 + $0x120] sm:$0xf]
  %v87 = vld [vmem:[%s0 + $0x124] sm:$0xf]
  %v88 = vld [vmem:[%s0 + $0x128] sm:$0xf]
  %v89 = vld [vmem:[%s0 + $0x12c] sm:$0xf]
  %v90 = vld [vmem:[%s0 + $0x130] sm:$0xf]
  %v91 = vld [vmem:[%s0 + $0x134] sm:$0xf]
  %v92 = vld [vmem:[%s0 + $0x138] sm:$0xf]
  %v93 = vld [vmem:[%s0 + $0x13c] sm:$0xf]
  %v94 = vld [vmem:[%s0 + $0x140] sm:$0xf]
  %v95 = vld [vmem:[%s0 + $0x144] sm:$0xf]
  %v96 = vld [vmem:[%s0 + $0x148] sm:$0xf]
  %v97 = vld [vmem:[%s0 + $0x14c] sm:$0xf]
  %v98 = vld [vmem:[%s0 + $0x150] sm:$0xf]
  %v99 = vld [vmem:[%s0 + $0x154] sm:$0xf]
  %v100 = vld [vmem:[%s0 + $0x158] sm:$0xf]
  %v101 = vld [vmem:[%s0 + $0x15c] sm:$0xf]
  %v102 = vld [vmem:[%s0 + $0x160] sm:$0xf]
  %v103 = vld [vmem:[%s0 + $0x164] sm:$0xf]
  %v104 = vld [vmem:[%s0 + $0x168] sm:$0xf]
  %v105 = vld [vmem:[%s0 + $0x16c] sm:$0xf]
  %v106 = vld [vmem:[%s0 + $0x170] sm:$0xf]
  %v107 = vld [vmem:[%s0 + $0x174] sm:$0xf]
  %v108 = vld [vmem:[%s0 + $0x178] sm:$0xf]
  %v109 = vld [vmem:[%s0 + $0x17c] sm:$0xf]
  %v110 = vld [vmem:[%s0 + $0x180] sm:$0xf]
  %v111 = vld [vmem:[%s0 + $0x184] sm:$0xf]
  %v112 = vld [vmem:[%s0 + $0x188] sm:$0xf]
  %v113 = vld [vmem:[%s0 + $0x18c] sm:$0xf]
  %v114 = vld [vmem:[%s0 + $0x190] sm:$0xf]
  %v115 = vld [vmem:[%s0 + $0x194] sm:$0xf]
  %v116 = vld [vmem:[%s0 + $0x198] sm:$0xf]
  %v117 = vld [vmem:[%s0 + $0x19c] sm:$0xf]
  %v118 = vld [vmem:[%s0 + $0x1a0] sm:$0xf]
  %v119 = vld [vmem:[%s0 + $0x1a4] sm:$0xf]
  %v120 = vld [vmem:[%s0 + $0x1a8] sm:$0xf]
  %v121 = vld [vmem:[%s0 + $0x1ac] sm:$0xf]
  %v122 = vld [vmem:[%s0 + $0x1b0] sm:$0xf]
  %v123 = vld [vmem:[%s0 + $0x1b4] sm:$0xf]
  %v124 = vld [vmem:[%s0 + $0x1b8] sm:$0xf]
  %v125 = vld [vmem:[%s0 + $0x1bc] sm:$0xf]
  %v126 = vld [vmem:[%s0 + $0x1c0] sm:$0xf]
  %v127 = vld [vmem:[%s0 + $0x1c4] sm:$0xf]
  %v128 = vld [vmem:[%s0 + $0x1c8] sm:$0xf]
  %v129 = vld [vmem:[%s0 + $0x1cc] sm:$0xf]
  %v130 = vld [vmem:[%s0 + $0x1d0] sm:$0xf]
  %v131 = vld [vmem:[%s0 + $0x1d4] sm:$0xf]
  %v132 = vld [vmem:[%s0 + $0x1d8] sm:$0xf]
  %v133 = vld [vmem:[%s0 + $0x1dc] sm:$0xf]
  %v134 = vld [vmem:[%s0 + $0x1e0] sm:$0xf]
  %v135 = vld [vmem:[%s0 + $0x1e4] sm:$0xf]
  %v136 = vld [vmem:[%s0 + $0x1e8] sm:$0xf]
  %v137 = vld [vmem:[%s0 + $0x1ec] sm:$0xf]
  %v138 = vld [vmem:[%s0 + $0x1f0] sm:$0xf]
  %v139 = vld [vmem:[%s0 + $0x1f4] sm:$0xf]
  %v140 = vld [vmem:[%s0 + $0x1f8] sm:$0xf]
  %v141 = vld [vmem:[%s0 + $0x1fc] sm:$0xf]
  %v142 = vld [vmem:[%s1] sm:$0xf]
  %v143 = vld [vmem:[%s1 + $0x4] sm:$0xf]
  %v144 = vld [vmem:[%s1 + $0x8] sm:$0xf]
  %v145 = vld [vmem:[%s1 + $0xc] sm:$0xf]
  %v146 = vld [vmem:[%s1 + $0x10] sm:$0xf]
  %v147 = vld [vmem:[%s1 + $0x14] sm:$0xf]
  %v148 = vld [vmem:[%s1 + $0x18] sm:$0xf]
  %v149 = vld [vmem:[%s1 + $0x1c] sm:$0xf]
  %v150 = vld [vmem:[%s1 + $0x20] sm:$0xf]
  %v151 = vld [vmem:[%s1 + $0x24] sm:$0xf]
  %v152 = vld [vmem:[%s1 + $0x28] sm:$0xf]
  %v153 = vld [vmem:[%s1 + $0x2c] sm:$0xf]
  %v154 = vld [vmem:[%s1 + $0x30] sm:$0xf]
  %v155 = vld [vmem:[%s1 + $0x34] sm:$0xf]
  %v156 = vld [vmem:[%s1 + $0x38] sm:$0xf]
  %v157 = vld [vmem:[%s1 + $0x3c] sm:$0xf]
  %v286 = vunpack.c.l.b16 %v14
  %v287 = vunpack.c.l.b16 %v15
  %v288 = vunpack.c.l.b16 %v16
  %v289 = vunpack.c.l.b16 %v17
  %v290 = vunpack.c.l.b16 %v18
  %v291 = vunpack.c.l.b16 %v19
  %v292 = vunpack.c.l.b16 %v20
  %v293 = vunpack.c.l.b16 %v21
  %v294 = vunpack.c.l.b16 %v22
  %v295 = vunpack.c.l.b16 %v23
  %v296 = vunpack.c.l.b16 %v24
  %v297 = vunpack.c.l.b16 %v25
  %v298 = vunpack.c.l.b16 %v26
  %v299 = vunpack.c.l.b16 %v27
  %v300 = vunpack.c.l.b16 %v28
  %v301 = vunpack.c.l.b16 %v29
  %v302 = vunpack.c.l.b16 %v30
  %v303 = vunpack.c.l.b16 %v31
  %v304 = vunpack.c.l.b16 %v32
  %v305 = vunpack.c.l.b16 %v33
  %v306 = vunpack.c.l.b16 %v34
  %v307 = vunpack.c.l.b16 %v35
  %v308 = vunpack.c.l.b16 %v36
  %v309 = vunpack.c.l.b16 %v37
  %v310 = vunpack.c.l.b16 %v38
  %v311 = vunpack.c.l.b16 %v39
  %v312 = vunpack.c.l.b16 %v40
  %v313 = vunpack.c.l.b16 %v41
  %v314 = vunpack.c.l.b16 %v42
  %v315 = vunpack.c.l.b16 %v43
  %v316 = vunpack.c.l.b16 %v44
  %v317 = vunpack.c.l.b16 %v45
  %v318 = vunpack.c.l.b16 %v46
  %v319 = vunpack.c.l.b16 %v47
  %v320 = vunpack.c.l.b16 %v48
  %v321 = vunpack.c.l.b16 %v49
  %v322 = vunpack.c.l.b16 %v50
  %v323 = vunpack.c.l.b16 %v51
  %v324 = vunpack.c.l.b16 %v52
  %v325 = vunpack.c.l.b16 %v53
  %v326 = vunpack.c.l.b16 %v54
  %v327 = vunpack.c.l.b16 %v55
  %v328 = vunpack.c.l.b16 %v56
  %v329 = vunpack.c.l.b16 %v57
  %v330 = vunpack.c.l.b16 %v58
  %v331 = vunpack.c.l.b16 %v59
  %v332 = vunpack.c.l.b16 %v60
  %v333 = vunpack.c.l.b16 %v61
  %v334 = vunpack.c.l.b16 %v62
  %v335 = vunpack.c.l.b16 %v63
  %v336 = vunpack.c.l.b16 %v64
  %v337 = vunpack.c.l.b16 %v65
  %v338 = vunpack.c.l.b16 %v66
  %v339 = vunpack.c.l.b16 %v67
  %v340 = vunpack.c.l.b16 %v68
  %v341 = vunpack.c.l.b16 %v69
  %v342 = vunpack.c.l.b16 %v70
  %v343 = vunpack.c.l.b16 %v71
  %v344 = vunpack.c.l.b16 %v72
  %v345 = vunpack.c.l.b16 %v73
  %v346 = vunpack.c.l.b16 %v74
  %v347 = vunpack.c.l.b16 %v75
  %v348 = vunpack.c.l.b16 %v76
  %v349 = vunpack.c.l.b16 %v77
  %v350 = vunpack.c.l.b16 %v78
  %v351 = vunpack.c.l.b16 %v79
  %v352 = vunpack.c.l.b16 %v80
  %v353 = vunpack.c.l.b16 %v81
  %v354 = vunpack.c.l.b16 %v82
  %v355 = vunpack.c.l.b16 %v83
  %v356 = vunpack.c.l.b16 %v84
  %v357 = vunpack.c.l.b16 %v85
  %v358 = vunpack.c.l.b16 %v86
  %v359 = vunpack.c.l.b16 %v87
  %v360 = vunpack.c.l.b16 %v88
  %v361 = vunpack.c.l.b16 %v89
  %v362 = vunpack.c.l.b16 %v90
  %v363 = vunpack.c.l.b16 %v91
  %v364 = vunpack.c.l.b16 %v92
  %v365 = vunpack.c.l.b16 %v93
  %v366 = vunpack.c.l.b16 %v94
  %v367 = vunpack.c.l.b16 %v95
  %v368 = vunpack.c.l.b16 %v96
  %v369 = vunpack.c.l.b16 %v97
  %v370 = vunpack.c.l.b16 %v98
  %v371 = vunpack.c.l.b16 %v99
  %v372 = vunpack.c.l.b16 %v100
  %v373 = vunpack.c.l.b16 %v101
  %v374 = vunpack.c.l.b16 %v102
  %v375 = vunpack.c.l.b16 %v103
  %v376 = vunpack.c.l.b16 %v104
  %v377 = vunpack.c.l.b16 %v105
  %v378 = vunpack.c.l.b16 %v106
  %v379 = vunpack.c.l.b16 %v107
  %v380 = vunpack.c.l.b16 %v108
  %v381 = vunpack.c.l.b16 %v109
  %v382 = vunpack.c.l.b16 %v110
  %v383 = vunpack.c.l.b16 %v111
  %v384 = vunpack.c.l.b16 %v112
  %v385 = vunpack.c.l.b16 %v113
  %v386 = vunpack.c.l.b16 %v114
  %v387 = vunpack.c.l.b16 %v115
  %v388 = vunpack.c.l.b16 %v116
  %v389 = vunpack.c.l.b16 %v117
  %v390 = vunpack.c.l.b16 %v118
  %v391 = vunpack.c.l.b16 %v119
  %v392 = vunpack.c.l.b16 %v120
  %v393 = vunpack.c.l.b16 %v121
  %v394 = vunpack.c.l.b16 %v122
  %v395 = vunpack.c.l.b16 %v123
  %v396 = vunpack.c.l.b16 %v124
  %v397 = vunpack.c.l.b16 %v125
  %v398 = vunpack.c.l.b16 %v126
  %v399 = vunpack.c.l.b16 %v127
  %v400 = vunpack.c.l.b16 %v128
  %v401 = vunpack.c.l.b16 %v129
  %v402 = vunpack.c.l.b16 %v130
  %v403 = vunpack.c.l.b16 %v131
  %v404 = vunpack.c.l.b16 %v132
  %v405 = vunpack.c.l.b16 %v133
  %v406 = vunpack.c.l.b16 %v134
  %v407 = vunpack.c.l.b16 %v135
  %v408 = vunpack.c.l.b16 %v136
  %v409 = vunpack.c.l.b16 %v137
  %v410 = vunpack.c.l.b16 %v138
  %v411 = vunpack.c.l.b16 %v139
  %v412 = vunpack.c.l.b16 %v140
  %v413 = vunpack.c.l.b16 %v141
  %v414 = vpack.c.b16 %v287, %v286
  %v415 = vpack.c.b16 %v289, %v288
  %v416 = vpack.c.b16 %v291, %v290
  %v417 = vpack.c.b16 %v293, %v292
  %v418 = vpack.c.b16 %v295, %v294
  %v419 = vpack.c.b16 %v297, %v296
  %v420 = vpack.c.b16 %v299, %v298
  %v421 = vpack.c.b16 %v301, %v300
  %v422 = vpack.c.b16 %v303, %v302
  %v423 = vpack.c.b16 %v305, %v304
  %v424 = vpack.c.b16 %v307, %v306
  %v425 = vpack.c.b16 %v309, %v308
  %v426 = vpack.c.b16 %v311, %v310
  %v427 = vpack.c.b16 %v313, %v312
  %v428 = vpack.c.b16 %v315, %v314
  %v429 = vpack.c.b16 %v317, %v316
  %v430 = vpack.c.b16 %v319, %v318
  %v431 = vpack.c.b16 %v321, %v320
  %v432 = vpack.c.b16 %v323, %v322
  %v433 = vpack.c.b16 %v325, %v324
  %v434 = vpack.c.b16 %v327, %v326
  %v435 = vpack.c.b16 %v329, %v328
  %v436 = vpack.c.b16 %v331, %v330
  %v437 = vpack.c.b16 %v333, %v332
  %v438 = vpack.c.b16 %v335, %v334
  %v439 = vpack.c.b16 %v337, %v336
  %v440 = vpack.c.b16 %v339, %v338
  %v441 = vpack.c.b16 %v341, %v340
  %v442 = vpack.c.b16 %v343, %v342
  %v443 = vpack.c.b16 %v345, %v344
  %v444 = vpack.c.b16 %v347, %v346
  %v445 = vpack.c.b16 %v349, %v348
  %v446 = vpack.c.b16 %v351, %v350
  %v447 = vpack.c.b16 %v353, %v352
  %v448 = vpack.c.b16 %v355, %v354
  %v449 = vpack.c.b16 %v357, %v356
  %v450 = vpack.c.b16 %v359, %v358
  %v451 = vpack.c.b16 %v361, %v360
  %v452 = vpack.c.b16 %v363, %v362
  %v453 = vpack.c.b16 %v365, %v364
  %v454 = vpack.c.b16 %v367, %v366
  %v455 = vpack.c.b16 %v369, %v368
  %v456 = vpack.c.b16 %v371, %v370
  %v457 = vpack.c.b16 %v373, %v372
  %v458 = vpack.c.b16 %v375, %v374
  %v459 = vpack.c.b16 %v377, %v376
  %v460 = vpack.c.b16 %v379, %v378
  %v461 = vpack.c.b16 %v381, %v380
  %v462 = vpack.c.b16 %v383, %v382
  %v463 = vpack.c.b16 %v385, %v384
  %v464 = vpack.c.b16 %v387, %v386
  %v465 = vpack.c.b16 %v389, %v388
  %v466 = vpack.c.b16 %v391, %v390
  %v467 = vpack.c.b16 %v393, %v392
  %v468 = vpack.c.b16 %v395, %v394
  %v469 = vpack.c.b16 %v397, %v396
  %v470 = vpack.c.b16 %v399, %v398
  %v471 = vpack.c.b16 %v401, %v400
  %v472 = vpack.c.b16 %v403, %v402
  %v473 = vpack.c.b16 %v405, %v404
  %v474 = vpack.c.b16 %v407, %v406
  %v475 = vpack.c.b16 %v409, %v408
  %v476 = vpack.c.b16 %v411, %v410
  %v477 = vpack.c.b16 %v413, %v412
  %v558 = vunpack.c.l.b16 %v142
  %v559 = vunpack.c.l.b16 %v143
  %v560 = vunpack.c.l.b16 %v144
  %v561 = vunpack.c.l.b16 %v145
  %v562 = vunpack.c.l.b16 %v146
  %v563 = vunpack.c.l.b16 %v147
  %v564 = vunpack.c.l.b16 %v148
  %v565 = vunpack.c.l.b16 %v149
  %v566 = vunpack.c.l.b16 %v150
  %v567 = vunpack.c.l.b16 %v151
  %v568 = vunpack.c.l.b16 %v152
  %v569 = vunpack.c.l.b16 %v153
  %v570 = vunpack.c.l.b16 %v154
  %v571 = vunpack.c.l.b16 %v155
  %v572 = vunpack.c.l.b16 %v156
  %v573 = vunpack.c.l.b16 %v157
  %v574 = vpack.c.b16 %v559, %v558
  %v575 = vpack.c.b16 %v561, %v560
  %v576 = vpack.c.b16 %v563, %v562
  %v577 = vpack.c.b16 %v565, %v564
  %v578 = vpack.c.b16 %v567, %v566
  %v579 = vpack.c.b16 %v569, %v568
  %v580 = vpack.c.b16 %v571, %v570
  %v581 = vpack.c.b16 %v573, %v572
  %590 = vmatprep.subr.bf16.mxu0 0
  %591 = vmatpush1.bf16.msra.mxu0 %v574
  %592 = vmatprep.subr.bf16.mxu0 0
  %593 = vmatpush1.bf16.msra.mxu0 %v575
  %594 = vmatprep.subr.bf16.mxu0 0
  %595 = vmatpush1.bf16.msra.mxu0 %v576
  %596 = vmatprep.subr.bf16.mxu0 0
  %597 = vmatpush1.bf16.msra.mxu0 %v577
  %598 = vmatprep.subr.bf16.mxu0 0
  %599 = vmatpush1.bf16.msra.mxu0 %v578
  %600 = vmatprep.subr.bf16.mxu0 0
  %601 = vmatpush1.bf16.msra.mxu0 %v579
  %602 = vmatprep.subr.bf16.mxu0 0
  %603 = vmatpush1.bf16.msra.mxu0 %v580
  %604 = vmatprep.subr.bf16.mxu0 0
  %605 = vmatpush1.bf16.msra.mxu0 %v581
  %606 = vmatprep.subr.bf16.mxu0 0
  %607 = vmatpush1.bf16.msra.mxu0 0
  %608 = vmatprep.subr.bf16.mxu0 0
  %609 = vmatpush1.bf16.msra.mxu0 0
  %610 = vmatprep.subr.bf16.mxu0 0
  %611 = vmatpush1.bf16.msra.mxu0 0
  %612 = vmatprep.subr.bf16.mxu0 0
  %613 = vmatpush1.bf16.msra.mxu0 0
  %614 = vmatprep.subr.bf16.mxu0 0
  %615 = vmatpush1.bf16.msra.mxu0 0
  %616 = vmatprep.subr.bf16.mxu0 0
  %617 = vmatpush1.bf16.msra.mxu0 0
  %618 = vmatprep.subr.bf16.mxu0 0
  %619 = vmatpush1.bf16.msra.mxu0 0
  %620 = vmatprep.subr.bf16.mxu0 0
  %621 = vmatpush1.bf16.msra.mxu0 0
  %622 = vmatprep.mubr.bf16.mxu0 0
  %623 = vmatmul.mubr.bf16.gmra.mrb[0].mxu0 %v414
  %v624 = vpop.f32.mrb[0].mxu0
  %v625 = vadd.f32 0.0, %v624
  %v626 = vpop.f32.mrb[0].mxu0
  %v627 = vpop.f32.mrb[0].mxu0
  %v628 = vadd.f32 0.0, %v627
  %v629 = vpop.f32.mrb[0].mxu0
  %630 = vmatprep.mubr.bf16.mxu0 0
  %631 = vmatmul.mubr.bf16.gmra.mrb[0].mxu0 %v415
  %v632 = vpop.f32.mrb[0].mxu0
  %v633 = vadd.f32 0.0, %v632
  %v634 = vpop.f32.mrb[0].mxu0
  %v635 = vpop.f32.mrb[0].mxu0
  %v636 = vadd.f32 0.0, %v635
  %v637 = vpop.f32.mrb[0].mxu0
  %638 = vmatprep.mubr.bf16.mxu0 0
  %639 = vmatmul.mubr.bf16.gmra.mrb[0].mxu0 %v416
  %v640 = vpop.f32.mrb[0].mxu0
  %v641 = vadd.f32 0.0, %v640
  %v642 = vpop.f32.mrb[0].mxu0
  %v643 = vpop.f32.mrb[0].mxu0
  %v644 = vadd.f32 0.0, %v643
  %v645 = vpop.f32.mrb[0].mxu0
  %646 = vmatprep.mubr.bf16.mxu0 0
  %647 = vmatmul.mubr.bf16.gmra.mrb[0].mxu0 %v417
  %v648 = vpop.f32.mrb[0].mxu0
  %v649 = vadd.f32 0.0, %v648
  %v650 = vpop.f32.mrb[0].mxu0
  %v651 = vpop.f32.mrb[0].mxu0
  %v652 = vadd.f32 0.0, %v651
  %v653 = vpop.f32.mrb[0].mxu0
  %654 = vmatprep.mubr.bf16.mxu0 0
  %655 = vmatmul.mubr.bf16.gmra.mrb[0].mxu0 %v418
  %v656 = vpop.f32.mrb[0].mxu0
  %v657 = vadd.f32 0.0, %v656
  %v658 = vpop.f32.mrb[0].mxu0
  %v659 = vpop.f32.mrb[0].mxu0
  %v660 = vadd.f32 0.0, %v659
  %v661 = vpop.f32.mrb[0].mxu0
  %662 = vmatprep.mubr.bf16.mxu0 0
  %663 = vmatmul.mubr.bf16.gmra.mrb[0].mxu0 %v419
  %v664 = vpop.f32.mrb[0].mxu0
  %v665 = vadd.f32 0.0, %v664
  %v666 = vpop.f32.mrb[0].mxu0
  %v667 = vpop.f32.mrb[0].mxu0
  %v668 = vadd.f32 0.0, %v667
  %v669 = vpop.f32.mrb[0].mxu0
  %670 = vmatprep.mubr.bf16.mxu0 0
  %671 = vmatmul.mubr.bf16.gmra.mrb[0].mxu0 %v420
  %v672 = vpop.f32.mrb[0].mxu0
  %v673 = vadd.f32 0.0, %v672
  %v674 = vpop.f32.mrb[0].mxu0
  %v675 = vpop.f32.mrb[0].mxu0
  %v676 = vadd.f32 0.0, %v675
  %v677 = vpop.f32.mrb[0].mxu0
  %678 = vmatprep.mubr.bf16.mxu0 0
  %679 = vmatmul.mubr.bf16.gmra.mrb[0].mxu0 %v421
  %v680 = vpop.f32.mrb[0].mxu0
  %v681 = vadd.f32 0.0, %v680
  %v682 = vpop.f32.mrb[0].mxu0
  %v683 = vpop.f32.mrb[0].mxu0
  %v684 = vadd.f32 0.0, %v683
  %v685 = vpop.f32.mrb[0].mxu0
  %686 = vmatprep.mubr.bf16.mxu0 0
  %687 = vmatmul.mubr.bf16.gmra.mrb[0].mxu0 %v422
  %v688 = vpop.f32.mrb[0].mxu0
  %v689 = vadd.f32 0.0, %v688
  %v690 = vpop.f32.mrb[0].mxu0
  %v691 = vpop.f32.mrb[0].mxu0
  %v692 = vadd.f32 0.0, %v691
  %v693 = vpop.f32.mrb[0].mxu0
  %694 = vmatprep.mubr.bf16.mxu0 0
  %695 = vmatmul.mubr.bf16.gmra.mrb[0].mxu0 %v423
  %v696 = vpop.f32.mrb[0].mxu0
  %v697 = vadd.f32 0.0, %v696
  %v698 = vpop.f32.mrb[0].mxu0
  %v699 = vpop.f32.mrb[0].mxu0
  %v700 = vadd.f32 0.0, %v699
  %v701 = vpop.f32.mrb[0].mxu0
  %702 = vmatprep.mubr.bf16.mxu0 0
  %703 = vmatmul.mubr.bf16.gmra.mrb[0].mxu0 %v424
  %v704 = vpop.f32.mrb[0].mxu0
  %v705 = vadd.f32 0.0, %v704
  %v706 = vpop.f32.mrb[0].mxu0
  %v707 = vpop.f32.mrb[0].mxu0
  %v708 = vadd.f32 0.0, %v707
  %v709 = vpop.f32.mrb[0].mxu0
  %710 = vmatprep.mubr.bf16.mxu0 0
  %711 = vmatmul.mubr.bf16.gmra.mrb[0].mxu0 %v425
  %v712 = vpop.f32.mrb[0].mxu0
  %v713 = vadd.f32 0.0, %v712
  %v714 = vpop.f32.mrb[0].mxu0
  %v715 = vpop.f32.mrb[0].mxu0
  %v716 = vadd.f32 0.0, %v715
  %v717 = vpop.f32.mrb[0].mxu0
  %718 = vmatprep.mubr.bf16.mxu0 0
  %719 = vmatmul.mubr.bf16.gmra.mrb[0].mxu0 %v426
  %v720 = vpop.f32.mrb[0].mxu0
  %v721 = vadd.f32 0.0, %v720
  %v722 = vpop.f32.mrb[0].mxu0
  %v723 = vpop.f32.mrb[0].mxu0
  %v724 = vadd.f32 0.0, %v723
  %v725 = vpop.f32.mrb[0].mxu0
  %726 = vmatprep.mubr.bf16.mxu0 0
  %727 = vmatmul.mubr.bf16.gmra.mrb[0].mxu0 %v427
  %v728 = vpop.f32.mrb[0].mxu0
  %v729 = vadd.f32 0.0, %v728
  %v730 = vpop.f32.mrb[0].mxu0
  %v731 = vpop.f32.mrb[0].mxu0
  %v732 = vadd.f32 0.0, %v731
  %v733 = vpop.f32.mrb[0].mxu0
  %734 = vmatprep.mubr.bf16.mxu0 0
  %735 = vmatmul.mubr.bf16.gmra.mrb[0].mxu0 %v428
  %v736 = vpop.f32.mrb[0].mxu0
  %v737 = vadd.f32 0.0, %v736
  %v738 = vpop.f32.mrb[0].mxu0
  %v739 = vpop.f32.mrb[0].mxu0
  %v740 = vadd.f32 0.0, %v739
  %v741 = vpop.f32.mrb[0].mxu0
  %742 = vmatprep.mubr.bf16.mxu0 0
  %743 = vmatmul.mubr.bf16.gmra.mrb[0].mxu0 %v429
  %v744 = vpop.f32.mrb[0].mxu0
  %v745 = vadd.f32 0.0, %v744
  %v746 = vpop.f32.mrb[0].mxu0
  %v747 = vpop.f32.mrb[0].mxu0
  %v748 = vadd.f32 0.0, %v747
  %v749 = vpop.f32.mrb[0].mxu0
  %750 = vmatprep.mubr.bf16.mxu0 0
  %751 = vmatmul.mubr.bf16.gmra.mrb[0].mxu0 %v430
  %v752 = vpop.f32.mrb[0].mxu0
  %v753 = vadd.f32 0.0, %v752
  %v754 = vpop.f32.mrb[0].mxu0
  %v755 = vpop.f32.mrb[0].mxu0
  %v756 = vadd.f32 0.0, %v755
  %v757 = vpop.f32.mrb[0].mxu0
  %758 = vmatprep.mubr.bf16.mxu0 0
  %759 = vmatmul.mubr.bf16.gmra.mrb[0].mxu0 %v431
  %v760 = vpop.f32.mrb[0].mxu0
  %v761 = vadd.f32 0.0, %v760
  %v762 = vpop.f32.mrb[0].mxu0
  %v763 = vpop.f32.mrb[0].mxu0
  %v764 = vadd.f32 0.0, %v763
  %v765 = vpop.f32.mrb[0].mxu0
  %766 = vmatprep.mubr.bf16.mxu0 0
  %767 = vmatmul.mubr.bf16.gmra.mrb[0].mxu0 %v432
  %v768 = vpop.f32.mrb[0].mxu0
  %v769 = vadd.f32 0.0, %v768
  %v770 = vpop.f32.mrb[0].mxu0
  %v771 = vpop.f32.mrb[0].mxu0
  %v772 = vadd.f32 0.0, %v771
  %v773 = vpop.f32.mrb[0].mxu0
  %774 = vmatprep.mubr.bf16.mxu0 0
  %775 = vmatmul.mubr.bf16.gmra.mrb[0].mxu0 %v433
  %v776 = vpop.f32.mrb[0].mxu0
  %v777 = vadd.f32 0.0, %v776
  %v778 = vpop.f32.mrb[0].mxu0
  %v779 = vpop.f32.mrb[0].mxu0
  %v780 = vadd.f32 0.0, %v779
  %v781 = vpop.f32.mrb[0].mxu0
  %782 = vmatprep.mubr.bf16.mxu0 0
  %783 = vmatmul.mubr.bf16.gmra.mrb[0].mxu0 %v434
  %v784 = vpop.f32.mrb[0].mxu0
  %v785 = vadd.f32 0.0, %v784
  %v786 = vpop.f32.mrb[0].mxu0
  %v787 = vpop.f32.mrb[0].mxu0
  %v788 = vadd.f32 0.0, %v787
  %v789 = vpop.f32.mrb[0].mxu0
  %790 = vmatprep.mubr.bf16.mxu0 0
  %791 = vmatmul.mubr.bf16.gmra.mrb[0].mxu0 %v435
  %v792 = vpop.f32.mrb[0].mxu0
  %v793 = vadd.f32 0.0, %v792
  %v794 = vpop.f32.mrb[0].mxu0
  %v795 = vpop.f32.mrb[0].mxu0
  %v796 = vadd.f32 0.0, %v795
  %v797 = vpop.f32.mrb[0].mxu0
  %798 = vmatprep.mubr.bf16.mxu0 0
  %799 = vmatmul.mubr.bf16.gmra.mrb[0].mxu0 %v436
  %v800 = vpop.f32.mrb[0].mxu0
  %v801 = vadd.f32 0.0, %v800
  %v802 = vpop.f32.mrb[0].mxu0
  %v803 = vpop.f32.mrb[0].mxu0
  %v804 = vadd.f32 0.0, %v803
  %v805 = vpop.f32.mrb[0].mxu0
  %806 = vmatprep.mubr.bf16.mxu0 0
  %807 = vmatmul.mubr.bf16.gmra.mrb[0].mxu0 %v437
  %v808 = vpop.f32.mrb[0].mxu0
  %v809 = vadd.f32 0.0, %v808
  %v810 = vpop.f32.mrb[0].mxu0
  %v811 = vpop.f32.mrb[0].mxu0
  %v812 = vadd.f32 0.0, %v811
  %v813 = vpop.f32.mrb[0].mxu0
  %814 = vmatprep.mubr.bf16.mxu0 0
  %815 = vmatmul.mubr.bf16.gmra.mrb[0].mxu0 %v438
  %v816 = vpop.f32.mrb[0].mxu0
  %v817 = vadd.f32 0.0, %v816
  %v818 = vpop.f32.mrb[0].mxu0
  %v819 = vpop.f32.mrb[0].mxu0
  %v820 = vadd.f32 0.0, %v819
  %v821 = vpop.f32.mrb[0].mxu0
  %822 = vmatprep.mubr.bf16.mxu0 0
  %823 = vmatmul.mubr.bf16.gmra.mrb[0].mxu0 %v439
  %v824 = vpop.f32.mrb[0].mxu0
  %v825 = vadd.f32 0.0, %v824
  %v826 = vpop.f32.mrb[0].mxu0
  %v827 = vpop.f32.mrb[0].mxu0
  %v828 = vadd.f32 0.0, %v827
  %v829 = vpop.f32.mrb[0].mxu0
  %830 = vmatprep.mubr.bf16.mxu0 0
  %831 = vmatmul.mubr.bf16.gmra.mrb[0].mxu0 %v440
  %v832 = vpop.f32.mrb[0].mxu0
  %v833 = vadd.f32 0.0, %v832
  %v834 = vpop.f32.mrb[0].mxu0
  %v835 = vpop.f32.mrb[0].mxu0
  %v836 = vadd.f32 0.0, %v835
  %v837 = vpop.f32.mrb[0].mxu0
  %838 = vmatprep.mubr.bf16.mxu0 0
  %839 = vmatmul.mubr.bf16.gmra.mrb[0].mxu0 %v441
  %v840 = vpop.f32.mrb[0].mxu0
  %v841 = vadd.f32 0.0, %v840
  %v842 = vpop.f32.mrb[0].mxu0
  %v843 = vpop.f32.mrb[0].mxu0
  %v844 = vadd.f32 0.0, %v843
  %v845 = vpop.f32.mrb[0].mxu0
  %846 = vmatprep.mubr.bf16.mxu0 0
  %847 = vmatmul.mubr.bf16.gmra.mrb[0].mxu0 %v442
  %v848 = vpop.f32.mrb[0].mxu0
  %v849 = vadd.f32 0.0, %v848
  %v850 = vpop.f32.mrb[0].mxu0
  %v851 = vpop.f32.mrb[0].mxu0
  %v852 = vadd.f32 0.0, %v851
  %v853 = vpop.f32.mrb[0].mxu0
  %854 = vmatprep.mubr.bf16.mxu0 0
  %855 = vmatmul.mubr.bf16.gmra.mrb[0].mxu0 %v443
  %v856 = vpop.f32.mrb[0].mxu0
  %v857 = vadd.f32 0.0, %v856
  %v858 = vpop.f32.mrb[0].mxu0
  %v859 = vpop.f32.mrb[0].mxu0
  %v860 = vadd.f32 0.0, %v859
  %v861 = vpop.f32.mrb[0].mxu0
  %862 = vmatprep.mubr.bf16.mxu0 0
  %863 = vmatmul.mubr.bf16.gmra.mrb[0].mxu0 %v444
  %v864 = vpop.f32.mrb[0].mxu0
  %v865 = vadd.f32 0.0, %v864
  %v866 = vpop.f32.mrb[0].mxu0
  %v867 = vpop.f32.mrb[0].mxu0
  %v868 = vadd.f32 0.0, %v867
  %v869 = vpop.f32.mrb[0].mxu0
  %870 = vmatprep.mubr.bf16.mxu0 0
  %871 = vmatmul.mubr.bf16.gmra.mrb[0].mxu0 %v445
  %v872 = vpop.f32.mrb[0].mxu0
  %v873 = vadd.f32 0.0, %v872
  %v874 = vpop.f32.mrb[0].mxu0
  %v875 = vpop.f32.mrb[0].mxu0
  %v876 = vadd.f32 0.0, %v875
  %v877 = vpop.f32.mrb[0].mxu0
  %878 = vmatprep.mubr.bf16.mxu0 0
  %879 = vmatmul.mubr.bf16.gmra.mrb[0].mxu0 %v446
  %v880 = vpop.f32.mrb[0].mxu0
  %v881 = vadd.f32 0.0, %v880
  %v882 = vpop.f32.mrb[0].mxu0
  %v883 = vpop.f32.mrb[0].mxu0
  %v884 = vadd.f32 0.0, %v883
  %v885 = vpop.f32.mrb[0].mxu0
  %886 = vmatprep.mubr.bf16.mxu0 0
  %887 = vmatmul.mubr.bf16.gmra.mrb[0].mxu0 %v447
  %v888 = vpop.f32.mrb[0].mxu0
  %v889 = vadd.f32 0.0, %v888
  %v890 = vpop.f32.mrb[0].mxu0
  %v891 = vpop.f32.mrb[0].mxu0
  %v892 = vadd.f32 0.0, %v891
  %v893 = vpop.f32.mrb[0].mxu0
  %894 = vmatprep.mubr.bf16.mxu0 0
  %895 = vmatmul.mubr.bf16.gmra.mrb[0].mxu0 %v448
  %v896 = vpop.f32.mrb[0].mxu0
  %v897 = vadd.f32 0.0, %v896
  %v898 = vpop.f32.mrb[0].mxu0
  %v899 = vpop.f32.mrb[0].mxu0
  %v900 = vadd.f32 0.0, %v899
  %v901 = vpop.f32.mrb[0].mxu0
  %902 = vmatprep.mubr.bf16.mxu0 0
  %903 = vmatmul.mubr.bf16.gmra.mrb[0].mxu0 %v449
  %v904 = vpop.f32.mrb[0].mxu0
  %v905 = vadd.f32 0.0, %v904
  %v906 = vpop.f32.mrb[0].mxu0
  %v907 = vpop.f32.mrb[0].mxu0
  %v908 = vadd.f32 0.0, %v907
  %v909 = vpop.f32.mrb[0].mxu0
  %910 = vmatprep.mubr.bf16.mxu0 0
  %911 = vmatmul.mubr.bf16.gmra.mrb[0].mxu0 %v450
  %v912 = vpop.f32.mrb[0].mxu0
  %v913 = vadd.f32 0.0, %v912
  %v914 = vpop.f32.mrb[0].mxu0
  %v915 = vpop.f32.mrb[0].mxu0
  %v916 = vadd.f32 0.0, %v915
  %v917 = vpop.f32.mrb[0].mxu0
  %918 = vmatprep.mubr.bf16.mxu0 0
  %919 = vmatmul.mubr.bf16.gmra.mrb[0].mxu0 %v451
  %v920 = vpop.f32.mrb[0].mxu0
  %v921 = vadd.f32 0.0, %v920
  %v922 = vpop.f32.mrb[0].mxu0
  %v923 = vpop.f32.mrb[0].mxu0
  %v924 = vadd.f32 0.0, %v923
  %v925 = vpop.f32.mrb[0].mxu0
  %926 = vmatprep.mubr.bf16.mxu0 0
  %927 = vmatmul.mubr.bf16.gmra.mrb[0].mxu0 %v452
  %v928 = vpop.f32.mrb[0].mxu0
  %v929 = vadd.f32 0.0, %v928
  %v930 = vpop.f32.mrb[0].mxu0
  %v931 = vpop.f32.mrb[0].mxu0
  %v932 = vadd.f32 0.0, %v931
  %v933 = vpop.f32.mrb[0].mxu0
  %934 = vmatprep.mubr.bf16.mxu0 0
  %935 = vmatmul.mubr.bf16.gmra.mrb[0].mxu0 %v453
  %v936 = vpop.f32.mrb[0].mxu0
  %v937 = vadd.f32 0.0, %v936
  %v938 = vpop.f32.mrb[0].mxu0
  %v939 = vpop.f32.mrb[0].mxu0
  %v940 = vadd.f32 0.0, %v939
  %v941 = vpop.f32.mrb[0].mxu0
  %942 = vmatprep.mubr.bf16.mxu0 0
  %943 = vmatmul.mubr.bf16.gmra.mrb[0].mxu0 %v454
  %v944 = vpop.f32.mrb[0].mxu0
  %v945 = vadd.f32 0.0, %v944
  %v946 = vpop.f32.mrb[0].mxu0
  %v947 = vpop.f32.mrb[0].mxu0
  %v948 = vadd.f32 0.0, %v947
  %v949 = vpop.f32.mrb[0].mxu0
  %950 = vmatprep.mubr.bf16.mxu0 0
  %951 = vmatmul.mubr.bf16.gmra.mrb[0].mxu0 %v455
  %v952 = vpop.f32.mrb[0].mxu0
  %v953 = vadd.f32 0.0, %v952
  %v954 = vpop.f32.mrb[0].mxu0
  %v955 = vpop.f32.mrb[0].mxu0
  %v956 = vadd.f32 0.0, %v955
  %v957 = vpop.f32.mrb[0].mxu0
  %958 = vmatprep.mubr.bf16.mxu0 0
  %959 = vmatmul.mubr.bf16.gmra.mrb[0].mxu0 %v456
  %v960 = vpop.f32.mrb[0].mxu0
  %v961 = vadd.f32 0.0, %v960
  %v962 = vpop.f32.mrb[0].mxu0
  %v963 = vpop.f32.mrb[0].mxu0
  %v964 = vadd.f32 0.0, %v963
  %v965 = vpop.f32.mrb[0].mxu0
  %966 = vmatprep.mubr.bf16.mxu0 0
  %967 = vmatmul.mubr.bf16.gmra.mrb[0].mxu0 %v457
  %v968 = vpop.f32.mrb[0].mxu0
  %v969 = vadd.f32 0.0, %v968
  %v970 = vpop.f32.mrb[0].mxu0
  %v971 = vpop.f32.mrb[0].mxu0
  %v972 = vadd.f32 0.0, %v971
  %v973 = vpop.f32.mrb[0].mxu0
  %974 = vmatprep.mubr.bf16.mxu0 0
  %975 = vmatmul.mubr.bf16.gmra.mrb[0].mxu0 %v458
  %v976 = vpop.f32.mrb[0].mxu0
  %v977 = vadd.f32 0.0, %v976
  %v978 = vpop.f32.mrb[0].mxu0
  %v979 = vpop.f32.mrb[0].mxu0
  %v980 = vadd.f32 0.0, %v979
  %v981 = vpop.f32.mrb[0].mxu0
  %982 = vmatprep.mubr.bf16.mxu0 0
  %983 = vmatmul.mubr.bf16.gmra.mrb[0].mxu0 %v459
  %v984 = vpop.f32.mrb[0].mxu0
  %v985 = vadd.f32 0.0, %v984
  %v986 = vpop.f32.mrb[0].mxu0
  %v987 = vpop.f32.mrb[0].mxu0
  %v988 = vadd.f32 0.0, %v987
  %v989 = vpop.f32.mrb[0].mxu0
  %990 = vmatprep.mubr.bf16.mxu0 0
  %991 = vmatmul.mubr.bf16.gmra.mrb[0].mxu0 %v460
  %v992 = vpop.f32.mrb[0].mxu0
  %v993 = vadd.f32 0.0, %v992
  %v994 = vpop.f32.mrb[0].mxu0
  %v995 = vpop.f32.mrb[0].mxu0
  %v996 = vadd.f32 0.0, %v995
  %v997 = vpop.f32.mrb[0].mxu0
  %998 = vmatprep.mubr.bf16.mxu0 0
  %999 = vmatmul.mubr.bf16.gmra.mrb[0].mxu0 %v461
  %v1000 = vpop.f32.mrb[0].mxu0
  %v1001 = vadd.f32 0.0, %v1000
  %v1002 = vpop.f32.mrb[0].mxu0
  %v1003 = vpop.f32.mrb[0].mxu0
  %v1004 = vadd.f32 0.0, %v1003
  %v1005 = vpop.f32.mrb[0].mxu0
  %1006 = vmatprep.mubr.bf16.mxu0 0
  %1007 = vmatmul.mubr.bf16.gmra.mrb[0].mxu0 %v462
  %v1008 = vpop.f32.mrb[0].mxu0
  %v1009 = vadd.f32 0.0, %v1008
  %v1010 = vpop.f32.mrb[0].mxu0
  %v1011 = vpop.f32.mrb[0].mxu0
  %v1012 = vadd.f32 0.0, %v1011
  %v1013 = vpop.f32.mrb[0].mxu0
  %1014 = vmatprep.mubr.bf16.mxu0 0
  %1015 = vmatmul.mubr.bf16.gmra.mrb[0].mxu0 %v463
  %v1016 = vpop.f32.mrb[0].mxu0
  %v1017 = vadd.f32 0.0, %v1016
  %v1018 = vpop.f32.mrb[0].mxu0
  %v1019 = vpop.f32.mrb[0].mxu0
  %v1020 = vadd.f32 0.0, %v1019
  %v1021 = vpop.f32.mrb[0].mxu0
  %1022 = vmatprep.mubr.bf16.mxu0 0
  %1023 = vmatmul.mubr.bf16.gmra.mrb[0].mxu0 %v464
  %v1024 = vpop.f32.mrb[0].mxu0
  %v1025 = vadd.f32 0.0, %v1024
  %v1026 = vpop.f32.mrb[0].mxu0
  %v1027 = vpop.f32.mrb[0].mxu0
  %v1028 = vadd.f32 0.0, %v1027
  %v1029 = vpop.f32.mrb[0].mxu0
  %1030 = vmatprep.mubr.bf16.mxu0 0
  %1031 = vmatmul.mubr.bf16.gmra.mrb[0].mxu0 %v465
  %v1032 = vpop.f32.mrb[0].mxu0
  %v1033 = vadd.f32 0.0, %v1032
  %v1034 = vpop.f32.mrb[0].mxu0
  %v1035 = vpop.f32.mrb[0].mxu0
  %v1036 = vadd.f32 0.0, %v1035
  %v1037 = vpop.f32.mrb[0].mxu0
  %1038 = vmatprep.mubr.bf16.mxu0 0
  %1039 = vmatmul.mubr.bf16.gmra.mrb[0].mxu0 %v466
  %v1040 = vpop.f32.mrb[0].mxu0
  %v1041 = vadd.f32 0.0, %v1040
  %v1042 = vpop.f32.mrb[0].mxu0
  %v1043 = vpop.f32.mrb[0].mxu0
  %v1044 = vadd.f32 0.0, %v1043
  %v1045 = vpop.f32.mrb[0].mxu0
  %1046 = vmatprep.mubr.bf16.mxu0 0
  %1047 = vmatmul.mubr.bf16.gmra.mrb[0].mxu0 %v467
  %v1048 = vpop.f32.mrb[0].mxu0
  %v1049 = vadd.f32 0.0, %v1048
  %v1050 = vpop.f32.mrb[0].mxu0
  %v1051 = vpop.f32.mrb[0].mxu0
  %v1052 = vadd.f32 0.0, %v1051
  %v1053 = vpop.f32.mrb[0].mxu0
  %1054 = vmatprep.mubr.bf16.mxu0 0
  %1055 = vmatmul.mubr.bf16.gmra.mrb[0].mxu0 %v468
  %v1056 = vpop.f32.mrb[0].mxu0
  %v1057 = vadd.f32 0.0, %v1056
  %v1058 = vpop.f32.mrb[0].mxu0
  %v1059 = vpop.f32.mrb[0].mxu0
  %v1060 = vadd.f32 0.0, %v1059
  %v1061 = vpop.f32.mrb[0].mxu0
  %1062 = vmatprep.mubr.bf16.mxu0 0
  %1063 = vmatmul.mubr.bf16.gmra.mrb[0].mxu0 %v469
  %v1064 = vpop.f32.mrb[0].mxu0
  %v1065 = vadd.f32 0.0, %v1064
  %v1066 = vpop.f32.mrb[0].mxu0
  %v1067 = vpop.f32.mrb[0].mxu0
  %v1068 = vadd.f32 0.0, %v1067
  %v1069 = vpop.f32.mrb[0].mxu0
  %1070 = vmatprep.mubr.bf16.mxu0 0
  %1071 = vmatmul.mubr.bf16.gmra.mrb[0].mxu0 %v470
  %v1072 = vpop.f32.mrb[0].mxu0
  %v1073 = vadd.f32 0.0, %v1072
  %v1074 = vpop.f32.mrb[0].mxu0
  %v1075 = vpop.f32.mrb[0].mxu0
  %v1076 = vadd.f32 0.0, %v1075
  %v1077 = vpop.f32.mrb[0].mxu0
  %1078 = vmatprep.mubr.bf16.mxu0 0
  %1079 = vmatmul.mubr.bf16.gmra.mrb[0].mxu0 %v471
  %v1080 = vpop.f32.mrb[0].mxu0
  %v1081 = vadd.f32 0.0, %v1080
  %v1082 = vpop.f32.mrb[0].mxu0
  %v1083 = vpop.f32.mrb[0].mxu0
  %v1084 = vadd.f32 0.0, %v1083
  %v1085 = vpop.f32.mrb[0].mxu0
  %1086 = vmatprep.mubr.bf16.mxu0 0
  %1087 = vmatmul.mubr.bf16.gmra.mrb[0].mxu0 %v472
  %v1088 = vpop.f32.mrb[0].mxu0
  %v1089 = vadd.f32 0.0, %v1088
  %v1090 = vpop.f32.mrb[0].mxu0
  %v1091 = vpop.f32.mrb[0].mxu0
  %v1092 = vadd.f32 0.0, %v1091
  %v1093 = vpop.f32.mrb[0].mxu0
  %1094 = vmatprep.mubr.bf16.mxu0 0
  %1095 = vmatmul.mubr.bf16.gmra.mrb[0].mxu0 %v473
  %v1096 = vpop.f32.mrb[0].mxu0
  %v1097 = vadd.f32 0.0, %v1096
  %v1098 = vpop.f32.mrb[0].mxu0
  %v1099 = vpop.f32.mrb[0].mxu0
  %v1100 = vadd.f32 0.0, %v1099
  %v1101 = vpop.f32.mrb[0].mxu0
  %1102 = vmatprep.mubr.bf16.mxu0 0
  %1103 = vmatmul.mubr.bf16.gmra.mrb[0].mxu0 %v474
  %v1104 = vpop.f32.mrb[0].mxu0
  %v1105 = vadd.f32 0.0, %v1104
  %v1106 = vpop.f32.mrb[0].mxu0
  %v1107 = vpop.f32.mrb[0].mxu0
  %v1108 = vadd.f32 0.0, %v1107
  %v1109 = vpop.f32.mrb[0].mxu0
  %1110 = vmatprep.mubr.bf16.mxu0 0
  %1111 = vmatmul.mubr.bf16.gmra.mrb[0].mxu0 %v475
  %v1112 = vpop.f32.mrb[0].mxu0
  %v1113 = vadd.f32 0.0, %v1112
  %v1114 = vpop.f32.mrb[0].mxu0
  %v1115 = vpop.f32.mrb[0].mxu0
  %v1116 = vadd.f32 0.0, %v1115
  %v1117 = vpop.f32.mrb[0].mxu0
  %1118 = vmatprep.mubr.bf16.mxu0 0
  %1119 = vmatmul.mubr.bf16.gmra.mrb[0].mxu0 %v476
  %v1120 = vpop.f32.mrb[0].mxu0
  %v1121 = vadd.f32 0.0, %v1120
  %v1122 = vpop.f32.mrb[0].mxu0
  %v1123 = vpop.f32.mrb[0].mxu0
  %v1124 = vadd.f32 0.0, %v1123
  %v1125 = vpop.f32.mrb[0].mxu0
  %1126 = vmatprep.mubr.bf16.mxu0 0
  %1127 = vmatmul.mubr.bf16.gmra.mrb[0].mxu0 %v477
  %v1128 = vpop.f32.mrb[0].mxu0
  %v1129 = vadd.f32 0.0, %v1128
  %v1130 = vpop.f32.mrb[0].mxu0
  %v1131 = vpop.f32.mrb[0].mxu0
  %v1132 = vadd.f32 0.0, %v1131
  %v1133 = vpop.f32.mrb[0].mxu0
  %1134 = vdwg.mxu0
  %v1135 = vpack.c.bf16 %v628, %v625
  %v1136 = vpack.c.bf16 %v636, %v633
  %v1137 = vpack.c.bf16 %v644, %v641
  %v1138 = vpack.c.bf16 %v652, %v649
  %v1139 = vpack.c.bf16 %v660, %v657
  %v1140 = vpack.c.bf16 %v668, %v665
  %v1141 = vpack.c.bf16 %v676, %v673
  %v1142 = vpack.c.bf16 %v684, %v681
  %v1143 = vpack.c.bf16 %v692, %v689
  %v1144 = vpack.c.bf16 %v700, %v697
  %v1145 = vpack.c.bf16 %v708, %v705
  %v1146 = vpack.c.bf16 %v716, %v713
  %v1147 = vpack.c.bf16 %v724, %v721
  %v1148 = vpack.c.bf16 %v732, %v729
  %v1149 = vpack.c.bf16 %v740, %v737
  %v1150 = vpack.c.bf16 %v748, %v745
  %v1151 = vpack.c.bf16 %v756, %v753
  %v1152 = vpack.c.bf16 %v764, %v761
  %v1153 = vpack.c.bf16 %v772, %v769
  %v1154 = vpack.c.bf16 %v780, %v777
  %v1155 = vpack.c.bf16 %v788, %v785
  %v1156 = vpack.c.bf16 %v796, %v793
  %v1157 = vpack.c.bf16 %v804, %v801
  %v1158 = vpack.c.bf16 %v812, %v809
  %v1159 = vpack.c.bf16 %v820, %v817
  %v1160 = vpack.c.bf16 %v828, %v825
  %v1161 = vpack.c.bf16 %v836, %v833
  %v1162 = vpack.c.bf16 %v844, %v841
  %v1163 = vpack.c.bf16 %v852, %v849
  %v1164 = vpack.c.bf16 %v860, %v857
  %v1165 = vpack.c.bf16 %v868, %v865
  %v1166 = vpack.c.bf16 %v876, %v873
  %v1167 = vpack.c.bf16 %v884, %v881
  %v1168 = vpack.c.bf16 %v892, %v889
  %v1169 = vpack.c.bf16 %v900, %v897
  %v1170 = vpack.c.bf16 %v908, %v905
  %v1171 = vpack.c.bf16 %v916, %v913
  %v1172 = vpack.c.bf16 %v924, %v921
  %v1173 = vpack.c.bf16 %v932, %v929
  %v1174 = vpack.c.bf16 %v940, %v937
  %v1175 = vpack.c.bf16 %v948, %v945
  %v1176 = vpack.c.bf16 %v956, %v953
  %v1177 = vpack.c.bf16 %v964, %v961
  %v1178 = vpack.c.bf16 %v972, %v969
  %v1179 = vpack.c.bf16 %v980, %v977
  %v1180 = vpack.c.bf16 %v988, %v985
  %v1181 = vpack.c.bf16 %v996, %v993
  %v1182 = vpack.c.bf16 %v1004, %v1001
  %v1183 = vpack.c.bf16 %v1012, %v1009
  %v1184 = vpack.c.bf16 %v1020, %v1017
  %v1185 = vpack.c.bf16 %v1028, %v1025
  %v1186 = vpack.c.bf16 %v1036, %v1033
  %v1187 = vpack.c.bf16 %v1044, %v1041
  %v1188 = vpack.c.bf16 %v1052, %v1049
  %v1189 = vpack.c.bf16 %v1060, %v1057
  %v1190 = vpack.c.bf16 %v1068, %v1065
  %v1191 = vpack.c.bf16 %v1076, %v1073
  %v1192 = vpack.c.bf16 %v1084, %v1081
  %v1193 = vpack.c.bf16 %v1092, %v1089
  %v1194 = vpack.c.bf16 %v1100, %v1097
  %v1195 = vpack.c.bf16 %v1108, %v1105
  %v1196 = vpack.c.bf16 %v1116, %v1113
  %v1197 = vpack.c.bf16 %v1124, %v1121
  %v1198 = vpack.c.bf16 %v1132, %v1129
  %v1263 = vunpack.c.l.b16 %v1135
  %v1264 = vunpack.c.h.b16 %v1135
  %v1265 = vunpack.c.l.b16 %v1136
  %v1266 = vunpack.c.h.b16 %v1136
  %v1267 = vunpack.c.l.b16 %v1137
  %v1268 = vunpack.c.h.b16 %v1137
  %v1269 = vunpack.c.l.b16 %v1138
  %v1270 = vunpack.c.h.b16 %v1138
  %v1271 = vunpack.c.l.b16 %v1139
  %v1272 = vunpack.c.h.b16 %v1139
  %v1273 = vunpack.c.l.b16 %v1140
  %v1274 = vunpack.c.h.b16 %v1140
  %v1275 = vunpack.c.l.b16 %v1141
  %v1276 = vunpack.c.h.b16 %v1141
  %v1277 = vunpack.c.l.b16 %v1142
  %v1278 = vunpack.c.h.b16 %v1142
  %v1279 = vunpack.c.l.b16 %v1143
  %v1280 = vunpack.c.h.b16 %v1143
  %v1281 = vunpack.c.l.b16 %v1144
  %v1282 = vunpack.c.h.b16 %v1144
  %v1283 = vunpack.c.l.b16 %v1145
  %v1284 = vunpack.c.h.b16 %v1145
  %v1285 = vunpack.c.l.b16 %v1146
  %v1286 = vunpack.c.h.b16 %v1146
  %v1287 = vunpack.c.l.b16 %v1147
  %v1288 = vunpack.c.h.b16 %v1147
  %v1289 = vunpack.c.l.b16 %v1148
  %v1290 = vunpack.c.h.b16 %v1148
  %v1291 = vunpack.c.l.b16 %v1149
  %v1292 = vunpack.c.h.b16 %v1149
  %v1293 = vunpack.c.l.b16 %v1150
  %v1294 = vunpack.c.h.b16 %v1150
  %v1295 = vunpack.c.l.b16 %v1151
  %v1296 = vunpack.c.h.b16 %v1151
  %v1297 = vunpack.c.l.b16 %v1152
  %v1298 = vunpack.c.h.b16 %v1152
  %v1299 = vunpack.c.l.b16 %v1153
  %v1300 = vunpack.c.h.b16 %v1153
  %v1301 = vunpack.c.l.b16 %v1154
  %v1302 = vunpack.c.h.b16 %v1154
  %v1303 = vunpack.c.l.b16 %v1155
  %v1304 = vunpack.c.h.b16 %v1155
  %v1305 = vunpack.c.l.b16 %v1156
  %v1306 = vunpack.c.h.b16 %v1156
  %v1307 = vunpack.c.l.b16 %v1157
  %v1308 = vunpack.c.h.b16 %v1157
  %v1309 = vunpack.c.l.b16 %v1158
  %v1310 = vunpack.c.h.b16 %v1158
  %v1311 = vunpack.c.l.b16 %v1159
  %v1312 = vunpack.c.h.b16 %v1159
  %v1313 = vunpack.c.l.b16 %v1160
  %v1314 = vunpack.c.h.b16 %v1160
  %v1315 = vunpack.c.l.b16 %v1161
  %v1316 = vunpack.c.h.b16 %v1161
  %v1317 = vunpack.c.l.b16 %v1162
  %v1318 = vunpack.c.h.b16 %v1162
  %v1319 = vunpack.c.l.b16 %v1163
  %v1320 = vunpack.c.h.b16 %v1163
  %v1321 = vunpack.c.l.b16 %v1164
  %v1322 = vunpack.c.h.b16 %v1164
  %v1323 = vunpack.c.l.b16 %v1165
  %v1324 = vunpack.c.h.b16 %v1165
  %v1325 = vunpack.c.l.b16 %v1166
  %v1326 = vunpack.c.h.b16 %v1166
  %v1327 = vunpack.c.l.b16 %v1167
  %v1328 = vunpack.c.h.b16 %v1167
  %v1329 = vunpack.c.l.b16 %v1168
  %v1330 = vunpack.c.h.b16 %v1168
  %v1331 = vunpack.c.l.b16 %v1169
  %v1332 = vunpack.c.h.b16 %v1169
  %v1333 = vunpack.c.l.b16 %v1170
  %v1334 = vunpack.c.h.b16 %v1170
  %v1335 = vunpack.c.l.b16 %v1171
  %v1336 = vunpack.c.h.b16 %v1171
  %v1337 = vunpack.c.l.b16 %v1172
  %v1338 = vunpack.c.h.b16 %v1172
  %v1339 = vunpack.c.l.b16 %v1173
  %v1340 = vunpack.c.h.b16 %v1173
  %v1341 = vunpack.c.l.b16 %v1174
  %v1342 = vunpack.c.h.b16 %v1174
  %v1343 = vunpack.c.l.b16 %v1175
  %v1344 = vunpack.c.h.b16 %v1175
  %v1345 = vunpack.c.l.b16 %v1176
  %v1346 = vunpack.c.h.b16 %v1176
  %v1347 = vunpack.c.l.b16 %v1177
  %v1348 = vunpack.c.h.b16 %v1177
  %v1349 = vunpack.c.l.b16 %v1178
  %v1350 = vunpack.c.h.b16 %v1178
  %v1351 = vunpack.c.l.b16 %v1179
  %v1352 = vunpack.c.h.b16 %v1179
  %v1353 = vunpack.c.l.b16 %v1180
  %v1354 = vunpack.c.h.b16 %v1180
  %v1355 = vunpack.c.l.b16 %v1181
  %v1356 = vunpack.c.h.b16 %v1181
  %v1357 = vunpack.c.l.b16 %v1182
  %v1358 = vunpack.c.h.b16 %v1182
  %v1359 = vunpack.c.l.b16 %v1183
  %v1360 = vunpack.c.h.b16 %v1183
  %v1361 = vunpack.c.l.b16 %v1184
  %v1362 = vunpack.c.h.b16 %v1184
  %v1363 = vunpack.c.l.b16 %v1185
  %v1364 = vunpack.c.h.b16 %v1185
  %v1365 = vunpack.c.l.b16 %v1186
  %v1366 = vunpack.c.h.b16 %v1186
  %v1367 = vunpack.c.l.b16 %v1187
  %v1368 = vunpack.c.h.b16 %v1187
  %v1369 = vunpack.c.l.b16 %v1188
  %v1370 = vunpack.c.h.b16 %v1188
  %v1371 = vunpack.c.l.b16 %v1189
  %v1372 = vunpack.c.h.b16 %v1189
  %v1373 = vunpack.c.l.b16 %v1190
  %v1374 = vunpack.c.h.b16 %v1190
  %v1375 = vunpack.c.l.b16 %v1191
  %v1376 = vunpack.c.h.b16 %v1191
  %v1377 = vunpack.c.l.b16 %v1192
  %v1378 = vunpack.c.h.b16 %v1192
  %v1379 = vunpack.c.l.b16 %v1193
  %v1380 = vunpack.c.h.b16 %v1193
  %v1381 = vunpack.c.l.b16 %v1194
  %v1382 = vunpack.c.h.b16 %v1194
  %v1383 = vunpack.c.l.b16 %v1195
  %v1384 = vunpack.c.h.b16 %v1195
  %v1385 = vunpack.c.l.b16 %v1196
  %v1386 = vunpack.c.h.b16 %v1196
  %v1387 = vunpack.c.l.b16 %v1197
  %v1388 = vunpack.c.h.b16 %v1197
  %v1389 = vunpack.c.l.b16 %v1198
  %v1390 = vunpack.c.h.b16 %v1198
  %v1391 = vpack.c.b16 %v1263, %v1263
  %v1392 = vpack.c.b16 %v1264, %v1264
  %v1393 = vpack.c.b16 %v1265, %v1265
  %v1394 = vpack.c.b16 %v1266, %v1266
  %v1395 = vpack.c.b16 %v1267, %v1267
  %v1396 = vpack.c.b16 %v1268, %v1268
  %v1397 = vpack.c.b16 %v1269, %v1269
  %v1398 = vpack.c.b16 %v1270, %v1270
  %v1399 = vpack.c.b16 %v1271, %v1271
  %v1400 = vpack.c.b16 %v1272, %v1272
  %v1401 = vpack.c.b16 %v1273, %v1273
  %v1402 = vpack.c.b16 %v1274, %v1274
  %v1403 = vpack.c.b16 %v1275, %v1275
  %v1404 = vpack.c.b16 %v1276, %v1276
  %v1405 = vpack.c.b16 %v1277, %v1277
  %v1406 = vpack.c.b16 %v1278, %v1278
  %v1407 = vpack.c.b16 %v1279, %v1279
  %v1408 = vpack.c.b16 %v1280, %v1280
  %v1409 = vpack.c.b16 %v1281, %v1281
  %v1410 = vpack.c.b16 %v1282, %v1282
  %v1411 = vpack.c.b16 %v1283, %v1283
  %v1412 = vpack.c.b16 %v1284, %v1284
  %v1413 = vpack.c.b16 %v1285, %v1285
  %v1414 = vpack.c.b16 %v1286, %v1286
  %v1415 = vpack.c.b16 %v1287, %v1287
  %v1416 = vpack.c.b16 %v1288, %v1288
  %v1417 = vpack.c.b16 %v1289, %v1289
  %v1418 = vpack.c.b16 %v1290, %v1290
  %v1419 = vpack.c.b16 %v1291, %v1291
  %v1420 = vpack.c.b16 %v1292, %v1292
  %v1421 = vpack.c.b16 %v1293, %v1293
  %v1422 = vpack.c.b16 %v1294, %v1294
  %v1423 = vpack.c.b16 %v1295, %v1295
  %v1424 = vpack.c.b16 %v1296, %v1296
  %v1425 = vpack.c.b16 %v1297, %v1297
  %v1426 = vpack.c.b16 %v1298, %v1298
  %v1427 = vpack.c.b16 %v1299, %v1299
  %v1428 = vpack.c.b16 %v1300, %v1300
  %v1429 = vpack.c.b16 %v1301, %v1301
  %v1430 = vpack.c.b16 %v1302, %v1302
  %v1431 = vpack.c.b16 %v1303, %v1303
  %v1432 = vpack.c.b16 %v1304, %v1304
  %v1433 = vpack.c.b16 %v1305, %v1305
  %v1434 = vpack.c.b16 %v1306, %v1306
  %v1435 = vpack.c.b16 %v1307, %v1307
  %v1436 = vpack.c.b16 %v1308, %v1308
  %v1437 = vpack.c.b16 %v1309, %v1309
  %v1438 = vpack.c.b16 %v1310, %v1310
  %v1439 = vpack.c.b16 %v1311, %v1311
  %v1440 = vpack.c.b16 %v1312, %v1312
  %v1441 = vpack.c.b16 %v1313, %v1313
  %v1442 = vpack.c.b16 %v1314, %v1314
  %v1443 = vpack.c.b16 %v1315, %v1315
  %v1444 = vpack.c.b16 %v1316, %v1316
  %v1445 = vpack.c.b16 %v1317, %v1317
  %v1446 = vpack.c.b16 %v1318, %v1318
  %v1447 = vpack.c.b16 %v1319, %v1319
  %v1448 = vpack.c.b16 %v1320, %v1320
  %v1449 = vpack.c.b16 %v1321, %v1321
  %v1450 = vpack.c.b16 %v1322, %v1322
  %v1451 = vpack.c.b16 %v1323, %v1323
  %v1452 = vpack.c.b16 %v1324, %v1324
  %v1453 = vpack.c.b16 %v1325, %v1325
  %v1454 = vpack.c.b16 %v1326, %v1326
  %v1455 = vpack.c.b16 %v1327, %v1327
  %v1456 = vpack.c.b16 %v1328, %v1328
  %v1457 = vpack.c.b16 %v1329, %v1329
  %v1458 = vpack.c.b16 %v1330, %v1330
  %v1459 = vpack.c.b16 %v1331, %v1331
  %v1460 = vpack.c.b16 %v1332, %v1332
  %v1461 = vpack.c.b16 %v1333, %v1333
  %v1462 = vpack.c.b16 %v1334, %v1334
  %v1463 = vpack.c.b16 %v1335, %v1335
  %v1464 = vpack.c.b16 %v1336, %v1336
  %v1465 = vpack.c.b16 %v1337, %v1337
  %v1466 = vpack.c.b16 %v1338, %v1338
  %v1467 = vpack.c.b16 %v1339, %v1339
  %v1468 = vpack.c.b16 %v1340, %v1340
  %v1469 = vpack.c.b16 %v1341, %v1341
  %v1470 = vpack.c.b16 %v1342, %v1342
  %v1471 = vpack.c.b16 %v1343, %v1343
  %v1472 = vpack.c.b16 %v1344, %v1344
  %v1473 = vpack.c.b16 %v1345, %v1345
  %v1474 = vpack.c.b16 %v1346, %v1346
  %v1475 = vpack.c.b16 %v1347, %v1347
  %v1476 = vpack.c.b16 %v1348, %v1348
  %v1477 = vpack.c.b16 %v1349, %v1349
  %v1478 = vpack.c.b16 %v1350, %v1350
  %v1479 = vpack.c.b16 %v1351, %v1351
  %v1480 = vpack.c.b16 %v1352, %v1352
  %v1481 = vpack.c.b16 %v1353, %v1353
  %v1482 = vpack.c.b16 %v1354, %v1354
  %v1483 = vpack.c.b16 %v1355, %v1355
  %v1484 = vpack.c.b16 %v1356, %v1356
  %v1485 = vpack.c.b16 %v1357, %v1357
  %v1486 = vpack.c.b16 %v1358, %v1358
  %v1487 = vpack.c.b16 %v1359, %v1359
  %v1488 = vpack.c.b16 %v1360, %v1360
  %v1489 = vpack.c.b16 %v1361, %v1361
  %v1490 = vpack.c.b16 %v1362, %v1362
  %v1491 = vpack.c.b16 %v1363, %v1363
  %v1492 = vpack.c.b16 %v1364, %v1364
  %v1493 = vpack.c.b16 %v1365, %v1365
  %v1494 = vpack.c.b16 %v1366, %v1366
  %v1495 = vpack.c.b16 %v1367, %v1367
  %v1496 = vpack.c.b16 %v1368, %v1368
  %v1497 = vpack.c.b16 %v1369, %v1369
  %v1498 = vpack.c.b16 %v1370, %v1370
  %v1499 = vpack.c.b16 %v1371, %v1371
  %v1500 = vpack.c.b16 %v1372, %v1372
  %v1501 = vpack.c.b16 %v1373, %v1373
  %v1502 = vpack.c.b16 %v1374, %v1374
  %v1503 = vpack.c.b16 %v1375, %v1375
  %v1504 = vpack.c.b16 %v1376, %v1376
  %v1505 = vpack.c.b16 %v1377, %v1377
  %v1506 = vpack.c.b16 %v1378, %v1378
  %v1507 = vpack.c.b16 %v1379, %v1379
  %v1508 = vpack.c.b16 %v1380, %v1380
  %v1509 = vpack.c.b16 %v1381, %v1381
  %v1510 = vpack.c.b16 %v1382, %v1382
  %v1511 = vpack.c.b16 %v1383, %v1383
  %v1512 = vpack.c.b16 %v1384, %v1384
  %v1513 = vpack.c.b16 %v1385, %v1385
  %v1514 = vpack.c.b16 %v1386, %v1386
  %v1515 = vpack.c.b16 %v1387, %v1387
  %v1516 = vpack.c.b16 %v1388, %v1388
  %v1517 = vpack.c.b16 %v1389, %v1389
  %v1518 = vpack.c.b16 %v1390, %v1390
  %vm1647 = vcmask 60416
  %1648 = vst.msk [vmem:[%s2] sm:$0xf] %vm1647, %v1391
  %1649 = vst.msk [vmem:[%s2 + $0x4] sm:$0xf] %vm1647, %v1392
  %1650 = vst.msk [vmem:[%s2 + $0x8] sm:$0xf] %vm1647, %v1393
  %1651 = vst.msk [vmem:[%s2 + $0xc] sm:$0xf] %vm1647, %v1394
  %1652 = vst.msk [vmem:[%s2 + $0x10] sm:$0xf] %vm1647, %v1395
  %1653 = vst.msk [vmem:[%s2 + $0x14] sm:$0xf] %vm1647, %v1396
  %1654 = vst.msk [vmem:[%s2 + $0x18] sm:$0xf] %vm1647, %v1397
  %1655 = vst.msk [vmem:[%s2 + $0x1c] sm:$0xf] %vm1647, %v1398
  %1656 = vst.msk [vmem:[%s2 + $0x20] sm:$0xf] %vm1647, %v1399
  %1657 = vst.msk [vmem:[%s2 + $0x24] sm:$0xf] %vm1647, %v1400
  %1658 = vst.msk [vmem:[%s2 + $0x28] sm:$0xf] %vm1647, %v1401
  %1659 = vst.msk [vmem:[%s2 + $0x2c] sm:$0xf] %vm1647, %v1402
  %1660 = vst.msk [vmem:[%s2 + $0x30] sm:$0xf] %vm1647, %v1403
  %1661 = vst.msk [vmem:[%s2 + $0x34] sm:$0xf] %vm1647, %v1404
  %1662 = vst.msk [vmem:[%s2 + $0x38] sm:$0xf] %vm1647, %v1405
  %1663 = vst.msk [vmem:[%s2 + $0x3c] sm:$0xf] %vm1647, %v1406
  %1664 = vst.msk [vmem:[%s2 + $0x40] sm:$0xf] %vm1647, %v1407
  %1665 = vst.msk [vmem:[%s2 + $0x44] sm:$0xf] %vm1647, %v1408
  %1666 = vst.msk [vmem:[%s2 + $0x48] sm:$0xf] %vm1647, %v1409
  %1667 = vst.msk [vmem:[%s2 + $0x4c] sm:$0xf] %vm1647, %v1410
  %1668 = vst.msk [vmem:[%s2 + $0x50] sm:$0xf] %vm1647, %v1411
  %1669 = vst.msk [vmem:[%s2 + $0x54] sm:$0xf] %vm1647, %v1412
  %1670 = vst.msk [vmem:[%s2 + $0x58] sm:$0xf] %vm1647, %v1413
  %1671 = vst.msk [vmem:[%s2 + $0x5c] sm:$0xf] %vm1647, %v1414
  %1672 = vst.msk [vmem:[%s2 + $0x60] sm:$0xf] %vm1647, %v1415
  %1673 = vst.msk [vmem:[%s2 + $0x64] sm:$0xf] %vm1647, %v1416
  %1674 = vst.msk [vmem:[%s2 + $0x68] sm:$0xf] %vm1647, %v1417
  %1675 = vst.msk [vmem:[%s2 + $0x6c] sm:$0xf] %vm1647, %v1418
  %1676 = vst.msk [vmem:[%s2 + $0x70] sm:$0xf] %vm1647, %v1419
  %1677 = vst.msk [vmem:[%s2 + $0x74] sm:$0xf] %vm1647, %v1420
  %1678 = vst.msk [vmem:[%s2 + $0x78] sm:$0xf] %vm1647, %v1421
  %1679 = vst.msk [vmem:[%s2 + $0x7c] sm:$0xf] %vm1647, %v1422
  %1680 = vst.msk [vmem:[%s2 + $0x80] sm:$0xf] %vm1647, %v1423
  %1681 = vst.msk [vmem:[%s2 + $0x84] sm:$0xf] %vm1647, %v1424
  %1682 = vst.msk [vmem:[%s2 + $0x88] sm:$0xf] %vm1647, %v1425
  %1683 = vst.msk [vmem:[%s2 + $0x8c] sm:$0xf] %vm1647, %v1426
  %1684 = vst.msk [vmem:[%s2 + $0x90] sm:$0xf] %vm1647, %v1427
  %1685 = vst.msk [vmem:[%s2 + $0x94] sm:$0xf] %vm1647, %v1428
  %1686 = vst.msk [vmem:[%s2 + $0x98] sm:$0xf] %vm1647, %v1429
  %1687 = vst.msk [vmem:[%s2 + $0x9c] sm:$0xf] %vm1647, %v1430
  %1688 = vst.msk [vmem:[%s2 + $0xa0] sm:$0xf] %vm1647, %v1431
  %1689 = vst.msk [vmem:[%s2 + $0xa4] sm:$0xf] %vm1647, %v1432
  %1690 = vst.msk [vmem:[%s2 + $0xa8] sm:$0xf] %vm1647, %v1433
  %1691 = vst.msk [vmem:[%s2 + $0xac] sm:$0xf] %vm1647, %v1434
  %1692 = vst.msk [vmem:[%s2 + $0xb0] sm:$0xf] %vm1647, %v1435
  %1693 = vst.msk [vmem:[%s2 + $0xb4] sm:$0xf] %vm1647, %v1436
  %1694 = vst.msk [vmem:[%s2 + $0xb8] sm:$0xf] %vm1647, %v1437
  %1695 = vst.msk [vmem:[%s2 + $0xbc] sm:$0xf] %vm1647, %v1438
  %1696 = vst.msk [vmem:[%s2 + $0xc0] sm:$0xf] %vm1647, %v1439
  %1697 = vst.msk [vmem:[%s2 + $0xc4] sm:$0xf] %vm1647, %v1440
  %1698 = vst.msk [vmem:[%s2 + $0xc8] sm:$0xf] %vm1647, %v1441
  %1699 = vst.msk [vmem:[%s2 + $0xcc] sm:$0xf] %vm1647, %v1442
  %1700 = vst.msk [vmem:[%s2 + $0xd0] sm:$0xf] %vm1647, %v1443
  %1701 = vst.msk [vmem:[%s2 + $0xd4] sm:$0xf] %vm1647, %v1444
  %1702 = vst.msk [vmem:[%s2 + $0xd8] sm:$0xf] %vm1647, %v1445
  %1703 = vst.msk [vmem:[%s2 + $0xdc] sm:$0xf] %vm1647, %v1446
  %1704 = vst.msk [vmem:[%s2 + $0xe0] sm:$0xf] %vm1647, %v1447
  %1705 = vst.msk [vmem:[%s2 + $0xe4] sm:$0xf] %vm1647, %v1448
  %1706 = vst.msk [vmem:[%s2 + $0xe8] sm:$0xf] %vm1647, %v1449
  %1707 = vst.msk [vmem:[%s2 + $0xec] sm:$0xf] %vm1647, %v1450
  %1708 = vst.msk [vmem:[%s2 + $0xf0] sm:$0xf] %vm1647, %v1451
  %1709 = vst.msk [vmem:[%s2 + $0xf4] sm:$0xf] %vm1647, %v1452
  %1710 = vst.msk [vmem:[%s2 + $0xf8] sm:$0xf] %vm1647, %v1453
  %1711 = vst.msk [vmem:[%s2 + $0xfc] sm:$0xf] %vm1647, %v1454
  %1712 = vst.msk [vmem:[%s2 + $0x100] sm:$0xf] %vm1647, %v1455
  %1713 = vst.msk [vmem:[%s2 + $0x104] sm:$0xf] %vm1647, %v1456
  %1714 = vst.msk [vmem:[%s2 + $0x108] sm:$0xf] %vm1647, %v1457
  %1715 = vst.msk [vmem:[%s2 + $0x10c] sm:$0xf] %vm1647, %v1458
  %1716 = vst.msk [vmem:[%s2 + $0x110] sm:$0xf] %vm1647, %v1459
  %1717 = vst.msk [vmem:[%s2 + $0x114] sm:$0xf] %vm1647, %v1460
  %1718 = vst.msk [vmem:[%s2 + $0x118] sm:$0xf] %vm1647, %v1461
  %1719 = vst.msk [vmem:[%s2 + $0x11c] sm:$0xf] %vm1647, %v1462
  %1720 = vst.msk [vmem:[%s2 + $0x120] sm:$0xf] %vm1647, %v1463
  %1721 = vst.msk [vmem:[%s2 + $0x124] sm:$0xf] %vm1647, %v1464
  %1722 = vst.msk [vmem:[%s2 + $0x128] sm:$0xf] %vm1647, %v1465
  %1723 = vst.msk [vmem:[%s2 + $0x12c] sm:$0xf] %vm1647, %v1466
  %1724 = vst.msk [vmem:[%s2 + $0x130] sm:$0xf] %vm1647, %v1467
  %1725 = vst.msk [vmem:[%s2 + $0x134] sm:$0xf] %vm1647, %v1468
  %1726 = vst.msk [vmem:[%s2 + $0x138] sm:$0xf] %vm1647, %v1469
  %1727 = vst.msk [vmem:[%s2 + $0x13c] sm:$0xf] %vm1647, %v1470
  %1728 = vst.msk [vmem:[%s2 + $0x140] sm:$0xf] %vm1647, %v1471
  %1729 = vst.msk [vmem:[%s2 + $0x144] sm:$0xf] %vm1647, %v1472
  %1730 = vst.msk [vmem:[%s2 + $0x148] sm:$0xf] %vm1647, %v1473
  %1731 = vst.msk [vmem:[%s2 + $0x14c] sm:$0xf] %vm1647, %v1474
  %1732 = vst.msk [vmem:[%s2 + $0x150] sm:$0xf] %vm1647, %v1475
  %1733 = vst.msk [vmem:[%s2 + $0x154] sm:$0xf] %vm1647, %v1476
  %1734 = vst.msk [vmem:[%s2 + $0x158] sm:$0xf] %vm1647, %v1477
  %1735 = vst.msk [vmem:[%s2 + $0x15c] sm:$0xf] %vm1647, %v1478
  %1736 = vst.msk [vmem:[%s2 + $0x160] sm:$0xf] %vm1647, %v1479
  %1737 = vst.msk [vmem:[%s2 + $0x164] sm:$0xf] %vm1647, %v1480
  %1738 = vst.msk [vmem:[%s2 + $0x168] sm:$0xf] %vm1647, %v1481
  %1739 = vst.msk [vmem:[%s2 + $0x16c] sm:$0xf] %vm1647, %v1482
  %1740 = vst.msk [vmem:[%s2 + $0x170] sm:$0xf] %vm1647, %v1483
  %1741 = vst.msk [vmem:[%s2 + $0x174] sm:$0xf] %vm1647, %v1484
  %1742 = vst.msk [vmem:[%s2 + $0x178] sm:$0xf] %vm1647, %v1485
  %1743 = vst.msk [vmem:[%s2 + $0x17c] sm:$0xf] %vm1647, %v1486
  %1744 = vst.msk [vmem:[%s2 + $0x180] sm:$0xf] %vm1647, %v1487
  %1745 = vst.msk [vmem:[%s2 + $0x184] sm:$0xf] %vm1647, %v1488
  %1746 = vst.msk [vmem:[%s2 + $0x188] sm:$0xf] %vm1647, %v1489
  %1747 = vst.msk [vmem:[%s2 + $0x18c] sm:$0xf] %vm1647, %v1490
  %1748 = vst.msk [vmem:[%s2 + $0x190] sm:$0xf] %vm1647, %v1491
  %1749 = vst.msk [vmem:[%s2 + $0x194] sm:$0xf] %vm1647, %v1492
  %1750 = vst.msk [vmem:[%s2 + $0x198] sm:$0xf] %vm1647, %v1493
  %1751 = vst.msk [vmem:[%s2 + $0x19c] sm:$0xf] %vm1647, %v1494
  %1752 = vst.msk [vmem:[%s2 + $0x1a0] sm:$0xf] %vm1647, %v1495
  %1753 = vst.msk [vmem:[%s2 + $0x1a4] sm:$0xf] %vm1647, %v1496
  %1754 = vst.msk [vmem:[%s2 + $0x1a8] sm:$0xf] %vm1647, %v1497
  %1755 = vst.msk [vmem:[%s2 + $0x1ac] sm:$0xf] %vm1647, %v1498
  %1756 = vst.msk [vmem:[%s2 + $0x1b0] sm:$0xf] %vm1647, %v1499
  %1757 = vst.msk [vmem:[%s2 + $0x1b4] sm:$0xf] %vm1647, %v1500
  %1758 = vst.msk [vmem:[%s2 + $0x1b8] sm:$0xf] %vm1647, %v1501
  %1759 = vst.msk [vmem:[%s2 + $0x1bc] sm:$0xf] %vm1647, %v1502
  %1760 = vst.msk [vmem:[%s2 + $0x1c0] sm:$0xf] %vm1647, %v1503
  %1761 = vst.msk [vmem:[%s2 + $0x1c4] sm:$0xf] %vm1647, %v1504
  %1762 = vst.msk [vmem:[%s2 + $0x1c8] sm:$0xf] %vm1647, %v1505
  %1763 = vst.msk [vmem:[%s2 + $0x1cc] sm:$0xf] %vm1647, %v1506
  %1764 = vst.msk [vmem:[%s2 + $0x1d0] sm:$0xf] %vm1647, %v1507
  %1765 = vst.msk [vmem:[%s2 + $0x1d4] sm:$0xf] %vm1647, %v1508
  %1766 = vst.msk [vmem:[%s2 + $0x1d8] sm:$0xf] %vm1647, %v1509
  %1767 = vst.msk [vmem:[%s2 + $0x1dc] sm:$0xf] %vm1647, %v1510
  %1768 = vst.msk [vmem:[%s2 + $0x1e0] sm:$0xf] %vm1647, %v1511
  %1769 = vst.msk [vmem:[%s2 + $0x1e4] sm:$0xf] %vm1647, %v1512
  %1770 = vst.msk [vmem:[%s2 + $0x1e8] sm:$0xf] %vm1647, %v1513
  %1771 = vst.msk [vmem:[%s2 + $0x1ec] sm:$0xf] %vm1647, %v1514
  %1772 = vst.msk [vmem:[%s2 + $0x1f0] sm:$0xf] %vm1647, %v1515
  %1773 = vst.msk [vmem:[%s2 + $0x1f4] sm:$0xf] %vm1647, %v1516
  %1774 = vst.msk [vmem:[%s2 + $0x1f8] sm:$0xf] %vm1647, %v1517
  %1775 = vst.msk [vmem:[%s2 + $0x1fc] sm:$0xf] %vm1647, %v1518
  %vm1776 = vcmask 64512
  %v1777 = vsel %vm1776, %v625, 0.0
  %v1778 = vsel %vm1776, %v628, 0.0
  %v1779 = vadd.f32 %v1777, %v1778
  %v1780 = vsel %vm1776, %v633, 0.0
  %v1781 = vadd.f32 %v1779, %v1780
  %v1782 = vsel %vm1776, %v636, 0.0
  %v1783 = vadd.f32 %v1781, %v1782
  %v1784 = vsel %vm1776, %v641, 0.0
  %v1785 = vadd.f32 %v1783, %v1784
  %v1786 = vsel %vm1776, %v644, 0.0
  %v1787 = vadd.f32 %v1785, %v1786
  %v1788 = vsel %vm1776, %v649, 0.0
  %v1789 = vadd.f32 %v1787, %v1788
  %v1790 = vsel %vm1776, %v652, 0.0
  %v1791 = vadd.f32 %v1789, %v1790
  %v1792 = vsel %vm1776, %v657, 0.0
  %v1793 = vadd.f32 %v1791, %v1792
  %v1794 = vsel %vm1776, %v660, 0.0
  %v1795 = vadd.f32 %v1793, %v1794
  %v1796 = vsel %vm1776, %v665, 0.0
  %v1797 = vadd.f32 %v1795, %v1796
  %v1798 = vsel %vm1776, %v668, 0.0
  %v1799 = vadd.f32 %v1797, %v1798
  %v1800 = vsel %vm1776, %v673, 0.0
  %v1801 = vadd.f32 %v1799, %v1800
  %v1802 = vsel %vm1776, %v676, 0.0
  %v1803 = vadd.f32 %v1801, %v1802
  %v1804 = vsel %vm1776, %v681, 0.0
  %v1805 = vadd.f32 %v1803, %v1804
  %v1806 = vsel %vm1776, %v684, 0.0
  %v1807 = vadd.f32 %v1805, %v1806
  %v1808 = vsel %vm1776, %v689, 0.0
  %v1809 = vadd.f32 %v1807, %v1808
  %v1810 = vsel %vm1776, %v692, 0.0
  %v1811 = vadd.f32 %v1809, %v1810
  %v1812 = vsel %vm1776, %v697, 0.0
  %v1813 = vadd.f32 %v1811, %v1812
  %v1814 = vsel %vm1776, %v700, 0.0
  %v1815 = vadd.f32 %v1813, %v1814
  %v1816 = vsel %vm1776, %v705, 0.0
  %v1817 = vadd.f32 %v1815, %v1816
  %v1818 = vsel %vm1776, %v708, 0.0
  %v1819 = vadd.f32 %v1817, %v1818
  %v1820 = vsel %vm1776, %v713, 0.0
  %v1821 = vadd.f32 %v1819, %v1820
  %v1822 = vsel %vm1776, %v716, 0.0
  %v1823 = vadd.f32 %v1821, %v1822
  %v1824 = vsel %vm1776, %v721, 0.0
  %v1825 = vadd.f32 %v1823, %v1824
  %v1826 = vsel %vm1776, %v724, 0.0
  %v1827 = vadd.f32 %v1825, %v1826
  %v1828 = vsel %vm1776, %v729, 0.0
  %v1829 = vadd.f32 %v1827, %v1828
  %v1830 = vsel %vm1776, %v732, 0.0
  %v1831 = vadd.f32 %v1829, %v1830
  %v1832 = vsel %vm1776, %v737, 0.0
  %v1833 = vadd.f32 %v1831, %v1832
  %v1834 = vsel %vm1776, %v740, 0.0
  %v1835 = vadd.f32 %v1833, %v1834
  %v1836 = vsel %vm1776, %v745, 0.0
  %v1837 = vadd.f32 %v1835, %v1836
  %v1838 = vsel %vm1776, %v748, 0.0
  %v1839 = vadd.f32 %v1837, %v1838
  %v1840 = vsel %vm1776, %v753, 0.0
  %v1841 = vadd.f32 %v1839, %v1840
  %v1842 = vsel %vm1776, %v756, 0.0
  %v1843 = vadd.f32 %v1841, %v1842
  %v1844 = vsel %vm1776, %v761, 0.0
  %v1845 = vadd.f32 %v1843, %v1844
  %v1846 = vsel %vm1776, %v764, 0.0
  %v1847 = vadd.f32 %v1845, %v1846
  %v1848 = vsel %vm1776, %v769, 0.0
  %v1849 = vadd.f32 %v1847, %v1848
  %v1850 = vsel %vm1776, %v772, 0.0
  %v1851 = vadd.f32 %v1849, %v1850
  %v1852 = vsel %vm1776, %v777, 0.0
  %v1853 = vadd.f32 %v1851, %v1852
  %v1854 = vsel %vm1776, %v780, 0.0
  %v1855 = vadd.f32 %v1853, %v1854
  %v1856 = vsel %vm1776, %v785, 0.0
  %v1857 = vadd.f32 %v1855, %v1856
  %v1858 = vsel %vm1776, %v788, 0.0
  %v1859 = vadd.f32 %v1857, %v1858
  %v1860 = vsel %vm1776, %v793, 0.0
  %v1861 = vadd.f32 %v1859, %v1860
  %v1862 = vsel %vm1776, %v796, 0.0
  %v1863 = vadd.f32 %v1861, %v1862
  %v1864 = vsel %vm1776, %v801, 0.0
  %v1865 = vadd.f32 %v1863, %v1864
  %v1866 = vsel %vm1776, %v804, 0.0
  %v1867 = vadd.f32 %v1865, %v1866
  %v1868 = vsel %vm1776, %v809, 0.0
  %v1869 = vadd.f32 %v1867, %v1868
  %v1870 = vsel %vm1776, %v812, 0.0
  %v1871 = vadd.f32 %v1869, %v1870
  %v1872 = vsel %vm1776, %v817, 0.0
  %v1873 = vadd.f32 %v1871, %v1872
  %v1874 = vsel %vm1776, %v820, 0.0
  %v1875 = vadd.f32 %v1873, %v1874
  %v1876 = vsel %vm1776, %v825, 0.0
  %v1877 = vadd.f32 %v1875, %v1876
  %v1878 = vsel %vm1776, %v828, 0.0
  %v1879 = vadd.f32 %v1877, %v1878
  %v1880 = vsel %vm1776, %v833, 0.0
  %v1881 = vadd.f32 %v1879, %v1880
  %v1882 = vsel %vm1776, %v836, 0.0
  %v1883 = vadd.f32 %v1881, %v1882
  %v1884 = vsel %vm1776, %v841, 0.0
  %v1885 = vadd.f32 %v1883, %v1884
  %v1886 = vsel %vm1776, %v844, 0.0
  %v1887 = vadd.f32 %v1885, %v1886
  %v1888 = vsel %vm1776, %v849, 0.0
  %v1889 = vadd.f32 %v1887, %v1888
  %v1890 = vsel %vm1776, %v852, 0.0
  %v1891 = vadd.f32 %v1889, %v1890
  %v1892 = vsel %vm1776, %v857, 0.0
  %v1893 = vadd.f32 %v1891, %v1892
  %v1894 = vsel %vm1776, %v860, 0.0
  %v1895 = vadd.f32 %v1893, %v1894
  %v1896 = vsel %vm1776, %v865, 0.0
  %v1897 = vadd.f32 %v1895, %v1896
  %v1898 = vsel %vm1776, %v868, 0.0
  %v1899 = vadd.f32 %v1897, %v1898
  %v1900 = vsel %vm1776, %v873, 0.0
  %v1901 = vadd.f32 %v1899, %v1900
  %v1902 = vsel %vm1776, %v876, 0.0
  %v1903 = vadd.f32 %v1901, %v1902
  %v1904 = vsel %vm1776, %v881, 0.0
  %v1905 = vadd.f32 %v1903, %v1904
  %v1906 = vsel %vm1776, %v884, 0.0
  %v1907 = vadd.f32 %v1905, %v1906
  %v1908 = vsel %vm1776, %v889, 0.0
  %v1909 = vadd.f32 %v1907, %v1908
  %v1910 = vsel %vm1776, %v892, 0.0
  %v1911 = vadd.f32 %v1909, %v1910
  %v1912 = vsel %vm1776, %v897, 0.0
  %v1913 = vadd.f32 %v1911, %v1912
  %v1914 = vsel %vm1776, %v900, 0.0
  %v1915 = vadd.f32 %v1913, %v1914
  %v1916 = vsel %vm1776, %v905, 0.0
  %v1917 = vadd.f32 %v1915, %v1916
  %v1918 = vsel %vm1776, %v908, 0.0
  %v1919 = vadd.f32 %v1917, %v1918
  %v1920 = vsel %vm1776, %v913, 0.0
  %v1921 = vadd.f32 %v1919, %v1920
  %v1922 = vsel %vm1776, %v916, 0.0
  %v1923 = vadd.f32 %v1921, %v1922
  %v1924 = vsel %vm1776, %v921, 0.0
  %v1925 = vadd.f32 %v1923, %v1924
  %v1926 = vsel %vm1776, %v924, 0.0
  %v1927 = vadd.f32 %v1925, %v1926
  %v1928 = vsel %vm1776, %v929, 0.0
  %v1929 = vadd.f32 %v1927, %v1928
  %v1930 = vsel %vm1776, %v932, 0.0
  %v1931 = vadd.f32 %v1929, %v1930
  %v1932 = vsel %vm1776, %v937, 0.0
  %v1933 = vadd.f32 %v1931, %v1932
  %v1934 = vsel %vm1776, %v940, 0.0
  %v1935 = vadd.f32 %v1933, %v1934
  %v1936 = vsel %vm1776, %v945, 0.0
  %v1937 = vadd.f32 %v1935, %v1936
  %v1938 = vsel %vm1776, %v948, 0.0
  %v1939 = vadd.f32 %v1937, %v1938
  %v1940 = vsel %vm1776, %v953, 0.0
  %v1941 = vadd.f32 %v1939, %v1940
  %v1942 = vsel %vm1776, %v956, 0.0
  %v1943 = vadd.f32 %v1941, %v1942
  %v1944 = vsel %vm1776, %v961, 0.0
  %v1945 = vadd.f32 %v1943, %v1944
  %v1946 = vsel %vm1776, %v964, 0.0
  %v1947 = vadd.f32 %v1945, %v1946
  %v1948 = vsel %vm1776, %v969, 0.0
  %v1949 = vadd.f32 %v1947, %v1948
  %v1950 = vsel %vm1776, %v972, 0.0
  %v1951 = vadd.f32 %v1949, %v1950
  %v1952 = vsel %vm1776, %v977, 0.0
  %v1953 = vadd.f32 %v1951, %v1952
  %v1954 = vsel %vm1776, %v980, 0.0
  %v1955 = vadd.f32 %v1953, %v1954
  %v1956 = vsel %vm1776, %v985, 0.0
  %v1957 = vadd.f32 %v1955, %v1956
  %v1958 = vsel %vm1776, %v988, 0.0
  %v1959 = vadd.f32 %v1957, %v1958
  %v1960 = vsel %vm1776, %v993, 0.0
  %v1961 = vadd.f32 %v1959, %v1960
  %v1962 = vsel %vm1776, %v996, 0.0
  %v1963 = vadd.f32 %v1961, %v1962
  %v1964 = vsel %vm1776, %v1001, 0.0
  %v1965 = vadd.f32 %v1963, %v1964
  %v1966 = vsel %vm1776, %v1004, 0.0
  %v1967 = vadd.f32 %v1965, %v1966
  %v1968 = vsel %vm1776, %v1009, 0.0
  %v1969 = vadd.f32 %v1967, %v1968
  %v1970 = vsel %vm1776, %v1012, 0.0
  %v1971 = vadd.f32 %v1969, %v1970
  %v1972 = vsel %vm1776, %v1017, 0.0
  %v1973 = vadd.f32 %v1971, %v1972
  %v1974 = vsel %vm1776, %v1020, 0.0
  %v1975 = vadd.f32 %v1973, %v1974
  %v1976 = vsel %vm1776, %v1025, 0.0
  %v1977 = vadd.f32 %v1975, %v1976
  %v1978 = vsel %vm1776, %v1028, 0.0
  %v1979 = vadd.f32 %v1977, %v1978
  %v1980 = vsel %vm1776, %v1033, 0.0
  %v1981 = vadd.f32 %v1979, %v1980
  %v1982 = vsel %vm1776, %v1036, 0.0
  %v1983 = vadd.f32 %v1981, %v1982
  %v1984 = vsel %vm1776, %v1041, 0.0
  %v1985 = vadd.f32 %v1983, %v1984
  %v1986 = vsel %vm1776, %v1044, 0.0
  %v1987 = vadd.f32 %v1985, %v1986
  %v1988 = vsel %vm1776, %v1049, 0.0
  %v1989 = vadd.f32 %v1987, %v1988
  %v1990 = vsel %vm1776, %v1052, 0.0
  %v1991 = vadd.f32 %v1989, %v1990
  %v1992 = vsel %vm1776, %v1057, 0.0
  %v1993 = vadd.f32 %v1991, %v1992
  %v1994 = vsel %vm1776, %v1060, 0.0
  %v1995 = vadd.f32 %v1993, %v1994
  %v1996 = vsel %vm1776, %v1065, 0.0
  %v1997 = vadd.f32 %v1995, %v1996
  %v1998 = vsel %vm1776, %v1068, 0.0
  %v1999 = vadd.f32 %v1997, %v1998
  %v2000 = vsel %vm1776, %v1073, 0.0
  %v2001 = vadd.f32 %v1999, %v2000
  %v2002 = vsel %vm1776, %v1076, 0.0
  %v2003 = vadd.f32 %v2001, %v2002
  %v2004 = vsel %vm1776, %v1081, 0.0
  %v2005 = vadd.f32 %v2003, %v2004
  %v2006 = vsel %vm1776, %v1084, 0.0
  %v2007 = vadd.f32 %v2005, %v2006
  %v2008 = vsel %vm1776, %v1089, 0.0
  %v2009 = vadd.f32 %v2007, %v2008
  %v2010 = vsel %vm1776, %v1092, 0.0
  %v2011 = vadd.f32 %v2009, %v2010
  %v2012 = vsel %vm1776, %v1097, 0.0
  %v2013 = vadd.f32 %v2011, %v2012
  %v2014 = vsel %vm1776, %v1100, 0.0
  %v2015 = vadd.f32 %v2013, %v2014
  %v2016 = vsel %vm1776, %v1105, 0.0
  %v2017 = vadd.f32 %v2015, %v2016
  %v2018 = vsel %vm1776, %v1108, 0.0
  %v2019 = vadd.f32 %v2017, %v2018
  %v2020 = vsel %vm1776, %v1113, 0.0
  %v2021 = vadd.f32 %v2019, %v2020
  %v2022 = vsel %vm1776, %v1116, 0.0
  %v2023 = vadd.f32 %v2021, %v2022
  %v2024 = vsel %vm1776, %v1121, 0.0
  %v2025 = vadd.f32 %v2023, %v2024
  %v2026 = vsel %vm1776, %v1124, 0.0
  %v2027 = vadd.f32 %v2025, %v2026
  %v2028 = vsel %vm1776, %v1129, 0.0
  %v2029 = vadd.f32 %v2027, %v2028
  %v2030 = vsel %vm1776, %v1132, 0.0
  %v2031 = vadd.f32 %v2029, %v2030
  %v2032 = vrot.slane %v2031, 4
  %v2033 = vadd.f32 %v2031, %v2032
  %v2034 = vrot.slane %v2033, 2
  %v2035 = vadd.f32 %v2033, %v2034
  %v2036 = vrot.slane %v2035, 1
  %v2037 = vadd.f32 %v2035, %v2036
  %v2038 = vmul.f32 %v625, %v625
  %v2039 = vmul.f32 %v628, %v628
  %v2040 = vmul.f32 %v633, %v633
  %v2041 = vmul.f32 %v636, %v636
  %v2042 = vmul.f32 %v641, %v641
  %v2043 = vmul.f32 %v644, %v644
  %v2044 = vmul.f32 %v649, %v649
  %v2045 = vmul.f32 %v652, %v652
  %v2046 = vmul.f32 %v657, %v657
  %v2047 = vmul.f32 %v660, %v660
  %v2048 = vmul.f32 %v665, %v665
  %v2049 = vmul.f32 %v668, %v668
  %v2050 = vmul.f32 %v673, %v673
  %v2051 = vmul.f32 %v676, %v676
  %v2052 = vmul.f32 %v681, %v681
  %v2053 = vmul.f32 %v684, %v684
  %v2054 = vmul.f32 %v689, %v689
  %v2055 = vmul.f32 %v692, %v692
  %v2056 = vmul.f32 %v697, %v697
  %v2057 = vmul.f32 %v700, %v700
  %v2058 = vmul.f32 %v705, %v705
  %v2059 = vmul.f32 %v708, %v708
  %v2060 = vmul.f32 %v713, %v713
  %v2061 = vmul.f32 %v716, %v716
  %v2062 = vmul.f32 %v721, %v721
  %v2063 = vmul.f32 %v724, %v724
  %v2064 = vmul.f32 %v729, %v729
  %v2065 = vmul.f32 %v732, %v732
  %v2066 = vmul.f32 %v737, %v737
  %v2067 = vmul.f32 %v740, %v740
  %v2068 = vmul.f32 %v745, %v745
  %v2069 = vmul.f32 %v748, %v748
  %v2070 = vmul.f32 %v753, %v753
  %v2071 = vmul.f32 %v756, %v756
  %v2072 = vmul.f32 %v761, %v761
  %v2073 = vmul.f32 %v764, %v764
  %v2074 = vmul.f32 %v769, %v769
  %v2075 = vmul.f32 %v772, %v772
  %v2076 = vmul.f32 %v777, %v777
  %v2077 = vmul.f32 %v780, %v780
  %v2078 = vmul.f32 %v785, %v785
  %v2079 = vmul.f32 %v788, %v788
  %v2080 = vmul.f32 %v793, %v793
  %v2081 = vmul.f32 %v796, %v796
  %v2082 = vmul.f32 %v801, %v801
  %v2083 = vmul.f32 %v804, %v804
  %v2084 = vmul.f32 %v809, %v809
  %v2085 = vmul.f32 %v812, %v812
  %v2086 = vmul.f32 %v817, %v817
  %v2087 = vmul.f32 %v820, %v820
  %v2088 = vmul.f32 %v825, %v825
  %v2089 = vmul.f32 %v828, %v828
  %v2090 = vmul.f32 %v833, %v833
  %v2091 = vmul.f32 %v836, %v836
  %v2092 = vmul.f32 %v841, %v841
  %v2093 = vmul.f32 %v844, %v844
  %v2094 = vmul.f32 %v849, %v849
  %v2095 = vmul.f32 %v852, %v852
  %v2096 = vmul.f32 %v857, %v857
  %v2097 = vmul.f32 %v860, %v860
  %v2098 = vmul.f32 %v865, %v865
  %v2099 = vmul.f32 %v868, %v868
  %v2100 = vmul.f32 %v873, %v873
  %v2101 = vmul.f32 %v876, %v876
  %v2102 = vmul.f32 %v881, %v881
  %v2103 = vmul.f32 %v884, %v884
  %v2104 = vmul.f32 %v889, %v889
  %v2105 = vmul.f32 %v892, %v892
  %v2106 = vmul.f32 %v897, %v897
  %v2107 = vmul.f32 %v900, %v900
  %v2108 = vmul.f32 %v905, %v905
  %v2109 = vmul.f32 %v908, %v908
  %v2110 = vmul.f32 %v913, %v913
  %v2111 = vmul.f32 %v916, %v916
  %v2112 = vmul.f32 %v921, %v921
  %v2113 = vmul.f32 %v924, %v924
  %v2114 = vmul.f32 %v929, %v929
  %v2115 = vmul.f32 %v932, %v932
  %v2116 = vmul.f32 %v937, %v937
  %v2117 = vmul.f32 %v940, %v940
  %v2118 = vmul.f32 %v945, %v945
  %v2119 = vmul.f32 %v948, %v948
  %v2120 = vmul.f32 %v953, %v953
  %v2121 = vmul.f32 %v956, %v956
  %v2122 = vmul.f32 %v961, %v961
  %v2123 = vmul.f32 %v964, %v964
  %v2124 = vmul.f32 %v969, %v969
  %v2125 = vmul.f32 %v972, %v972
  %v2126 = vmul.f32 %v977, %v977
  %v2127 = vmul.f32 %v980, %v980
  %v2128 = vmul.f32 %v985, %v985
  %v2129 = vmul.f32 %v988, %v988
  %v2130 = vmul.f32 %v993, %v993
  %v2131 = vmul.f32 %v996, %v996
  %v2132 = vmul.f32 %v1001, %v1001
  %v2133 = vmul.f32 %v1004, %v1004
  %v2134 = vmul.f32 %v1009, %v1009
  %v2135 = vmul.f32 %v1012, %v1012
  %v2136 = vmul.f32 %v1017, %v1017
  %v2137 = vmul.f32 %v1020, %v1020
  %v2138 = vmul.f32 %v1025, %v1025
  %v2139 = vmul.f32 %v1028, %v1028
  %v2140 = vmul.f32 %v1033, %v1033
  %v2141 = vmul.f32 %v1036, %v1036
  %v2142 = vmul.f32 %v1041, %v1041
  %v2143 = vmul.f32 %v1044, %v1044
  %v2144 = vmul.f32 %v1049, %v1049
  %v2145 = vmul.f32 %v1052, %v1052
  %v2146 = vmul.f32 %v1057, %v1057
  %v2147 = vmul.f32 %v1060, %v1060
  %v2148 = vmul.f32 %v1065, %v1065
  %v2149 = vmul.f32 %v1068, %v1068
  %v2150 = vmul.f32 %v1073, %v1073
  %v2151 = vmul.f32 %v1076, %v1076
  %v2152 = vmul.f32 %v1081, %v1081
  %v2153 = vmul.f32 %v1084, %v1084
  %v2154 = vmul.f32 %v1089, %v1089
  %v2155 = vmul.f32 %v1092, %v1092
  %v2156 = vmul.f32 %v1097, %v1097
  %v2157 = vmul.f32 %v1100, %v1100
  %v2158 = vmul.f32 %v1105, %v1105
  %v2159 = vmul.f32 %v1108, %v1108
  %v2160 = vmul.f32 %v1113, %v1113
  %v2161 = vmul.f32 %v1116, %v1116
  %v2162 = vmul.f32 %v1121, %v1121
  %v2163 = vmul.f32 %v1124, %v1124
  %v2164 = vmul.f32 %v1129, %v1129
  %v2165 = vmul.f32 %v1132, %v1132
  %v2166 = vsel %vm1776, %v2038, 0.0
  %v2167 = vsel %vm1776, %v2039, 0.0
  %v2168 = vadd.f32 %v2166, %v2167
  %v2169 = vsel %vm1776, %v2040, 0.0
  %v2170 = vadd.f32 %v2168, %v2169
  %v2171 = vsel %vm1776, %v2041, 0.0
  %v2172 = vadd.f32 %v2170, %v2171
  %v2173 = vsel %vm1776, %v2042, 0.0
  %v2174 = vadd.f32 %v2172, %v2173
  %v2175 = vsel %vm1776, %v2043, 0.0
  %v2176 = vadd.f32 %v2174, %v2175
  %v2177 = vsel %vm1776, %v2044, 0.0
  %v2178 = vadd.f32 %v2176, %v2177
  %v2179 = vsel %vm1776, %v2045, 0.0
  %v2180 = vadd.f32 %v2178, %v2179
  %v2181 = vsel %vm1776, %v2046, 0.0
  %v2182 = vadd.f32 %v2180, %v2181
  %v2183 = vsel %vm1776, %v2047, 0.0
  %v2184 = vadd.f32 %v2182, %v2183
  %v2185 = vsel %vm1776, %v2048, 0.0
  %v2186 = vadd.f32 %v2184, %v2185
  %v2187 = vsel %vm1776, %v2049, 0.0
  %v2188 = vadd.f32 %v2186, %v2187
  %v2189 = vsel %vm1776, %v2050, 0.0
  %v2190 = vadd.f32 %v2188, %v2189
  %v2191 = vsel %vm1776, %v2051, 0.0
  %v2192 = vadd.f32 %v2190, %v2191
  %v2193 = vsel %vm1776, %v2052, 0.0
  %v2194 = vadd.f32 %v2192, %v2193
  %v2195 = vsel %vm1776, %v2053, 0.0
  %v2196 = vadd.f32 %v2194, %v2195
  %v2197 = vsel %vm1776, %v2054, 0.0
  %v2198 = vadd.f32 %v2196, %v2197
  %v2199 = vsel %vm1776, %v2055, 0.0
  %v2200 = vadd.f32 %v2198, %v2199
  %v2201 = vsel %vm1776, %v2056, 0.0
  %v2202 = vadd.f32 %v2200, %v2201
  %v2203 = vsel %vm1776, %v2057, 0.0
  %v2204 = vadd.f32 %v2202, %v2203
  %v2205 = vsel %vm1776, %v2058, 0.0
  %v2206 = vadd.f32 %v2204, %v2205
  %v2207 = vsel %vm1776, %v2059, 0.0
  %v2208 = vadd.f32 %v2206, %v2207
  %v2209 = vsel %vm1776, %v2060, 0.0
  %v2210 = vadd.f32 %v2208, %v2209
  %v2211 = vsel %vm1776, %v2061, 0.0
  %v2212 = vadd.f32 %v2210, %v2211
  %v2213 = vsel %vm1776, %v2062, 0.0
  %v2214 = vadd.f32 %v2212, %v2213
  %v2215 = vsel %vm1776, %v2063, 0.0
  %v2216 = vadd.f32 %v2214, %v2215
  %v2217 = vsel %vm1776, %v2064, 0.0
  %v2218 = vadd.f32 %v2216, %v2217
  %v2219 = vsel %vm1776, %v2065, 0.0
  %v2220 = vadd.f32 %v2218, %v2219
  %v2221 = vsel %vm1776, %v2066, 0.0
  %v2222 = vadd.f32 %v2220, %v2221
  %v2223 = vsel %vm1776, %v2067, 0.0
  %v2224 = vadd.f32 %v2222, %v2223
  %v2225 = vsel %vm1776, %v2068, 0.0
  %v2226 = vadd.f32 %v2224, %v2225
  %v2227 = vsel %vm1776, %v2069, 0.0
  %v2228 = vadd.f32 %v2226, %v2227
  %v2229 = vsel %vm1776, %v2070, 0.0
  %v2230 = vadd.f32 %v2228, %v2229
  %v2231 = vsel %vm1776, %v2071, 0.0
  %v2232 = vadd.f32 %v2230, %v2231
  %v2233 = vsel %vm1776, %v2072, 0.0
  %v2234 = vadd.f32 %v2232, %v2233
  %v2235 = vsel %vm1776, %v2073, 0.0
  %v2236 = vadd.f32 %v2234, %v2235
  %v2237 = vsel %vm1776, %v2074, 0.0
  %v2238 = vadd.f32 %v2236, %v2237
  %v2239 = vsel %vm1776, %v2075, 0.0
  %v2240 = vadd.f32 %v2238, %v2239
  %v2241 = vsel %vm1776, %v2076, 0.0
  %v2242 = vadd.f32 %v2240, %v2241
  %v2243 = vsel %vm1776, %v2077, 0.0
  %v2244 = vadd.f32 %v2242, %v2243
  %v2245 = vsel %vm1776, %v2078, 0.0
  %v2246 = vadd.f32 %v2244, %v2245
  %v2247 = vsel %vm1776, %v2079, 0.0
  %v2248 = vadd.f32 %v2246, %v2247
  %v2249 = vsel %vm1776, %v2080, 0.0
  %v2250 = vadd.f32 %v2248, %v2249
  %v2251 = vsel %vm1776, %v2081, 0.0
  %v2252 = vadd.f32 %v2250, %v2251
  %v2253 = vsel %vm1776, %v2082, 0.0
  %v2254 = vadd.f32 %v2252, %v2253
  %v2255 = vsel %vm1776, %v2083, 0.0
  %v2256 = vadd.f32 %v2254, %v2255
  %v2257 = vsel %vm1776, %v2084, 0.0
  %v2258 = vadd.f32 %v2256, %v2257
  %v2259 = vsel %vm1776, %v2085, 0.0
  %v2260 = vadd.f32 %v2258, %v2259
  %v2261 = vsel %vm1776, %v2086, 0.0
  %v2262 = vadd.f32 %v2260, %v2261
  %v2263 = vsel %vm1776, %v2087, 0.0
  %v2264 = vadd.f32 %v2262, %v2263
  %v2265 = vsel %vm1776, %v2088, 0.0
  %v2266 = vadd.f32 %v2264, %v2265
  %v2267 = vsel %vm1776, %v2089, 0.0
  %v2268 = vadd.f32 %v2266, %v2267
  %v2269 = vsel %vm1776, %v2090, 0.0
  %v2270 = vadd.f32 %v2268, %v2269
  %v2271 = vsel %vm1776, %v2091, 0.0
  %v2272 = vadd.f32 %v2270, %v2271
  %v2273 = vsel %vm1776, %v2092, 0.0
  %v2274 = vadd.f32 %v2272, %v2273
  %v2275 = vsel %vm1776, %v2093, 0.0
  %v2276 = vadd.f32 %v2274, %v2275
  %v2277 = vsel %vm1776, %v2094, 0.0
  %v2278 = vadd.f32 %v2276, %v2277
  %v2279 = vsel %vm1776, %v2095, 0.0
  %v2280 = vadd.f32 %v2278, %v2279
  %v2281 = vsel %vm1776, %v2096, 0.0
  %v2282 = vadd.f32 %v2280, %v2281
  %v2283 = vsel %vm1776, %v2097, 0.0
  %v2284 = vadd.f32 %v2282, %v2283
  %v2285 = vsel %vm1776, %v2098, 0.0
  %v2286 = vadd.f32 %v2284, %v2285
  %v2287 = vsel %vm1776, %v2099, 0.0
  %v2288 = vadd.f32 %v2286, %v2287
  %v2289 = vsel %vm1776, %v2100, 0.0
  %v2290 = vadd.f32 %v2288, %v2289
  %v2291 = vsel %vm1776, %v2101, 0.0
  %v2292 = vadd.f32 %v2290, %v2291
  %v2293 = vsel %vm1776, %v2102, 0.0
  %v2294 = vadd.f32 %v2292, %v2293
  %v2295 = vsel %vm1776, %v2103, 0.0
  %v2296 = vadd.f32 %v2294, %v2295
  %v2297 = vsel %vm1776, %v2104, 0.0
  %v2298 = vadd.f32 %v2296, %v2297
  %v2299 = vsel %vm1776, %v2105, 0.0
  %v2300 = vadd.f32 %v2298, %v2299
  %v2301 = vsel %vm1776, %v2106, 0.0
  %v2302 = vadd.f32 %v2300, %v2301
  %v2303 = vsel %vm1776, %v2107, 0.0
  %v2304 = vadd.f32 %v2302, %v2303
  %v2305 = vsel %vm1776, %v2108, 0.0
  %v2306 = vadd.f32 %v2304, %v2305
  %v2307 = vsel %vm1776, %v2109, 0.0
  %v2308 = vadd.f32 %v2306, %v2307
  %v2309 = vsel %vm1776, %v2110, 0.0
  %v2310 = vadd.f32 %v2308, %v2309
  %v2311 = vsel %vm1776, %v2111, 0.0
  %v2312 = vadd.f32 %v2310, %v2311
  %v2313 = vsel %vm1776, %v2112, 0.0
  %v2314 = vadd.f32 %v2312, %v2313
  %v2315 = vsel %vm1776, %v2113, 0.0
  %v2316 = vadd.f32 %v2314, %v2315
  %v2317 = vsel %vm1776, %v2114, 0.0
  %v2318 = vadd.f32 %v2316, %v2317
  %v2319 = vsel %vm1776, %v2115, 0.0
  %v2320 = vadd.f32 %v2318, %v2319
  %v2321 = vsel %vm1776, %v2116, 0.0
  %v2322 = vadd.f32 %v2320, %v2321
  %v2323 = vsel %vm1776, %v2117, 0.0
  %v2324 = vadd.f32 %v2322, %v2323
  %v2325 = vsel %vm1776, %v2118, 0.0
  %v2326 = vadd.f32 %v2324, %v2325
  %v2327 = vsel %vm1776, %v2119, 0.0
  %v2328 = vadd.f32 %v2326, %v2327
  %v2329 = vsel %vm1776, %v2120, 0.0
  %v2330 = vadd.f32 %v2328, %v2329
  %v2331 = vsel %vm1776, %v2121, 0.0
  %v2332 = vadd.f32 %v2330, %v2331
  %v2333 = vsel %vm1776, %v2122, 0.0
  %v2334 = vadd.f32 %v2332, %v2333
  %v2335 = vsel %vm1776, %v2123, 0.0
  %v2336 = vadd.f32 %v2334, %v2335
  %v2337 = vsel %vm1776, %v2124, 0.0
  %v2338 = vadd.f32 %v2336, %v2337
  %v2339 = vsel %vm1776, %v2125, 0.0
  %v2340 = vadd.f32 %v2338, %v2339
  %v2341 = vsel %vm1776, %v2126, 0.0
  %v2342 = vadd.f32 %v2340, %v2341
  %v2343 = vsel %vm1776, %v2127, 0.0
  %v2344 = vadd.f32 %v2342, %v2343
  %v2345 = vsel %vm1776, %v2128, 0.0
  %v2346 = vadd.f32 %v2344, %v2345
  %v2347 = vsel %vm1776, %v2129, 0.0
  %v2348 = vadd.f32 %v2346, %v2347
  %v2349 = vsel %vm1776, %v2130, 0.0
  %v2350 = vadd.f32 %v2348, %v2349
  %v2351 = vsel %vm1776, %v2131, 0.0
  %v2352 = vadd.f32 %v2350, %v2351
  %v2353 = vsel %vm1776, %v2132, 0.0
  %v2354 = vadd.f32 %v2352, %v2353
  %v2355 = vsel %vm1776, %v2133, 0.0
  %v2356 = vadd.f32 %v2354, %v2355
  %v2357 = vsel %vm1776, %v2134, 0.0
  %v2358 = vadd.f32 %v2356, %v2357
  %v2359 = vsel %vm1776, %v2135, 0.0
  %v2360 = vadd.f32 %v2358, %v2359
  %v2361 = vsel %vm1776, %v2136, 0.0
  %v2362 = vadd.f32 %v2360, %v2361
  %v2363 = vsel %vm1776, %v2137, 0.0
  %v2364 = vadd.f32 %v2362, %v2363
  %v2365 = vsel %vm1776, %v2138, 0.0
  %v2366 = vadd.f32 %v2364, %v2365
  %v2367 = vsel %vm1776, %v2139, 0.0
  %v2368 = vadd.f32 %v2366, %v2367
  %v2369 = vsel %vm1776, %v2140, 0.0
  %v2370 = vadd.f32 %v2368, %v2369
  %v2371 = vsel %vm1776, %v2141, 0.0
  %v2372 = vadd.f32 %v2370, %v2371
  %v2373 = vsel %vm1776, %v2142, 0.0
  %v2374 = vadd.f32 %v2372, %v2373
  %v2375 = vsel %vm1776, %v2143, 0.0
  %v2376 = vadd.f32 %v2374, %v2375
  %v2377 = vsel %vm1776, %v2144, 0.0
  %v2378 = vadd.f32 %v2376, %v2377
  %v2379 = vsel %vm1776, %v2145, 0.0
  %v2380 = vadd.f32 %v2378, %v2379
  %v2381 = vsel %vm1776, %v2146, 0.0
  %v2382 = vadd.f32 %v2380, %v2381
  %v2383 = vsel %vm1776, %v2147, 0.0
  %v2384 = vadd.f32 %v2382, %v2383
  %v2385 = vsel %vm1776, %v2148, 0.0
  %v2386 = vadd.f32 %v2384, %v2385
  %v2387 = vsel %vm1776, %v2149, 0.0
  %v2388 = vadd.f32 %v2386, %v2387
  %v2389 = vsel %vm1776, %v2150, 0.0
  %v2390 = vadd.f32 %v2388, %v2389
  %v2391 = vsel %vm1776, %v2151, 0.0
  %v2392 = vadd.f32 %v2390, %v2391
  %v2393 = vsel %vm1776, %v2152, 0.0
  %v2394 = vadd.f32 %v2392, %v2393
  %v2395 = vsel %vm1776, %v2153, 0.0
  %v2396 = vadd.f32 %v2394, %v2395
  %v2397 = vsel %vm1776, %v2154, 0.0
  %v2398 = vadd.f32 %v2396, %v2397
  %v2399 = vsel %vm1776, %v2155, 0.0
  %v2400 = vadd.f32 %v2398, %v2399
  %v2401 = vsel %vm1776, %v2156, 0.0
  %v2402 = vadd.f32 %v2400, %v2401
  %v2403 = vsel %vm1776, %v2157, 0.0
  %v2404 = vadd.f32 %v2402, %v2403
  %v2405 = vsel %vm1776, %v2158, 0.0
  %v2406 = vadd.f32 %v2404, %v2405
  %v2407 = vsel %vm1776, %v2159, 0.0
  %v2408 = vadd.f32 %v2406, %v2407
  %v2409 = vsel %vm1776, %v2160, 0.0
  %v2410 = vadd.f32 %v2408, %v2409
  %v2411 = vsel %vm1776, %v2161, 0.0
  %v2412 = vadd.f32 %v2410, %v2411
  %v2413 = vsel %vm1776, %v2162, 0.0
  %v2414 = vadd.f32 %v2412, %v2413
  %v2415 = vsel %vm1776, %v2163, 0.0
  %v2416 = vadd.f32 %v2414, %v2415
  %v2417 = vsel %vm1776, %v2164, 0.0
  %v2418 = vadd.f32 %v2416, %v2417
  %v2419 = vsel %vm1776, %v2165, 0.0
  %v2420 = vadd.f32 %v2418, %v2419
  %v2421 = vrot.slane %v2420, 4
  %v2422 = vadd.f32 %v2420, %v2421
  %v2423 = vrot.slane %v2422, 2
  %v2424 = vadd.f32 %v2422, %v2423
  %v2425 = vrot.slane %v2424, 1
  %v2426 = vadd.f32 %v2424, %v2425
  %vm2427 = vcmask 1040384
  %v2428 = vsel %vm2427, %v2037, %v2426
  %vm2429 = vcmask 58368
  %2430 = vst.msk [vmem:[%s3] sm:$0x3] %vm2429, %v2428
  // Predicated region
  $region10: #{conv_block_3d.2} parent=0 // pred_check
    _
  $region11: #{conv_block_3d.2} parent=0 // pred_check_branch
    %2432 = sbr.rel (0) target = $region13
  $region12: #{conv_block_3d.2} parent=0 // pred_region
    _
  $region13: #{conv_block_3d.2} parent=0 // pred_fallthru
    _
  // Predicated region
  $region14: #{conv_block_3d.2} parent=0 // pred_check
    _
  $region15: #{conv_block_3d.2} parent=0 // pred_check_branch
    %2434 = sbr.rel (0) target = $region17
  $region16: #{conv_block_3d.2} parent=0 // pred_region
    _
  $region17: #{conv_block_3d.2} parent=0 // pred_fallthru
    _
  // Predicated region
  $region18: #{conv_block_3d.2} parent=0 // pred_check
    _
  $region19: #{conv_block_3d.2} parent=0 // pred_check_branch
    %2436 = sbr.rel (0) target = $region21
  $region20: #{conv_block_3d.2} parent=0 // pred_region
    _
  $region21: #{conv_block_3d.2} parent=0 // pred_fallthru
    _
  // Predicated region
  $region22: #{conv_block_3d.2} parent=0 // pred_check
    _
  $region23: #{conv_block_3d.2} parent=0 // pred_check_branch
    %2438 = sbr.rel (0) target = $region25
  $region24: #{conv_block_3d.2} parent=0 // pred_region
    _
  $region25: #{conv_block_3d.2} parent=0 // pred_fallthru
    _

</llo_original>
